<compile_context>
chip_gen: v5e
topology: v5e:2x2
jax: 0.10.0
libtpu: 0.0.40
codegen_flags: <defaults>
</compile_context>

<pallas_src>
import functools
import math

import numpy as np
import jax
import jax.numpy as jnp
from jax.experimental import pallas as pl
from jax.experimental.pallas import tpu as pltpu


# ----------------------------- Pallas kernel -----------------------------
def _fcwcrf_kernel(fcol_ref, frow_ref, cstat_ref, rstat_ref, o_ref, acc_sc,
                   *, n_cls, inv_theta2):
    # fcol_ref : (1, TI, Cf)     features, pixel i along sublanes (MXU lhs)
    # frow_ref : (1, Cf, TJ)     features, pixel j along lanes    (MXU rhs)
    # cstat_ref: (1, TI, K)      col stats [mu, var, 0.25/var, rsqrt(ss), 2*p*g (C1), p^2 (C1)]
    # rstat_ref: (1, K, TJ)      row stats [mu, var, 0.25/var, rsqrt(ss),   p*g (C1), p^2 (C1)]
    # o_ref    : (1, 1, 8, 128)  per-(b, i-tile) partial sum (written on last j step only)
    # acc_sc   : (TI, TJ) f32    elementwise running accumulator over j tiles

    j = pl.program_id(2)

    @pl.when(j == 0)
    def _init():
        acc_sc[...] = jnp.zeros_like(acc_sc)

    fcol = fcol_ref[0]                      # (TI, Cf)
    frow = frow_ref[0]                      # (Cf, TJ)
    cs = cstat_ref[0]                       # (TI, K)
    rs = rstat_ref[0]                       # (K, TJ)

    mu_c, var_c = cs[:, 0:1], cs[:, 1:2]
    inv4var_c, inv_norm_c = cs[:, 2:3], cs[:, 3:4]
    mu_r, var_r = rs[0:1, :], rs[1:2, :]
    inv4var_r, inv_norm_r = rs[2:3, :], rs[3:4, :]

    # ---- pairwise cosine similarity via Gram matrix on the MXU ----
    gram = jnp.dot(fcol, frow, preferred_element_type=jnp.float32)    # (TI, TJ)
    cos = gram * inv_norm_c * inv_norm_r

    # ---- symmetric Gaussian KL: the two log(std ratio) terms cancel exactly ----
    dm = mu_c - mu_r
    dm2 = dm * dm
    kl = (var_c + dm2) * inv4var_r + (var_r + dm2) * inv4var_c - 0.5
    d = (kl + (2.0 - 2.0 * cos)) * (1.0 / 3.0)
    w = jnp.exp(-(d * d) * inv_theta2)                                 # (TI, TJ)

    # ---- probability agreement, summed over classes, weighted by w once ----
    # softmax probs are strictly positive, so the reference's abs() is a no-op.
    s = None
    for c in range(n_cls):                                             # C-1 is tiny -> unrolled
        num = cs[:, 4 + c:5 + c] * rs[4 + c:5 + c, :]                  # (2 p_i g_i)*(p_j g_j)
        den = cs[:, 4 + n_cls + c:5 + n_cls + c] + rs[4 + n_cls + c:5 + n_cls + c, :]
        t = num * pl.reciprocal(den, approx=True)
        s = t if s is None else s + t

    acc_sc[...] += w * s

    @pl.when(j == pl.num_programs(2) - 1)
    def _finalize():
        total = jnp.sum(acc_sc[...])
        o_ref[...] = jnp.broadcast_to(total, o_ref.shape).astype(o_ref.dtype)


# ----------------------------- wrapper -----------------------------
def _pick_tile(n, max_tile, align):
    """Largest divisor of n that is a multiple of `align` and <= max_tile; else n (full dim)."""
    t = min(max_tile, n)
    t = (t // align) * align
    while t >= align:
        if n % t == 0:
            return t
        t -= align
    return n


def fcwcrf_loss(f, p_logits, *, classes=4, theta=0.5):
    # TODO(synk): `resize is not None` (F.interpolate) branch not implemented.
    B, Cf, H, W = f.shape
    Bp, C, Hp, Wp = p_logits.shape
    assert B == Bp and C == classes and (H, W) == (Hp, Wp) and Cf >= 2
    N = H * W
    C1 = classes - 1
    k_p = classes / math.log(classes)

    f32 = jnp.float32
    f_row = f.reshape(B, Cf, N).astype(f32)                  # (B, Cf, N)  j on lanes
    f_col = jnp.transpose(f_row, (0, 2, 1))                  # (B, N, Cf)  i on sublanes

    p_prob = jax.nn.softmax(
        p_logits.reshape(B, C, N).astype(f32), axis=1)[:, 1:, :]       # (B, C1, N)

    # Per-pixel statistics: O(N) work, done once here (hoisted out of the O(N^2) kernel).
    mu = jnp.mean(f_row, axis=1, keepdims=True)              # (B, 1, N)
    var = jnp.var(f_row, axis=1, ddof=1, keepdims=True)      # unbiased, like torch.std
    ss = jnp.sum(f_row * f_row, axis=1, keepdims=True)
    inv4var = 0.25 / var
    inv_norm = jax.lax.rsqrt(ss)
    g = 1.0 + k_p * p_prob * jnp.log(p_prob)                 # (B, C1, N)
    p_sq = p_prob * p_prob

    row_stats = jnp.concatenate(
        [mu, var, inv4var, inv_norm, p_prob * g, p_sq], axis=1)         # (B, K, N)
    col_stats = jnp.transpose(
        jnp.concatenate([mu, var, inv4var, inv_norm, 2.0 * p_prob * g, p_sq], axis=1),
        (0, 2, 1))                                                       # (B, N, K)
    K = 4 + 2 * C1

    # Tile both axes of the pairwise matrix; keeps live (TI,TJ) temps small enough
    # for v5e/v6e/v7x scoped VMEM defaults at any image size.
    TI = _pick_tile(N, 256, 8)
    TJ = _pick_tile(N, 512, 128)
    n_i = N // TI
    n_j = N // TJ

    kern = functools.partial(_fcwcrf_kernel, n_cls=C1,
                             inv_theta2=1.0 / (float(theta) * float(theta)))

    totals = pl.pallas_call(
        kern,
        out_shape=jax.ShapeDtypeStruct((B, n_i, 8, 128), jnp.float32),
        grid=(B, n_i, n_j),
        in_specs=[
            pl.BlockSpec((1, TI, Cf), lambda b, i, j: (b, i, 0)),   # f, i-tile (sublanes)
            pl.BlockSpec((1, Cf, TJ), lambda b, i, j: (b, 0, j)),   # f, j-tile (lanes)
            pl.BlockSpec((1, TI, K), lambda b, i, j: (b, i, 0)),    # col stats, i-tile
            pl.BlockSpec((1, K, TJ), lambda b, i, j: (b, 0, j)),    # row stats, j-tile
        ],
        out_specs=pl.BlockSpec((1, 1, 8, 128), lambda b, i, j: (b, i, 0, 0)),
        scratch_shapes=[pltpu.VMEM((TI, TJ), jnp.float32)],
        compiler_params=pltpu.CompilerParams(
            dimension_semantics=("parallel", "parallel", "arbitrary")),
    )(f_col, f_row, col_stats, row_stats)

    total = jnp.sum(totals[:, :, 0, 0])
    score = total / (B * C1 * N)          # .mean() over the summed (B, C1, N)
    return 1.0 - score / (H * W)


# ------------------------ pure-JAX reference (check) ------------------------
def fcwcrf_ref(f, p_logits, classes, theta):
    B, Cf, H, W = f.shape
    N = H * W
    k_p = classes / math.log(classes)
    pp = jax.nn.softmax(p_logits.reshape(B, classes, N), axis=1)[:, 1:, :]
    ff = f.reshape(B, Cf, N)
    mu = ff.mean(axis=1)                                          # (B, N)
    std = jnp.std(ff, axis=1, ddof=1)                             # (B, N)
    ss = (ff ** 2).sum(axis=1)                                    # (B, N)
    gram = jnp.einsum('bci,bcj->bij', ff, ff)                     # (B, N, N)
    mu_i, mu_j = mu[:, :, None], mu[:, None, :]
    s_i, s_j = std[:, :, None], std[:, None, :]
    ss_i, ss_j = ss[:, :, None], ss[:, None, :]
    dm2 = (mu_i - mu_j) ** 2
    kl = 0.5 * (jnp.log(s_j / s_i) + (s_i ** 2 + dm2) / (2 * s_j ** 2)
                + jnp.log(s_i / s_j) + (s_j ** 2 + dm2) / (2 * s_i ** 2) - 1)
    cos = gram / jnp.sqrt(ss_i * ss_j)
    d = (kl + 2 * (1 - cos)) / 3
    w = jnp.exp(-d ** 2 / theta ** 2)                             # (B, Ni, Nj)
    g = 1 + k_p * pp * jnp.log(pp)                                # (B, C1, N)
    p_i, p_j = pp[:, :, :, None], pp[:, :, None, :]
    g_i, g_j = g[:, :, :, None], g[:, :, None, :]
    q = jnp.abs(2 * p_i * p_j) / (p_i ** 2 + p_j ** 2)
    terms = w[:, None, :, :] * q * g_i * g_j                      # (B, C1, Ni, Nj)
    score = terms.sum(axis=2).mean()
    return 1 - score / (H * W)


if __name__ == "__main__":
    B, Cf, H, W = 2, 8, 16, 16
    classes, theta = 4, 0.5

    key = jax.random.PRNGKey(0)
    kf, kp = jax.random.split(key)
    f = jax.random.normal(kf, (B, Cf, H, W), jnp.float32)
    p = jax.random.normal(kp, (B, classes, H, W), jnp.float32)

    loss_fn = jax.jit(functools.partial(fcwcrf_loss, classes=classes, theta=theta))
    out = loss_fn(f, p)
    jax.block_until_ready(out)

    ref = fcwcrf_ref(f, p, classes, theta)
    np.testing.assert_allclose(np.asarray(out), np.asarray(ref), rtol=5e-3, atol=5e-3)
    print("KERNEL_OK")
</pallas_src>

<mosaic_0001>
module attributes {stable_mosaic.version = 11 : i64} {
  func.func @_fcwcrf_kernel(%arg0: i32, %arg1: i32, %arg2: i32, %arg3: memref<1x256x8xf32, #tpu.memory_space<vmem>>, %arg4: memref<1x8x256xf32, #tpu.memory_space<vmem>>, %arg5: memref<1x256x10xf32, #tpu.memory_space<vmem>>, %arg6: memref<1x10x256xf32, #tpu.memory_space<vmem>>, %arg7: memref<1x1x8x128xf32, #tpu.memory_space<vmem>>, %arg8: memref<256x256xf32, #tpu.memory_space<vmem>>) attributes {dimension_semantics = [#tpu.dimension_semantics<parallel>, #tpu.dimension_semantics<parallel>, #tpu.dimension_semantics<arbitrary>], iteration_bounds = array<i64: 2, 1, 1>, scalar_prefetch = 0 : i64, scratch_operands = 1 : i64, tpu.core_type = #tpu.core_type<tc>, window_params = [{transform_indices = @transform_0, window_bounds = array<i64: 1, 256, 8>}, {transform_indices = @transform_1, window_bounds = array<i64: 1, 8, 256>}, {transform_indices = @transform_2, window_bounds = array<i64: 1, 256, 10>}, {transform_indices = @transform_3, window_bounds = array<i64: 1, 10, 256>}, {transform_indices = @transform_4, window_bounds = array<i64: 1, 1, 8, 128>}]} {
    %c0_i32 = arith.constant 0 : i32
    %0 = arith.cmpi eq, %arg2, %c0_i32 : i32
    %1 = arith.extui %0 : i1 to i32
    %c0_i32_0 = arith.constant 0 : i32
    %2 = arith.cmpi ne, %1, %c0_i32_0 : i32
    scf.if %2 {
      %cst_24 = arith.constant 0.000000e+00 : f32
      %97 = vector.broadcast %cst_24 : f32 to vector<256x256xf32>
      %c0_25 = arith.constant 0 : index
      %c0_26 = arith.constant 0 : index
      %98 = vector.load %arg8[%c0_25, %c0_26] : memref<256x256xf32, #tpu.memory_space<vmem>>, vector<256x256xf32>
      tpu.vector_store %arg8[%c0_25, %c0_26], %97 {strides = array<i32>} : memref<256x256xf32, #tpu.memory_space<vmem>>, vector<256x256xf32>,
    } else {
    }
    %c0 = arith.constant 0 : index
    %c0_1 = arith.constant 0 : index
    %c0_2 = arith.constant 0 : index
    %3 = vector.load %arg3[%c0, %c0_1, %c0_2] : memref<1x256x8xf32, #tpu.memory_space<vmem>>, vector<1x256x8xf32>
    %4 = vector.shape_cast %3 : vector<1x256x8xf32> to vector<256x8xf32>
    %c0_3 = arith.constant 0 : index
    %c0_4 = arith.constant 0 : index
    %c0_5 = arith.constant 0 : index
    %5 = vector.load %arg4[%c0_3, %c0_4, %c0_5] : memref<1x8x256xf32, #tpu.memory_space<vmem>>, vector<1x8x256xf32>
    %6 = vector.shape_cast %5 : vector<1x8x256xf32> to vector<8x256xf32>
    %c0_6 = arith.constant 0 : index
    %c0_7 = arith.constant 0 : index
    %c0_8 = arith.constant 0 : index
    %7 = vector.load %arg5[%c0_6, %c0_7, %c0_8] : memref<1x256x10xf32, #tpu.memory_space<vmem>>, vector<1x256x10xf32>
    %8 = vector.shape_cast %7 : vector<1x256x10xf32> to vector<256x10xf32>
    %c0_9 = arith.constant 0 : index
    %c0_10 = arith.constant 0 : index
    %c0_11 = arith.constant 0 : index
    %9 = vector.load %arg6[%c0_9, %c0_10, %c0_11] : memref<1x10x256xf32, #tpu.memory_space<vmem>>, vector<1x10x256xf32>
    %10 = vector.shape_cast %9 : vector<1x10x256xf32> to vector<10x256xf32>
    %11 = vector.extract_strided_slice %8 {offsets = [0, 0], sizes = [256, 1], strides = [1, 1]} : vector<256x10xf32> to vector<256x1xf32>
    %12 = vector.extract_strided_slice %8 {offsets = [0, 1], sizes = [256, 1], strides = [1, 1]} : vector<256x10xf32> to vector<256x1xf32>
    %13 = vector.extract_strided_slice %8 {offsets = [0, 2], sizes = [256, 1], strides = [1, 1]} : vector<256x10xf32> to vector<256x1xf32>
    %14 = vector.extract_strided_slice %8 {offsets = [0, 3], sizes = [256, 1], strides = [1, 1]} : vector<256x10xf32> to vector<256x1xf32>
    %15 = vector.extract_strided_slice %10 {offsets = [0, 0], sizes = [1, 256], strides = [1, 1]} : vector<10x256xf32> to vector<1x256xf32>
    %16 = vector.extract_strided_slice %10 {offsets = [1, 0], sizes = [1, 256], strides = [1, 1]} : vector<10x256xf32> to vector<1x256xf32>
    %17 = vector.extract_strided_slice %10 {offsets = [2, 0], sizes = [1, 256], strides = [1, 1]} : vector<10x256xf32> to vector<1x256xf32>
    %18 = vector.extract_strided_slice %10 {offsets = [3, 0], sizes = [1, 256], strides = [1, 1]} : vector<10x256xf32> to vector<1x256xf32>
    %cst = arith.constant dense<0.000000e+00> : vector<256x256xf32>
    %19 = tpu.matmul %4, %6, %cst {dimension_numbers = #tpu.dot_dimension_numbers<[1], [0], [0], [1], [0, 0, 1, 1], [], []>} : vector<256x8xf32>, vector<8x256xf32>, vector<256x256xf32> -> vector<256x256xf32>
    %20 = vector.broadcast %14 : vector<256x1xf32> to vector<256x256xf32>
    %21 = arith.mulf %19, %20 : vector<256x256xf32>
    %22 = vector.broadcast %18 : vector<1x256xf32> to vector<256x256xf32>
    %23 = arith.mulf %21, %22 : vector<256x256xf32>
    %24 = vector.broadcast %11 : vector<256x1xf32> to vector<256x256xf32>
    %25 = vector.broadcast %15 : vector<1x256xf32> to vector<256x256xf32>
    %26 = arith.subf %24, %25 : vector<256x256xf32>
    %27 = arith.mulf %26, %26 : vector<256x256xf32>
    %28 = vector.broadcast %12 : vector<256x1xf32> to vector<256x256xf32>
    %29 = arith.addf %28, %27 : vector<256x256xf32>
    %30 = vector.broadcast %17 : vector<1x256xf32> to vector<256x256xf32>
    %31 = arith.mulf %29, %30 : vector<256x256xf32>
    %32 = vector.broadcast %16 : vector<1x256xf32> to vector<256x256xf32>
    %33 = arith.addf %32, %27 : vector<256x256xf32>
    %34 = vector.broadcast %13 : vector<256x1xf32> to vector<256x256xf32>
    %35 = arith.mulf %33, %34 : vector<256x256xf32>
    %36 = arith.addf %31, %35 : vector<256x256xf32>
    %cst_12 = arith.constant 5.000000e-01 : f32
    %37 = vector.broadcast %cst_12 : f32 to vector<256x256xf32>
    %38 = arith.subf %36, %37 : vector<256x256xf32>
    %cst_13 = arith.constant 2.000000e+00 : f32
    %39 = vector.broadcast %cst_13 : f32 to vector<256x256xf32>
    %40 = arith.mulf %39, %23 : vector<256x256xf32>
    %cst_14 = arith.constant 2.000000e+00 : f32
    %41 = vector.broadcast %cst_14 : f32 to vector<256x256xf32>
    %42 = arith.subf %41, %40 : vector<256x256xf32>
    %43 = arith.addf %38, %42 : vector<256x256xf32>
    %cst_15 = arith.constant 0.333333343 : f32
    %44 = vector.broadcast %cst_15 : f32 to vector<256x256xf32>
    %45 = arith.mulf %43, %44 : vector<256x256xf32>
    %46 = arith.mulf %45, %45 : vector<256x256xf32>
    %cst_16 = arith.constant 0.000000e+00 : f32
    %47 = vector.broadcast %cst_16 : f32 to vector<256x256xf32>
    %48 = arith.subf %47, %46 : vector<256x256xf32>
    %cst_17 = arith.constant 4.000000e+00 : f32
    %49 = vector.broadcast %cst_17 : f32 to vector<256x256xf32>
    %50 = arith.mulf %48, %49 : vector<256x256xf32>
    %51 = math.exp %50 : vector<256x256xf32>
    %52 = vector.extract_strided_slice %8 {offsets = [0, 4], sizes = [256, 1], strides = [1, 1]} : vector<256x10xf32> to vector<256x1xf32>
    %53 = vector.extract_strided_slice %10 {offsets = [4, 0], sizes = [1, 256], strides = [1, 1]} : vector<10x256xf32> to vector<1x256xf32>
    %54 = vector.broadcast %52 : vector<256x1xf32> to vector<256x256xf32>
    %55 = vector.broadcast %53 : vector<1x256xf32> to vector<256x256xf32>
    %56 = arith.mulf %54, %55 : vector<256x256xf32>
    %57 = vector.extract_strided_slice %8 {offsets = [0, 7], sizes = [256, 1], strides = [1, 1]} : vector<256x10xf32> to vector<256x1xf32>
    %58 = vector.extract_strided_slice %10 {offsets = [7, 0], sizes = [1, 256], strides = [1, 1]} : vector<10x256xf32> to vector<1x256xf32>
    %59 = vector.broadcast %57 : vector<256x1xf32> to vector<256x256xf32>
    %60 = vector.broadcast %58 : vector<1x256xf32> to vector<256x256xf32>
    %61 = arith.addf %59, %60 : vector<256x256xf32>
    %62 = tpu.reciprocal %61 {approx = true} : vector<256x256xf32> -> vector<256x256xf32>
    %63 = arith.mulf %56, %62 : vector<256x256xf32>
    %64 = vector.extract_strided_slice %8 {offsets = [0, 5], sizes = [256, 1], strides = [1, 1]} : vector<256x10xf32> to vector<256x1xf32>
    %65 = vector.extract_strided_slice %10 {offsets = [5, 0], sizes = [1, 256], strides = [1, 1]} : vector<10x256xf32> to vector<1x256xf32>
    %66 = vector.broadcast %64 : vector<256x1xf32> to vector<256x256xf32>
    %67 = vector.broadcast %65 : vector<1x256xf32> to vector<256x256xf32>
    %68 = arith.mulf %66, %67 : vector<256x256xf32>
    %69 = vector.extract_strided_slice %8 {offsets = [0, 8], sizes = [256, 1], strides = [1, 1]} : vector<256x10xf32> to vector<256x1xf32>
    %70 = vector.extract_strided_slice %10 {offsets = [8, 0], sizes = [1, 256], strides = [1, 1]} : vector<10x256xf32> to vector<1x256xf32>
    %71 = vector.broadcast %69 : vector<256x1xf32> to vector<256x256xf32>
    %72 = vector.broadcast %70 : vector<1x256xf32> to vector<256x256xf32>
    %73 = arith.addf %71, %72 : vector<256x256xf32>
    %74 = tpu.reciprocal %73 {approx = true} : vector<256x256xf32> -> vector<256x256xf32>
    %75 = arith.mulf %68, %74 : vector<256x256xf32>
    %76 = arith.addf %63, %75 : vector<256x256xf32>
    %77 = vector.extract_strided_slice %8 {offsets = [0, 6], sizes = [256, 1], strides = [1, 1]} : vector<256x10xf32> to vector<256x1xf32>
    %78 = vector.extract_strided_slice %10 {offsets = [6, 0], sizes = [1, 256], strides = [1, 1]} : vector<10x256xf32> to vector<1x256xf32>
    %79 = vector.broadcast %77 : vector<256x1xf32> to vector<256x256xf32>
    %80 = vector.broadcast %78 : vector<1x256xf32> to vector<256x256xf32>
    %81 = arith.mulf %79, %80 : vector<256x256xf32>
    %82 = vector.extract_strided_slice %8 {offsets = [0, 9], sizes = [256, 1], strides = [1, 1]} : vector<256x10xf32> to vector<256x1xf32>
    %83 = vector.extract_strided_slice %10 {offsets = [9, 0], sizes = [1, 256], strides = [1, 1]} : vector<10x256xf32> to vector<1x256xf32>
    %84 = vector.broadcast %82 : vector<256x1xf32> to vector<256x256xf32>
    %85 = vector.broadcast %83 : vector<1x256xf32> to vector<256x256xf32>
    %86 = arith.addf %84, %85 : vector<256x256xf32>
    %87 = tpu.reciprocal %86 {approx = true} : vector<256x256xf32> -> vector<256x256xf32>
    %88 = arith.mulf %81, %87 : vector<256x256xf32>
    %89 = arith.addf %76, %88 : vector<256x256xf32>
    %c0_18 = arith.constant 0 : index
    %c0_19 = arith.constant 0 : index
    %90 = vector.load %arg8[%c0_18, %c0_19] : memref<256x256xf32, #tpu.memory_space<vmem>>, vector<256x256xf32>
    %91 = arith.mulf %51, %89 : vector<256x256xf32>
    %92 = arith.addf %90, %91 : vector<256x256xf32>
    %c0_20 = arith.constant 0 : index
    %c0_21 = arith.constant 0 : index
    %93 = vector.load %arg8[%c0_20, %c0_21] : memref<256x256xf32, #tpu.memory_space<vmem>>, vector<256x256xf32>
    tpu.vector_store %arg8[%c0_20, %c0_21], %92 {strides = array<i32>} : memref<256x256xf32, #tpu.memory_space<vmem>>, vector<256x256xf32>,
    %c0_i32_22 = arith.constant 0 : i32
    %94 = arith.cmpi eq, %arg2, %c0_i32_22 : i32
    %95 = arith.extui %94 : i1 to i32
    %c0_i32_23 = arith.constant 0 : i32
    %96 = arith.cmpi ne, %95, %c0_i32_23 : i32
    scf.if %96 {
      %c0_24 = arith.constant 0 : index
      %c0_25 = arith.constant 0 : index
      %97 = vector.load %arg8[%c0_24, %c0_25] : memref<256x256xf32, #tpu.memory_space<vmem>>, vector<256x256xf32>
      %98 = vector.shape_cast %97 : vector<256x256xf32> to vector<1x256x256xf32>
      %cst_26 = arith.constant dense<0.000000e+00> : vector<1xf32>
      %99 = vector.multi_reduction <add>, %98, %cst_26 [1, 2] : vector<1x256x256xf32> to vector<1xf32>
      %100 = vector.shape_cast %99 : vector<1xf32> to vector<1x1x1xf32>
      %101 = vector.extract %100[0, 0, 0] : f32 from vector<1x1x1xf32>
      %102 = vector.broadcast %101 : f32 to vector<1x1x8x128xf32>
      %c0_27 = arith.constant 0 : index
      %c0_28 = arith.constant 0 : index
      %c0_29 = arith.constant 0 : index
      %c0_30 = arith.constant 0 : index
      %103 = vector.load %arg7[%c0_27, %c0_28, %c0_29, %c0_30] : memref<1x1x8x128xf32, #tpu.memory_space<vmem>>, vector<1x1x8x128xf32>
      tpu.vector_store %arg7[%c0_27, %c0_28, %c0_29, %c0_30], %102 {strides = array<i32>} : memref<1x1x8x128xf32, #tpu.memory_space<vmem>>, vector<1x1x8x128xf32>,
    } else {
    }
    return
  }
  func.func @transform_0(%arg0: i32, %arg1: i32, %arg2: i32) -> (i32, i32, i32) {
    %c0_i32 = arith.constant 0 : i32
    %c0_i32_0 = arith.constant 0 : i32
    return %arg0, %arg1, %c0_i32 : i32, i32, i32
  }
  func.func @transform_1(%arg0: i32, %arg1: i32, %arg2: i32) -> (i32, i32, i32) {
    %c0_i32 = arith.constant 0 : i32
    %c0_i32_0 = arith.constant 0 : i32
    return %arg0, %c0_i32, %arg2 : i32, i32, i32
  }
  func.func @transform_2(%arg0: i32, %arg1: i32, %arg2: i32) -> (i32, i32, i32) {
    %c0_i32 = arith.constant 0 : i32
    %c0_i32_0 = arith.constant 0 : i32
    return %arg0, %arg1, %c0_i32 : i32, i32, i32
  }
  func.func @transform_3(%arg0: i32, %arg1: i32, %arg2: i32) -> (i32, i32, i32) {
    %c0_i32 = arith.constant 0 : i32
    %c0_i32_0 = arith.constant 0 : i32
    return %arg0, %c0_i32, %arg2 : i32, i32, i32
  }
  func.func @transform_4(%arg0: i32, %arg1: i32, %arg2: i32) -> (i32, i32, i32, i32) {
    %c0_i32 = arith.constant 0 : i32
    %c0_i32_0 = arith.constant 0 : i32
    %c0_i32_1 = arith.constant 0 : i32
    return %arg0, %arg1, %c0_i32, %c0_i32_0 : i32, i32, i32, i32
  }
}

</mosaic_0001>

<llo_original>
// kernel: sub.16
$region0: #{sub.16}
  %s0 = inlined_call_operand.vmem [shape: f32[2,16,16], index: 0, kind: input, shape index: {}]
  %s1 = inlined_call_operand.vmem [shape: f32[2,256], index: 1, kind: output, shape index: {}]
  $region1: #{sub.16} parent=0
    #allocation0 [shape = 'u8[8192]{0}', space=vmem, size = 0x2000, scoped, tag = 'scoped mem for output reshape']
    %v2 = vld [vmem:[%s0] ss:$8 sm:$0xf]
    %vm3 = vcmask 130048
    %4 = vst.msk [vmem:[#allocation0] ss:$8 sm:$0x3] %vm3, %v2
    %s5 = scalar_lea.vmem [#allocation0], 4294967281
    %6 = vst.msk [vmem:[%s5] ss:$8 sm:$0xc] %vm3, %v2
    %s7 = scalar_lea.vmem %s0, 7
    %s8 = smov 3
    %v9 = vld [vmem:[%s7] ss:$16 sm:%s8]
    %s10 = scalar_lea.vmem %s0, 4294967279
    %s11 = smov 12
    %v12 = vld [vmem:[%s10] ss:$16 sm:%s11]
    %vm13 = vcmask 1043458
    %v14 = vsel %vm13, %v12, %v9
    %15 = vrot.lane.b32.xlu0 %v14, 112
    %v16 = vpop.permute.xlu0 %15
    %vm17 = vcmask 1048448
    %18 = vst.msk [vmem:[#allocation0] sm:$0x3] %vm17, %v16
    %s19 = scalar_lea.vmem [#allocation0], 6
    %20 = vst.msk [vmem:[%s19] sm:$0xc] %vm17, %v16
    %s21 = scalar_lea.vmem %s0, 6
    %s22 = smov 3
    %v23 = vld [vmem:[%s21] ss:$16 sm:%s22]
    %s24 = scalar_lea.vmem %s0, 4294967278
    %s25 = smov 12
    %v26 = vld [vmem:[%s24] ss:$16 sm:%s25]
    %vm27 = vcmask 1043458
    %v28 = vsel %vm27, %v26, %v23
    %29 = vrot.lane.b32.xlu0 %v28, 96
    %v30 = vpop.permute.xlu0 %29
    %vm31 = vcmask 917248
    %32 = vst.msk [vmem:[#allocation0] sm:$0x3] %vm31, %v30
    %s33 = scalar_lea.vmem [#allocation0], 6
    %34 = vst.msk [vmem:[%s33] sm:$0xc] %vm31, %v30
    %s35 = scalar_lea.vmem %s0, 5
    %s36 = smov 3
    %v37 = vld [vmem:[%s35] ss:$16 sm:%s36]
    %s38 = scalar_lea.vmem %s0, 4294967277
    %s39 = smov 12
    %v40 = vld [vmem:[%s38] ss:$16 sm:%s39]
    %vm41 = vcmask 1043458
    %v42 = vsel %vm41, %v40, %v37
    %43 = vrot.lane.b32.xlu0 %v42, 80
    %v44 = vpop.permute.xlu0 %43
    %vm45 = vcmask 786048
    %46 = vst.msk [vmem:[#allocation0] sm:$0x3] %vm45, %v44
    %s47 = scalar_lea.vmem [#allocation0], 6
    %48 = vst.msk [vmem:[%s47] sm:$0xc] %vm45, %v44
    %s49 = scalar_lea.vmem %s0, 4
    %s50 = smov 3
    %v51 = vld [vmem:[%s49] ss:$16 sm:%s50]
    %s52 = scalar_lea.vmem %s0, 4294967276
    %s53 = smov 12
    %v54 = vld [vmem:[%s52] ss:$16 sm:%s53]
    %vm55 = vcmask 1043458
    %v56 = vsel %vm55, %v54, %v51
    %57 = vrot.lane.b32.xlu0 %v56, 64
    %v58 = vpop.permute.xlu0 %57
    %vm59 = vcmask 654848
    %60 = vst.msk [vmem:[#allocation0] sm:$0x3] %vm59, %v58
    %s61 = scalar_lea.vmem [#allocation0], 6
    %62 = vst.msk [vmem:[%s61] sm:$0xc] %vm59, %v58
    %s63 = scalar_lea.vmem %s0, 3
    %s64 = smov 3
    %v65 = vld [vmem:[%s63] ss:$16 sm:%s64]
    %s66 = scalar_lea.vmem %s0, 4294967275
    %s67 = smov 12
    %v68 = vld [vmem:[%s66] ss:$16 sm:%s67]
    %vm69 = vcmask 1043458
    %v70 = vsel %vm69, %v68, %v65
    %71 = vrot.lane.b32.xlu0 %v70, 48
    %v72 = vpop.permute.xlu0 %71
    %vm73 = vcmask 523648
    %74 = vst.msk [vmem:[#allocation0] sm:$0x3] %vm73, %v72
    %s75 = scalar_lea.vmem [#allocation0], 6
    %76 = vst.msk [vmem:[%s75] sm:$0xc] %vm73, %v72
    %s77 = scalar_lea.vmem %s0, 2
    %s78 = smov 3
    %v79 = vld [vmem:[%s77] ss:$16 sm:%s78]
    %s80 = scalar_lea.vmem %s0, 4294967274
    %s81 = smov 12
    %v82 = vld [vmem:[%s80] ss:$16 sm:%s81]
    %vm83 = vcmask 1043458
    %v84 = vsel %vm83, %v82, %v79
    %85 = vrot.lane.b32.xlu0 %v84, 32
    %v86 = vpop.permute.xlu0 %85
    %vm87 = vcmask 392448
    %88 = vst.msk [vmem:[#allocation0] sm:$0x3] %vm87, %v86
    %s89 = scalar_lea.vmem [#allocation0], 6
    %90 = vst.msk [vmem:[%s89] sm:$0xc] %vm87, %v86
    %s91 = scalar_lea.vmem %s0, 1
    %s92 = smov 3
    %v93 = vld [vmem:[%s91] ss:$16 sm:%s92]
    %s94 = scalar_lea.vmem %s0, 4294967273
    %s95 = smov 12
    %v96 = vld [vmem:[%s94] ss:$16 sm:%s95]
    %vm97 = vcmask 1043458
    %v98 = vsel %vm97, %v96, %v93
    %99 = vrot.lane.b32.xlu0 %v98, 16
    %v100 = vpop.permute.xlu0 %99
    %vm101 = vcmask 261248
    %102 = vst.msk [vmem:[#allocation0] sm:$0x3] %vm101, %v100
    %s103 = scalar_lea.vmem [#allocation0], 6
    %104 = vst.msk [vmem:[%s103] sm:$0xc] %vm101, %v100
    %s106 = ssub.s32 4, 1
    %v107 = vld [vmem:[#allocation0] sm:%s106]
    %s109 = ssub.s32 4, 1
    %110 = vst [vmem:[%s1] sm:%s109] %v107
    %s111 = scalar_lea.vmem [#allocation0], 8
    %v112 = vld [vmem:[%s111] sm:%s106]
    %s114 = ssub.s32 4, 1
    %s115 = scalar_lea.vmem %s1, 2
    %116 = vst [vmem:[%s115] sm:%s114] %v112

// kernel: fcwcrf_loss.1
$region0: #{fcwcrf_loss.1}
  #allocation0 [shape = 'u32[]', space=smem, size = 0x4, offset = 0x4, fixed_abs, tag = 'smem constant byte address 0x4 - core index']
  #allocation1 [shape = 'u32[72,128]{1,0:T(1,128)}', space=vmem, size = 0x9000, scoped, tag = 'internal scratch']
  #allocation2 [shape = 'f32[256,256]{1,0:T(8,128)}', space=vmem, size = 0x40000, scoped, tag = 'scratch operand']
  %s0 = inlined_call_operand.vmem [shape: f32[2,256,8], index: 0, kind: input, shape index: {}]
  %s1 = inlined_call_operand.vmem [shape: f32[2,8,256], index: 1, kind: input, shape index: {}]
  %s2 = inlined_call_operand.vmem [shape: f32[2,256,10], index: 2, kind: input, shape index: {}]
  %s3 = inlined_call_operand.vmem [shape: f32[2,10,256], index: 3, kind: input, shape index: {}]
  %s4 = inlined_call_operand.vmem [shape: f32[2,1,8,128], index: 4, kind: output, shape index: {}]
  %s5 = sld [smem:[#allocation0]]
  $region57: #{fcwcrf_loss.1} parent=0
    _
  %s7 = ssub.s32 1, %s5
  %s8 = scalar_select 0, %s7, %s5
  loop: start=0, step=1, limit=4
  $region2: #{fcwcrf_loss.1} parent=0 // loop_pre_header
    _
  $region3: #{fcwcrf_loss.1} parent=0 // loop_header
    %s10 = sphi 0, %s14
    %p11 = scmp.ge.s32.totalorder %s10, 4
    %s17 = sphi 0, %s36
    %s18 = sphi 0, %s32
    %s19 = sphi 0, %s28
    %s20 = sphi 0, %s17
    %s21 = sphi 0, %s18
    %s22 = sphi 0, %s19
    %s23 = sphi 0, %s20
    %s24 = sphi 0, %s21
    %s25 = sphi 0, %s22
    %s41 = sphi 0, %s43
    %s44 = sphi 0, %s41
    %s45 = sphi 0, %s44
    %s61 = sphi 0, %s45
    %s69 = sphi 0, %s71
    %s72 = sphi 0, %s69
    %s73 = sphi 0, %s72
    %s89 = sphi 0, %s73
    %s97 = sphi 0, %s99
    %s100 = sphi 0, %s97
    %s101 = sphi 0, %s100
    %s117 = sphi 0, %s101
    %s125 = sphi 0, %s127
    %s128 = sphi 0, %s125
    %s129 = sphi 0, %s128
    %s145 = sphi 0, %s129
    %s153 = sphi 0, %s155
    %s156 = sphi 0, %s153
    %s157 = sphi 0, %s156
    %s173 = sphi 0, %s157
  $region4: #{fcwcrf_loss.1} parent=0 // loop_header_branch
    %13 = sbr.rel (%p11) target = $region8
  $region5: #{fcwcrf_loss.1} parent=0 // loop_body
    %s15 = ssub.s32 %s10, 1
    %s16 = ssub.s32 %s10, 2
    %s26 = sadd.s32 1, %s19
    %p27 = scmp.ge.s32.totalorder %s26, 1
    %s28 = scalar_select %p27, 0, %s26
    %s29 = sadd.s32 1, %s18
    %s30 = scalar_select %p27, %s29, %s18
    %p31 = scmp.ge.s32.totalorder %s30, 1
    %s32 = scalar_select %p31, 0, %s30
    %s33 = sadd.s32 1, %s17
    %s34 = scalar_select %p31, %s33, %s17
    %p35 = scmp.ge.s32.totalorder %s34, 2
    %s36 = scalar_select %p35, 0, %s34
    %s37 = ssub.s32 %s17, %s36
    %s38 = ssub.s32 %s18, %s32
    %s39 = sor.u32 %s37, %s38
    %p40 = scmp.eq.s32.totalorder %s39, 0
    %s42 = sadd.s32 %s41, 1
    %s43 = scalar_select %p40, %s41, %s42
    %p46 = pneg %p40
    %p47 = scmp.eq.s32.totalorder %s10, 1
    %p48 = por %p46, %p47
    %p49 = scmp.ne.s32.totalorder %s41, %s44
    %p50 = scmp.eq.s32.totalorder %s10, 0
    %p51 = por %p49, %p50
    %p52 = scmp.ne.s32.totalorder %s41, %s44
    %p53 = scmp.eq.s32.totalorder %s15, 1
    %p54 = por %p52, %p53
    %p55 = scmp.ne.s32.totalorder %s44, %s45
    %p56 = scmp.eq.s32.totalorder %s15, 0
    %p57 = por %p55, %p56
    %p58 = scmp.ne.s32.totalorder %s44, %s45
    %p59 = scmp.eq.s32.totalorder %s16, 1
    %p60 = por %p58, %p59
    %p62 = scmp.ne.s32.totalorder %s45, %s61
    %p63 = scmp.eq.s32.totalorder %s16, 0
    %p64 = por %p62, %p63
    %s65 = ssub.s32 %s17, %s36
    %s66 = ssub.s32 %s19, %s28
    %s67 = sor.u32 %s65, %s66
    %p68 = scmp.eq.s32.totalorder %s67, 0
    %s70 = sadd.s32 %s69, 1
    %s71 = scalar_select %p68, %s69, %s70
    %p74 = pneg %p68
    %p75 = scmp.eq.s32.totalorder %s10, 1
    %p76 = por %p74, %p75
    %p77 = scmp.ne.s32.totalorder %s69, %s72
    %p78 = scmp.eq.s32.totalorder %s10, 0
    %p79 = por %p77, %p78
    %p80 = scmp.ne.s32.totalorder %s69, %s72
    %p81 = scmp.eq.s32.totalorder %s15, 1
    %p82 = por %p80, %p81
    %p83 = scmp.ne.s32.totalorder %s72, %s73
    %p84 = scmp.eq.s32.totalorder %s15, 0
    %p85 = por %p83, %p84
    %p86 = scmp.ne.s32.totalorder %s72, %s73
    %p87 = scmp.eq.s32.totalorder %s16, 1
    %p88 = por %p86, %p87
    %p90 = scmp.ne.s32.totalorder %s73, %s89
    %p91 = scmp.eq.s32.totalorder %s16, 0
    %p92 = por %p90, %p91
    %s93 = ssub.s32 %s17, %s36
    %s94 = ssub.s32 %s18, %s32
    %s95 = sor.u32 %s93, %s94
    %p96 = scmp.eq.s32.totalorder %s95, 0
    %s98 = sadd.s32 %s97, 1
    %s99 = scalar_select %p96, %s97, %s98
    %p102 = pneg %p96
    %p103 = scmp.eq.s32.totalorder %s10, 1
    %p104 = por %p102, %p103
    %p105 = scmp.ne.s32.totalorder %s97, %s100
    %p106 = scmp.eq.s32.totalorder %s10, 0
    %p107 = por %p105, %p106
    %p108 = scmp.ne.s32.totalorder %s97, %s100
    %p109 = scmp.eq.s32.totalorder %s15, 1
    %p110 = por %p108, %p109
    %p111 = scmp.ne.s32.totalorder %s100, %s101
    %p112 = scmp.eq.s32.totalorder %s15, 0
    %p113 = por %p111, %p112
    %p114 = scmp.ne.s32.totalorder %s100, %s101
    %p115 = scmp.eq.s32.totalorder %s16, 1
    %p116 = por %p114, %p115
    %p118 = scmp.ne.s32.totalorder %s101, %s117
    %p119 = scmp.eq.s32.totalorder %s16, 0
    %p120 = por %p118, %p119
    %s121 = ssub.s32 %s17, %s36
    %s122 = ssub.s32 %s19, %s28
    %s123 = sor.u32 %s121, %s122
    %p124 = scmp.eq.s32.totalorder %s123, 0
    %s126 = sadd.s32 %s125, 1
    %s127 = scalar_select %p124, %s125, %s126
    %p130 = pneg %p124
    %p131 = scmp.eq.s32.totalorder %s10, 1
    %p132 = por %p130, %p131
    %p133 = scmp.ne.s32.totalorder %s125, %s128
    %p134 = scmp.eq.s32.totalorder %s10, 0
    %p135 = por %p133, %p134
    %p136 = scmp.ne.s32.totalorder %s125, %s128
    %p137 = scmp.eq.s32.totalorder %s15, 1
    %p138 = por %p136, %p137
    %p139 = scmp.ne.s32.totalorder %s128, %s129
    %p140 = scmp.eq.s32.totalorder %s15, 0
    %p141 = por %p139, %p140
    %p142 = scmp.ne.s32.totalorder %s128, %s129
    %p143 = scmp.eq.s32.totalorder %s16, 1
    %p144 = por %p142, %p143
    %p146 = scmp.ne.s32.totalorder %s129, %s145
    %p147 = scmp.eq.s32.totalorder %s16, 0
    %p148 = por %p146, %p147
    %s149 = ssub.s32 %s17, %s36
    %s150 = ssub.s32 %s18, %s32
    %s151 = sor.u32 %s149, %s150
    %p152 = scmp.eq.s32.totalorder %s151, 0
    %s154 = sadd.s32 %s153, 1
    %s155 = scalar_select %p152, %s153, %s154
    %p158 = pneg %p152
    %p159 = scmp.eq.s32.totalorder %s10, 1
    %p160 = por %p158, %p159
    %p161 = scmp.ne.s32.totalorder %s153, %s156
    %p162 = scmp.eq.s32.totalorder %s10, 0
    %p163 = por %p161, %p162
    %p164 = scmp.ne.s32.totalorder %s153, %s156
    %p165 = scmp.eq.s32.totalorder %s15, 1
    %p166 = por %p164, %p165
    %p167 = scmp.ne.s32.totalorder %s156, %s157
    %p168 = scmp.eq.s32.totalorder %s15, 0
    %p169 = por %p167, %p168
    %p170 = scmp.ne.s32.totalorder %s156, %s157
    %p171 = scmp.eq.s32.totalorder %s16, 1
    %p172 = por %p170, %p171
    %p174 = scmp.ne.s32.totalorder %s157, %s173
    %p175 = scmp.eq.s32.totalorder %s16, 0
    %p176 = por %p174, %p175
    %p177 = scmp.le.s32.totalorder 1, %s10
    %p178 = scmp.lt.s32.totalorder %s10, 3
    %p179 = pnand %p177, %p178
    %p180 = pneg %p179
    // Predicated region
    $region9: #{fcwcrf_loss.1} parent=5 // pred_check
      _
    $region10: #{fcwcrf_loss.1} parent=5 // pred_check_branch
      %182 = sbr.rel (%p179) target = $region12
    $region11: #{fcwcrf_loss.1} parent=5 // pred_region
      %s183 = ssub.s32 %s10, 1
    $region12: #{fcwcrf_loss.1} parent=5 // pred_fallthru
      _
    %p184 = scmp.lt.s32.totalorder %s10, 2
    // Predicated region
    $region13: #{fcwcrf_loss.1} parent=5 // pred_check
      %p185 = pneg %p184
    $region14: #{fcwcrf_loss.1} parent=5 // pred_check_branch
      %187 = sbr.rel (%p185) target = $region16
    $region15: #{fcwcrf_loss.1} parent=5 // pred_region
      // Predicated region
      $region17: #{fcwcrf_loss.1} parent=15 // pred_check
        %p188 = pneg %p51
      $region18: #{fcwcrf_loss.1} parent=15 // pred_check_branch
        %190 = sbr.rel (%p188) target = $region20
      $region19: #{fcwcrf_loss.1} parent=15 // pred_region
        %s191 = smul.u32 32, %s18
        %p192 = scmp.lt.s32.totalorder %s17, 1
        %s193 = scalar_select %p192, %s17, 1
        %p194 = scmp.lt.s32.totalorder %s191, 31
        %s195 = scalar_select %p194, %s191, 31
        %s196 = smul.addr %s193, 32
        %s197 = sadd.s32 %s195, %s196
        %s198 = smul.addr %s197, 8
        %s199 = scalar_lea.vmem %s0, %s198
        %s200 = smul.u32 32, %s18
      $region20: #{fcwcrf_loss.1} parent=15 // pred_fallthru
        _
      // Predicated region
      $region21: #{fcwcrf_loss.1} parent=15 // pred_check
        %p201 = pneg %p79
      $region22: #{fcwcrf_loss.1} parent=15 // pred_check_branch
        %203 = sbr.rel (%p201) target = $region24
      $region23: #{fcwcrf_loss.1} parent=15 // pred_region
        %s204 = smul.u32 2, %s19
        %p205 = scmp.lt.s32.totalorder %s17, 1
        %s206 = scalar_select %p205, %s17, 1
        %p207 = scmp.lt.s32.totalorder %s204, 1
        %s208 = scalar_select %p207, %s204, 1
        %s209 = smul.addr %s206, 2
        %s210 = sadd.s32 %s208, %s209
        %s211 = smul.addr %s210, 8
        %s212 = scalar_lea.vmem %s1, %s211
        %s213 = smul.u32 2, %s19
      $region24: #{fcwcrf_loss.1} parent=15 // pred_fallthru
        _
      // Predicated region
      $region25: #{fcwcrf_loss.1} parent=15 // pred_check
        %p214 = pneg %p107
      $region26: #{fcwcrf_loss.1} parent=15 // pred_check_branch
        %216 = sbr.rel (%p214) target = $region28
      $region27: #{fcwcrf_loss.1} parent=15 // pred_region
        %s217 = smul.u32 32, %s18
        %p218 = scmp.lt.s32.totalorder %s17, 1
        %s219 = scalar_select %p218, %s17, 1
        %p220 = scmp.lt.s32.totalorder %s217, 31
        %s221 = scalar_select %p220, %s217, 31
        %s222 = smul.addr %s219, 32
        %s223 = sadd.s32 %s221, %s222
        %s224 = smul.addr %s223, 8
        %s225 = scalar_lea.vmem %s2, %s224
        %s226 = smul.u32 32, %s18
      $region28: #{fcwcrf_loss.1} parent=15 // pred_fallthru
        _
      // Predicated region
      $region29: #{fcwcrf_loss.1} parent=15 // pred_check
        %p227 = pneg %p135
      $region30: #{fcwcrf_loss.1} parent=15 // pred_check_branch
        %229 = sbr.rel (%p227) target = $region32
      $region31: #{fcwcrf_loss.1} parent=15 // pred_region
        %s230 = smul.u32 2, %s19
        %p231 = scmp.lt.s32.totalorder %s17, 1
        %s232 = scalar_select %p231, %s17, 1
        %p233 = scmp.lt.s32.totalorder %s230, 1
        %s234 = scalar_select %p233, %s230, 1
        %s235 = smul.addr %s232, 4
        %s236 = sadd.s32 %s234, %s235
        %s237 = smul.addr %s236, 8
        %s238 = scalar_lea.vmem %s3, %s237
        %s239 = smul.u32 2, %s19
      $region32: #{fcwcrf_loss.1} parent=15 // pred_fallthru
        _
    $region16: #{fcwcrf_loss.1} parent=5 // pred_fallthru
      _
    %p240 = scmp.le.s32.totalorder 1, %s10
    %p241 = scmp.lt.s32.totalorder %s10, 3
    %p242 = pnand %p240, %p241
    %p243 = pneg %p242
    // Predicated region
    $region33: #{fcwcrf_loss.1} parent=5 // pred_check
      _
    $region34: #{fcwcrf_loss.1} parent=5 // pred_check_branch
      %245 = sbr.rel (%p242) target = $region36
    $region35: #{fcwcrf_loss.1} parent=5 // pred_region
      %s246 = ssub.s32 %s10, 1
      %s247 = smul.u32 32, %s21
      %p248 = scmp.lt.s32.totalorder %s20, 1
      %s249 = scalar_select %p248, %s20, 1
      %p250 = scmp.lt.s32.totalorder %s247, 31
      %s251 = scalar_select %p250, %s247, 31
      %s252 = smul.addr %s249, 32
      %s253 = sadd.s32 %s251, %s252
      %s254 = smul.addr %s253, 8
      %s255 = scalar_lea.vmem %s0, %s254
      %p256 = pneg %p57
      %p257 = pneg %p54
      %s258 = smul.u32 2, %s22
      %p259 = scmp.lt.s32.totalorder %s20, 1
      %s260 = scalar_select %p259, %s20, 1
      %p261 = scmp.lt.s32.totalorder %s258, 1
      %s262 = scalar_select %p261, %s258, 1
      %s263 = smul.addr %s260, 2
      %s264 = sadd.s32 %s262, %s263
      %s265 = smul.addr %s264, 8
      %s266 = scalar_lea.vmem %s1, %s265
      %p267 = pneg %p85
      %p268 = pneg %p82
      %s269 = smul.u32 32, %s21
      %p270 = scmp.lt.s32.totalorder %s20, 1
      %s271 = scalar_select %p270, %s20, 1
      %p272 = scmp.lt.s32.totalorder %s269, 31
      %s273 = scalar_select %p272, %s269, 31
      %s274 = smul.addr %s271, 32
      %s275 = sadd.s32 %s273, %s274
      %s276 = smul.addr %s275, 8
      %s277 = scalar_lea.vmem %s2, %s276
      %p278 = pneg %p113
      %p279 = pneg %p110
      %s280 = smul.u32 2, %s22
      %p281 = scmp.lt.s32.totalorder %s20, 1
      %s282 = scalar_select %p281, %s20, 1
      %p283 = scmp.lt.s32.totalorder %s280, 1
      %s284 = scalar_select %p283, %s280, 1
      %s285 = smul.addr %s282, 4
      %s286 = sadd.s32 %s284, %s285
      %s287 = smul.addr %s286, 8
      %s288 = scalar_lea.vmem %s3, %s287
      %p289 = pneg %p141
      %p290 = pneg %p138
      %p291 = pneg %p169
      %p292 = pneg %p166
      %p293 = scmp.lt.s32.totalorder %s20, 1
      %s294 = scalar_select %p293, %s20, 1
      %p295 = scmp.lt.s32.totalorder %s21, 0
      %s296 = scalar_select %p295, %s21, 0
      %s297 = sadd.s32 %s296, %s294
      %s298 = smul.addr %s297, 8
      %s299 = scalar_lea.vmem %s4, %s298
      %s300 = smul.u32 32, %s21
      %p301 = scmp.lt.s32.totalorder %s20, 1
      %s302 = scalar_select %p301, %s20, 1
      %p303 = scmp.lt.s32.totalorder %s300, 31
      %s304 = scalar_select %p303, %s300, 31
      %s305 = smul.addr %s302, 32
      %s306 = sadd.s32 %s304, %s305
      %s307 = smul.addr %s306, 8
      %s308 = scalar_lea.vmem %s0, %s307
      %s309 = smul.u32 32, %s21
      %s310 = smul.u32 2, %s22
      %p311 = scmp.lt.s32.totalorder %s20, 1
      %s312 = scalar_select %p311, %s20, 1
      %p313 = scmp.lt.s32.totalorder %s310, 1
      %s314 = scalar_select %p313, %s310, 1
      %s315 = smul.addr %s312, 2
      %s316 = sadd.s32 %s314, %s315
      %s317 = smul.addr %s316, 8
      %s318 = scalar_lea.vmem %s1, %s317
      %s319 = smul.u32 2, %s22
      %s320 = smul.u32 32, %s21
      %p321 = scmp.lt.s32.totalorder %s20, 1
      %s322 = scalar_select %p321, %s20, 1
      %p323 = scmp.lt.s32.totalorder %s320, 31
      %s324 = scalar_select %p323, %s320, 31
      %s325 = smul.addr %s322, 32
      %s326 = sadd.s32 %s324, %s325
      %s327 = smul.addr %s326, 8
      %s328 = scalar_lea.vmem %s2, %s327
      %s329 = smul.u32 32, %s21
      %s330 = smul.u32 2, %s22
      %p331 = scmp.lt.s32.totalorder %s20, 1
      %s332 = scalar_select %p331, %s20, 1
      %p333 = scmp.lt.s32.totalorder %s330, 1
      %s334 = scalar_select %p333, %s330, 1
      %s335 = smul.addr %s332, 4
      %s336 = sadd.s32 %s334, %s335
      %s337 = smul.addr %s336, 8
      %s338 = scalar_lea.vmem %s3, %s337
      %s339 = smul.u32 2, %s22
      %p340 = scmp.lt.s32.totalorder %s20, 1
      %s341 = scalar_select %p340, %s20, 1
      %p342 = scmp.lt.s32.totalorder %s21, 0
      %s343 = scalar_select %p342, %s21, 0
      %s344 = sadd.s32 %s343, %s341
      %s345 = smul.addr %s344, 8
      %s346 = scalar_lea.vmem %s4, %s345
      %p347 = scmp.eq.s32.totalorder %s22, 0
      // Predicated region
      $region37: #{fcwcrf_loss.1} parent=35 // pred_check
        %p348 = pneg %p347
      $region38: #{fcwcrf_loss.1} parent=35 // pred_check_branch
        %350 = sbr.rel (%p348) target = $region40
      $region39: #{fcwcrf_loss.1} parent=35 // pred_region
        %351 = vst [vmem:[#allocation2] sm:$0xff] 0.0
        %352 = vst [vmem:[#allocation2 + $0x8] sm:$0xff] 0.0
        %353 = vst [vmem:[#allocation2 + $0x10] sm:$0xff] 0.0
        %354 = vst [vmem:[#allocation2 + $0x18] sm:$0xff] 0.0
        %355 = vst [vmem:[#allocation2 + $0x20] sm:$0xff] 0.0
        %356 = vst [vmem:[#allocation2 + $0x28] sm:$0xff] 0.0
        %357 = vst [vmem:[#allocation2 + $0x30] sm:$0xff] 0.0
        %358 = vst [vmem:[#allocation2 + $0x38] sm:$0xff] 0.0
        %359 = vst [vmem:[#allocation2 + $0x40] sm:$0xff] 0.0
        %360 = vst [vmem:[#allocation2 + $0x48] sm:$0xff] 0.0
        %361 = vst [vmem:[#allocation2 + $0x50] sm:$0xff] 0.0
        %362 = vst [vmem:[#allocation2 + $0x58] sm:$0xff] 0.0
        %363 = vst [vmem:[#allocation2 + $0x60] sm:$0xff] 0.0
        %364 = vst [vmem:[#allocation2 + $0x68] sm:$0xff] 0.0
        %365 = vst [vmem:[#allocation2 + $0x70] sm:$0xff] 0.0
        %366 = vst [vmem:[#allocation2 + $0x78] sm:$0xff] 0.0
        %367 = vst [vmem:[#allocation2 + $0x80] sm:$0xff] 0.0
        %368 = vst [vmem:[#allocation2 + $0x88] sm:$0xff] 0.0
        %369 = vst [vmem:[#allocation2 + $0x90] sm:$0xff] 0.0
        %370 = vst [vmem:[#allocation2 + $0x98] sm:$0xff] 0.0
        %371 = vst [vmem:[#allocation2 + $0xa0] sm:$0xff] 0.0
        %372 = vst [vmem:[#allocation2 + $0xa8] sm:$0xff] 0.0
        %373 = vst [vmem:[#allocation2 + $0xb0] sm:$0xff] 0.0
        %374 = vst [vmem:[#allocation2 + $0xb8] sm:$0xff] 0.0
        %375 = vst [vmem:[#allocation2 + $0xc0] sm:$0xff] 0.0
        %376 = vst [vmem:[#allocation2 + $0xc8] sm:$0xff] 0.0
        %377 = vst [vmem:[#allocation2 + $0xd0] sm:$0xff] 0.0
        %378 = vst [vmem:[#allocation2 + $0xd8] sm:$0xff] 0.0
        %379 = vst [vmem:[#allocation2 + $0xe0] sm:$0xff] 0.0
        %380 = vst [vmem:[#allocation2 + $0xe8] sm:$0xff] 0.0
        %381 = vst [vmem:[#allocation2 + $0xf0] sm:$0xff] 0.0
        %382 = vst [vmem:[#allocation2 + $0xf8] sm:$0xff] 0.0
        %383 = vst [vmem:[#allocation2 + $0x100] sm:$0xff] 0.0
        %384 = vst [vmem:[#allocation2 + $0x108] sm:$0xff] 0.0
        %385 = vst [vmem:[#allocation2 + $0x110] sm:$0xff] 0.0
        %386 = vst [vmem:[#allocation2 + $0x118] sm:$0xff] 0.0
        %387 = vst [vmem:[#allocation2 + $0x120] sm:$0xff] 0.0
        %388 = vst [vmem:[#allocation2 + $0x128] sm:$0xff] 0.0
        %389 = vst [vmem:[#allocation2 + $0x130] sm:$0xff] 0.0
        %390 = vst [vmem:[#allocation2 + $0x138] sm:$0xff] 0.0
        %391 = vst [vmem:[#allocation2 + $0x140] sm:$0xff] 0.0
        %392 = vst [vmem:[#allocation2 + $0x148] sm:$0xff] 0.0
        %393 = vst [vmem:[#allocation2 + $0x150] sm:$0xff] 0.0
        %394 = vst [vmem:[#allocation2 + $0x158] sm:$0xff] 0.0
        %395 = vst [vmem:[#allocation2 + $0x160] sm:$0xff] 0.0
        %396 = vst [vmem:[#allocation2 + $0x168] sm:$0xff] 0.0
        %397 = vst [vmem:[#allocation2 + $0x170] sm:$0xff] 0.0
        %398 = vst [vmem:[#allocation2 + $0x178] sm:$0xff] 0.0
        %399 = vst [vmem:[#allocation2 + $0x180] sm:$0xff] 0.0
        %400 = vst [vmem:[#allocation2 + $0x188] sm:$0xff] 0.0
        %401 = vst [vmem:[#allocation2 + $0x190] sm:$0xff] 0.0
        %402 = vst [vmem:[#allocation2 + $0x198] sm:$0xff] 0.0
        %403 = vst [vmem:[#allocation2 + $0x1a0] sm:$0xff] 0.0
        %404 = vst [vmem:[#allocation2 + $0x1a8] sm:$0xff] 0.0
        %405 = vst [vmem:[#allocation2 + $0x1b0] sm:$0xff] 0.0
        %406 = vst [vmem:[#allocation2 + $0x1b8] sm:$0xff] 0.0
        %407 = vst [vmem:[#allocation2 + $0x1c0] sm:$0xff] 0.0
        %408 = vst [vmem:[#allocation2 + $0x1c8] sm:$0xff] 0.0
        %409 = vst [vmem:[#allocation2 + $0x1d0] sm:$0xff] 0.0
        %410 = vst [vmem:[#allocation2 + $0x1d8] sm:$0xff] 0.0
        %411 = vst [vmem:[#allocation2 + $0x1e0] sm:$0xff] 0.0
        %412 = vst [vmem:[#allocation2 + $0x1e8] sm:$0xff] 0.0
        %413 = vst [vmem:[#allocation2 + $0x1f0] sm:$0xff] 0.0
        %414 = vst [vmem:[#allocation2 + $0x1f8] sm:$0xff] 0.0
      $region40: #{fcwcrf_loss.1} parent=35 // pred_fallthru
        _
      %v415 = vld [vmem:[%s308] sm:$0xff]
      %v416 = vld [vmem:[%s308 + $0x8] sm:$0xff]
      %v417 = vld [vmem:[%s308 + $0x10] sm:$0xff]
      %v418 = vld [vmem:[%s308 + $0x18] sm:$0xff]
      %v419 = vld [vmem:[%s308 + $0x20] sm:$0xff]
      %v420 = vld [vmem:[%s308 + $0x28] sm:$0xff]
      %v421 = vld [vmem:[%s308 + $0x30] sm:$0xff]
      %v422 = vld [vmem:[%s308 + $0x38] sm:$0xff]
      %v423 = vld [vmem:[%s308 + $0x40] sm:$0xff]
      %v424 = vld [vmem:[%s308 + $0x48] sm:$0xff]
      %v425 = vld [vmem:[%s308 + $0x50] sm:$0xff]
      %v426 = vld [vmem:[%s308 + $0x58] sm:$0xff]
      %v427 = vld [vmem:[%s308 + $0x60] sm:$0xff]
      %v428 = vld [vmem:[%s308 + $0x68] sm:$0xff]
      %v429 = vld [vmem:[%s308 + $0x70] sm:$0xff]
      %v430 = vld [vmem:[%s308 + $0x78] sm:$0xff]
      %v431 = vld [vmem:[%s308 + $0x80] sm:$0xff]
      %v432 = vld [vmem:[%s308 + $0x88] sm:$0xff]
      %v433 = vld [vmem:[%s308 + $0x90] sm:$0xff]
      %v434 = vld [vmem:[%s308 + $0x98] sm:$0xff]
      %v435 = vld [vmem:[%s308 + $0xa0] sm:$0xff]
      %v436 = vld [vmem:[%s308 + $0xa8] sm:$0xff]
      %v437 = vld [vmem:[%s308 + $0xb0] sm:$0xff]
      %v438 = vld [vmem:[%s308 + $0xb8] sm:$0xff]
      %v439 = vld [vmem:[%s308 + $0xc0] sm:$0xff]
      %v440 = vld [vmem:[%s308 + $0xc8] sm:$0xff]
      %v441 = vld [vmem:[%s308 + $0xd0] sm:$0xff]
      %v442 = vld [vmem:[%s308 + $0xd8] sm:$0xff]
      %v443 = vld [vmem:[%s308 + $0xe0] sm:$0xff]
      %v444 = vld [vmem:[%s308 + $0xe8] sm:$0xff]
      %v445 = vld [vmem:[%s308 + $0xf0] sm:$0xff]
      %v446 = vld [vmem:[%s308 + $0xf8] sm:$0xff]
      %v447 = vld [vmem:[%s318] sm:$0xff]
      %v448 = vld [vmem:[%s318 + $0x8] sm:$0xff]
      %v449 = vld [vmem:[%s328] sm:$0xff]
      %v450 = vld [vmem:[%s328 + $0x8] sm:$0xff]
      %v451 = vld [vmem:[%s328 + $0x10] sm:$0xff]
      %v452 = vld [vmem:[%s328 + $0x18] sm:$0xff]
      %v453 = vld [vmem:[%s328 + $0x20] sm:$0xff]
      %v454 = vld [vmem:[%s328 + $0x28] sm:$0xff]
      %v455 = vld [vmem:[%s328 + $0x30] sm:$0xff]
      %v456 = vld [vmem:[%s328 + $0x38] sm:$0xff]
      %v457 = vld [vmem:[%s328 + $0x40] sm:$0xff]
      %v458 = vld [vmem:[%s328 + $0x48] sm:$0xff]
      %v459 = vld [vmem:[%s328 + $0x50] sm:$0xff]
      %v460 = vld [vmem:[%s328 + $0x58] sm:$0xff]
      %v461 = vld [vmem:[%s328 + $0x60] sm:$0xff]
      %v462 = vld [vmem:[%s328 + $0x68] sm:$0xff]
      %v463 = vld [vmem:[%s328 + $0x70] sm:$0xff]
      %v464 = vld [vmem:[%s328 + $0x78] sm:$0xff]
      %v465 = vld [vmem:[%s328 + $0x80] sm:$0xff]
      %v466 = vld [vmem:[%s328 + $0x88] sm:$0xff]
      %v467 = vld [vmem:[%s328 + $0x90] sm:$0xff]
      %v468 = vld [vmem:[%s328 + $0x98] sm:$0xff]
      %v469 = vld [vmem:[%s328 + $0xa0] sm:$0xff]
      %v470 = vld [vmem:[%s328 + $0xa8] sm:$0xff]
      %v471 = vld [vmem:[%s328 + $0xb0] sm:$0xff]
      %v472 = vld [vmem:[%s328 + $0xb8] sm:$0xff]
      %v473 = vld [vmem:[%s328 + $0xc0] sm:$0xff]
      %v474 = vld [vmem:[%s328 + $0xc8] sm:$0xff]
      %v475 = vld [vmem:[%s328 + $0xd0] sm:$0xff]
      %v476 = vld [vmem:[%s328 + $0xd8] sm:$0xff]
      %v477 = vld [vmem:[%s328 + $0xe0] sm:$0xff]
      %v478 = vld [vmem:[%s328 + $0xe8] sm:$0xff]
      %v479 = vld [vmem:[%s328 + $0xf0] sm:$0xff]
      %v480 = vld [vmem:[%s328 + $0xf8] sm:$0xff]
      %v481 = vld [vmem:[%s338] sm:$0xff]
      %v482 = vld [vmem:[%s338 + $0x8] sm:$0xff]
      %v483 = vld [vmem:[%s338 + $0x10] sm:$0x3]
      %v484 = vld [vmem:[%s338 + $0x18] sm:$0x3]
      %vm485 = vcmask 64512
      %v487 = vsel %vm485, %v415, 0
      %v490 = vsel %vm485, %v416, 0
      %v493 = vsel %vm485, %v417, 0
      %v496 = vsel %vm485, %v418, 0
      %v499 = vsel %vm485, %v419, 0
      %v502 = vsel %vm485, %v420, 0
      %v505 = vsel %vm485, %v421, 0
      %v508 = vsel %vm485, %v422, 0
      %v511 = vsel %vm485, %v423, 0
      %v514 = vsel %vm485, %v424, 0
      %v517 = vsel %vm485, %v425, 0
      %v520 = vsel %vm485, %v426, 0
      %v523 = vsel %vm485, %v427, 0
      %v526 = vsel %vm485, %v428, 0
      %v529 = vsel %vm485, %v429, 0
      %v532 = vsel %vm485, %v430, 0
      %v535 = vsel %vm485, %v431, 0
      %v538 = vsel %vm485, %v432, 0
      %v541 = vsel %vm485, %v433, 0
      %v544 = vsel %vm485, %v434, 0
      %v547 = vsel %vm485, %v435, 0
      %v550 = vsel %vm485, %v436, 0
      %v553 = vsel %vm485, %v437, 0
      %v556 = vsel %vm485, %v438, 0
      %v559 = vsel %vm485, %v439, 0
      %v562 = vsel %vm485, %v440, 0
      %v565 = vsel %vm485, %v441, 0
      %v568 = vsel %vm485, %v442, 0
      %v571 = vsel %vm485, %v443, 0
      %v574 = vsel %vm485, %v444, 0
      %v577 = vsel %vm485, %v445, 0
      %v580 = vsel %vm485, %v446, 0
      %582 = vmatpush.msra.mxu0 0.0
      %583 = vmatpush.msra.mxu0 0.0
      %584 = vmatpush.msra.mxu0 0.0
      %585 = vmatpush.msra.mxu0 0.0
      %586 = vmatpush.msra.mxu0 0.0
      %587 = vmatpush.msra.mxu0 0.0
      %588 = vmatpush.msra.mxu0 0.0
      %589 = vmatpush.msra.mxu0 0.0
      %590 = vmatpush.msra.mxu0 0.0
      %591 = vmatpush.msra.mxu0 0.0
      %592 = vmatpush.msra.mxu0 0.0
      %593 = vmatpush.msra.mxu0 0.0
      %594 = vmatpush.msra.mxu0 0.0
      %595 = vmatpush.msra.mxu0 0.0
      %596 = vmatpush.msra.mxu0 0.0
      %597 = vmatpush.msra.mxu0 %v447
      %598 = vmatmul.f32.gmra.mxu0 %v487
      %v599 = vpop.f32.mrf.mxu0
      %v600 = vadd.f32 0.0, %v599
      %601 = vmatmul.f32.gmra.mxu0 %v490
      %v602 = vpop.f32.mrf.mxu0
      %v603 = vadd.f32 0.0, %v602
      %604 = vmatmul.f32.gmra.mxu0 %v493
      %v605 = vpop.f32.mrf.mxu0
      %v606 = vadd.f32 0.0, %v605
      %607 = vmatmul.f32.gmra.mxu0 %v496
      %v608 = vpop.f32.mrf.mxu0
      %v609 = vadd.f32 0.0, %v608
      %610 = vmatmul.f32.gmra.mxu0 %v499
      %v611 = vpop.f32.mrf.mxu0
      %v612 = vadd.f32 0.0, %v611
      %613 = vmatmul.f32.gmra.mxu0 %v502
      %v614 = vpop.f32.mrf.mxu0
      %v615 = vadd.f32 0.0, %v614
      %616 = vmatmul.f32.gmra.mxu0 %v505
      %v617 = vpop.f32.mrf.mxu0
      %v618 = vadd.f32 0.0, %v617
      %619 = vmatmul.f32.gmra.mxu0 %v508
      %v620 = vpop.f32.mrf.mxu0
      %v621 = vadd.f32 0.0, %v620
      %622 = vmatmul.f32.gmra.mxu0 %v511
      %v623 = vpop.f32.mrf.mxu0
      %v624 = vadd.f32 0.0, %v623
      %625 = vmatmul.f32.gmra.mxu0 %v514
      %v626 = vpop.f32.mrf.mxu0
      %v627 = vadd.f32 0.0, %v626
      %628 = vmatmul.f32.gmra.mxu0 %v517
      %v629 = vpop.f32.mrf.mxu0
      %v630 = vadd.f32 0.0, %v629
      %631 = vmatmul.f32.gmra.mxu0 %v520
      %v632 = vpop.f32.mrf.mxu0
      %v633 = vadd.f32 0.0, %v632
      %634 = vmatmul.f32.gmra.mxu0 %v523
      %v635 = vpop.f32.mrf.mxu0
      %v636 = vadd.f32 0.0, %v635
      %637 = vmatmul.f32.gmra.mxu0 %v526
      %v638 = vpop.f32.mrf.mxu0
      %v639 = vadd.f32 0.0, %v638
      %640 = vmatmul.f32.gmra.mxu0 %v529
      %v641 = vpop.f32.mrf.mxu0
      %v642 = vadd.f32 0.0, %v641
      %643 = vmatmul.f32.gmra.mxu0 %v532
      %v644 = vpop.f32.mrf.mxu0
      %v645 = vadd.f32 0.0, %v644
      %646 = vmatmul.f32.gmra.mxu0 %v535
      %v647 = vpop.f32.mrf.mxu0
      %v648 = vadd.f32 0.0, %v647
      %649 = vmatmul.f32.gmra.mxu0 %v538
      %v650 = vpop.f32.mrf.mxu0
      %v651 = vadd.f32 0.0, %v650
      %652 = vmatmul.f32.gmra.mxu0 %v541
      %v653 = vpop.f32.mrf.mxu0
      %v654 = vadd.f32 0.0, %v653
      %655 = vmatmul.f32.gmra.mxu0 %v544
      %v656 = vpop.f32.mrf.mxu0
      %v657 = vadd.f32 0.0, %v656
      %658 = vmatmul.f32.gmra.mxu0 %v547
      %v659 = vpop.f32.mrf.mxu0
      %v660 = vadd.f32 0.0, %v659
      %661 = vmatmul.f32.gmra.mxu0 %v550
      %v662 = vpop.f32.mrf.mxu0
      %v663 = vadd.f32 0.0, %v662
      %664 = vmatmul.f32.gmra.mxu0 %v553
      %v665 = vpop.f32.mrf.mxu0
      %v666 = vadd.f32 0.0, %v665
      %667 = vmatmul.f32.gmra.mxu0 %v556
      %v668 = vpop.f32.mrf.mxu0
      %v669 = vadd.f32 0.0, %v668
      %670 = vmatmul.f32.gmra.mxu0 %v559
      %v671 = vpop.f32.mrf.mxu0
      %v672 = vadd.f32 0.0, %v671
      %673 = vmatmul.f32.gmra.mxu0 %v562
      %v674 = vpop.f32.mrf.mxu0
      %v675 = vadd.f32 0.0, %v674
      %676 = vmatmul.f32.gmra.mxu0 %v565
      %v677 = vpop.f32.mrf.mxu0
      %v678 = vadd.f32 0.0, %v677
      %679 = vmatmul.f32.gmra.mxu0 %v568
      %v680 = vpop.f32.mrf.mxu0
      %v681 = vadd.f32 0.0, %v680
      %682 = vmatmul.f32.gmra.mxu0 %v571
      %v683 = vpop.f32.mrf.mxu0
      %v684 = vadd.f32 0.0, %v683
      %685 = vmatmul.f32.gmra.mxu0 %v574
      %v686 = vpop.f32.mrf.mxu0
      %v687 = vadd.f32 0.0, %v686
      %688 = vmatmul.f32.gmra.mxu0 %v577
      %v689 = vpop.f32.mrf.mxu0
      %v690 = vadd.f32 0.0, %v689
      %691 = vmatmul.f32.gmra.mxu0 %v580
      %v692 = vpop.f32.mrf.mxu0
      %v693 = vadd.f32 0.0, %v692
      %694 = vdwg.mxu0
      %695 = vmatpush.msra.mxu0 0.0
      %696 = vmatpush.msra.mxu0 0.0
      %697 = vmatpush.msra.mxu0 0.0
      %698 = vmatpush.msra.mxu0 0.0
      %699 = vmatpush.msra.mxu0 0.0
      %700 = vmatpush.msra.mxu0 0.0
      %701 = vmatpush.msra.mxu0 0.0
      %702 = vmatpush.msra.mxu0 0.0
      %703 = vmatpush.msra.mxu0 0.0
      %704 = vmatpush.msra.mxu0 0.0
      %705 = vmatpush.msra.mxu0 0.0
      %706 = vmatpush.msra.mxu0 0.0
      %707 = vmatpush.msra.mxu0 0.0
      %708 = vmatpush.msra.mxu0 0.0
      %709 = vmatpush.msra.mxu0 0.0
      %710 = vmatpush.msra.mxu0 %v448
      %711 = vmatmul.f32.gmra.mxu0 %v487
      %v712 = vpop.f32.mrf.mxu0
      %v713 = vadd.f32 0.0, %v712
      %714 = vmatmul.f32.gmra.mxu0 %v490
      %v715 = vpop.f32.mrf.mxu0
      %v716 = vadd.f32 0.0, %v715
      %717 = vmatmul.f32.gmra.mxu0 %v493
      %v718 = vpop.f32.mrf.mxu0
      %v719 = vadd.f32 0.0, %v718
      %720 = vmatmul.f32.gmra.mxu0 %v496
      %v721 = vpop.f32.mrf.mxu0
      %v722 = vadd.f32 0.0, %v721
      %723 = vmatmul.f32.gmra.mxu0 %v499
      %v724 = vpop.f32.mrf.mxu0
      %v725 = vadd.f32 0.0, %v724
      %726 = vmatmul.f32.gmra.mxu0 %v502
      %v727 = vpop.f32.mrf.mxu0
      %v728 = vadd.f32 0.0, %v727
      %729 = vmatmul.f32.gmra.mxu0 %v505
      %v730 = vpop.f32.mrf.mxu0
      %v731 = vadd.f32 0.0, %v730
      %732 = vmatmul.f32.gmra.mxu0 %v508
      %v733 = vpop.f32.mrf.mxu0
      %v734 = vadd.f32 0.0, %v733
      %735 = vmatmul.f32.gmra.mxu0 %v511
      %v736 = vpop.f32.mrf.mxu0
      %v737 = vadd.f32 0.0, %v736
      %738 = vmatmul.f32.gmra.mxu0 %v514
      %v739 = vpop.f32.mrf.mxu0
      %v740 = vadd.f32 0.0, %v739
      %741 = vmatmul.f32.gmra.mxu0 %v517
      %v742 = vpop.f32.mrf.mxu0
      %v743 = vadd.f32 0.0, %v742
      %744 = vmatmul.f32.gmra.mxu0 %v520
      %v745 = vpop.f32.mrf.mxu0
      %v746 = vadd.f32 0.0, %v745
      %747 = vmatmul.f32.gmra.mxu0 %v523
      %v748 = vpop.f32.mrf.mxu0
      %v749 = vadd.f32 0.0, %v748
      %750 = vmatmul.f32.gmra.mxu0 %v526
      %v751 = vpop.f32.mrf.mxu0
      %v752 = vadd.f32 0.0, %v751
      %753 = vmatmul.f32.gmra.mxu0 %v529
      %v754 = vpop.f32.mrf.mxu0
      %v755 = vadd.f32 0.0, %v754
      %756 = vmatmul.f32.gmra.mxu0 %v532
      %v757 = vpop.f32.mrf.mxu0
      %v758 = vadd.f32 0.0, %v757
      %759 = vmatmul.f32.gmra.mxu0 %v535
      %v760 = vpop.f32.mrf.mxu0
      %v761 = vadd.f32 0.0, %v760
      %762 = vmatmul.f32.gmra.mxu0 %v538
      %v763 = vpop.f32.mrf.mxu0
      %v764 = vadd.f32 0.0, %v763
      %765 = vmatmul.f32.gmra.mxu0 %v541
      %v766 = vpop.f32.mrf.mxu0
      %v767 = vadd.f32 0.0, %v766
      %768 = vmatmul.f32.gmra.mxu0 %v544
      %v769 = vpop.f32.mrf.mxu0
      %v770 = vadd.f32 0.0, %v769
      %771 = vmatmul.f32.gmra.mxu0 %v547
      %v772 = vpop.f32.mrf.mxu0
      %v773 = vadd.f32 0.0, %v772
      %774 = vmatmul.f32.gmra.mxu0 %v550
      %v775 = vpop.f32.mrf.mxu0
      %v776 = vadd.f32 0.0, %v775
      %777 = vmatmul.f32.gmra.mxu0 %v553
      %v778 = vpop.f32.mrf.mxu0
      %v779 = vadd.f32 0.0, %v778
      %780 = vmatmul.f32.gmra.mxu0 %v556
      %v781 = vpop.f32.mrf.mxu0
      %v782 = vadd.f32 0.0, %v781
      %783 = vmatmul.f32.gmra.mxu0 %v559
      %v784 = vpop.f32.mrf.mxu0
      %v785 = vadd.f32 0.0, %v784
      %786 = vmatmul.f32.gmra.mxu0 %v562
      %v787 = vpop.f32.mrf.mxu0
      %v788 = vadd.f32 0.0, %v787
      %789 = vmatmul.f32.gmra.mxu0 %v565
      %v790 = vpop.f32.mrf.mxu0
      %v791 = vadd.f32 0.0, %v790
      %792 = vmatmul.f32.gmra.mxu0 %v568
      %v793 = vpop.f32.mrf.mxu0
      %v794 = vadd.f32 0.0, %v793
      %795 = vmatmul.f32.gmra.mxu0 %v571
      %v796 = vpop.f32.mrf.mxu0
      %v797 = vadd.f32 0.0, %v796
      %798 = vmatmul.f32.gmra.mxu0 %v574
      %v799 = vpop.f32.mrf.mxu0
      %v800 = vadd.f32 0.0, %v799
      %801 = vmatmul.f32.gmra.mxu0 %v577
      %v802 = vpop.f32.mrf.mxu0
      %v803 = vadd.f32 0.0, %v802
      %804 = vmatmul.f32.gmra.mxu0 %v580
      %v805 = vpop.f32.mrf.mxu0
      %v806 = vadd.f32 0.0, %v805
      %807 = vdwg.mxu0
      %809 = vset.pattern.permute.xlu0 3
      %810 = vperm.xlu0 %809, %v449
      %v811 = vpop.permute.xlu0 %810
      %814 = vset.pattern.permute.xlu0 3
      %815 = vperm.xlu0 %814, %v450
      %v816 = vpop.permute.xlu0 %815
      %819 = vset.pattern.permute.xlu0 3
      %820 = vperm.xlu0 %819, %v451
      %v821 = vpop.permute.xlu0 %820
      %824 = vset.pattern.permute.xlu0 3
      %825 = vperm.xlu0 %824, %v452
      %v826 = vpop.permute.xlu0 %825
      %829 = vset.pattern.permute.xlu0 3
      %830 = vperm.xlu0 %829, %v453
      %v831 = vpop.permute.xlu0 %830
      %834 = vset.pattern.permute.xlu0 3
      %835 = vperm.xlu0 %834, %v454
      %v836 = vpop.permute.xlu0 %835
      %839 = vset.pattern.permute.xlu0 3
      %840 = vperm.xlu0 %839, %v455
      %v841 = vpop.permute.xlu0 %840
      %844 = vset.pattern.permute.xlu0 3
      %845 = vperm.xlu0 %844, %v456
      %v846 = vpop.permute.xlu0 %845
      %849 = vset.pattern.permute.xlu0 3
      %850 = vperm.xlu0 %849, %v457
      %v851 = vpop.permute.xlu0 %850
      %854 = vset.pattern.permute.xlu0 3
      %855 = vperm.xlu0 %854, %v458
      %v856 = vpop.permute.xlu0 %855
      %859 = vset.pattern.permute.xlu0 3
      %860 = vperm.xlu0 %859, %v459
      %v861 = vpop.permute.xlu0 %860
      %864 = vset.pattern.permute.xlu0 3
      %865 = vperm.xlu0 %864, %v460
      %v866 = vpop.permute.xlu0 %865
      %869 = vset.pattern.permute.xlu0 3
      %870 = vperm.xlu0 %869, %v461
      %v871 = vpop.permute.xlu0 %870
      %874 = vset.pattern.permute.xlu0 3
      %875 = vperm.xlu0 %874, %v462
      %v876 = vpop.permute.xlu0 %875
      %879 = vset.pattern.permute.xlu0 3
      %880 = vperm.xlu0 %879, %v463
      %v881 = vpop.permute.xlu0 %880
      %884 = vset.pattern.permute.xlu0 3
      %885 = vperm.xlu0 %884, %v464
      %v886 = vpop.permute.xlu0 %885
      %889 = vset.pattern.permute.xlu0 3
      %890 = vperm.xlu0 %889, %v465
      %v891 = vpop.permute.xlu0 %890
      %894 = vset.pattern.permute.xlu0 3
      %895 = vperm.xlu0 %894, %v466
      %v896 = vpop.permute.xlu0 %895
      %899 = vset.pattern.permute.xlu0 3
      %900 = vperm.xlu0 %899, %v467
      %v901 = vpop.permute.xlu0 %900
      %904 = vset.pattern.permute.xlu0 3
      %905 = vperm.xlu0 %904, %v468
      %v906 = vpop.permute.xlu0 %905
      %909 = vset.pattern.permute.xlu0 3
      %910 = vperm.xlu0 %909, %v469
      %v911 = vpop.permute.xlu0 %910
      %914 = vset.pattern.permute.xlu0 3
      %915 = vperm.xlu0 %914, %v470
      %v916 = vpop.permute.xlu0 %915
      %919 = vset.pattern.permute.xlu0 3
      %920 = vperm.xlu0 %919, %v471
      %v921 = vpop.permute.xlu0 %920
      %924 = vset.pattern.permute.xlu0 3
      %925 = vperm.xlu0 %924, %v472
      %v926 = vpop.permute.xlu0 %925
      %929 = vset.pattern.permute.xlu0 3
      %930 = vperm.xlu0 %929, %v473
      %v931 = vpop.permute.xlu0 %930
      %934 = vset.pattern.permute.xlu0 3
      %935 = vperm.xlu0 %934, %v474
      %v936 = vpop.permute.xlu0 %935
      %939 = vset.pattern.permute.xlu0 3
      %940 = vperm.xlu0 %939, %v475
      %v941 = vpop.permute.xlu0 %940
      %944 = vset.pattern.permute.xlu0 3
      %945 = vperm.xlu0 %944, %v476
      %v946 = vpop.permute.xlu0 %945
      %949 = vset.pattern.permute.xlu0 3
      %950 = vperm.xlu0 %949, %v477
      %v951 = vpop.permute.xlu0 %950
      %954 = vset.pattern.permute.xlu0 3
      %955 = vperm.xlu0 %954, %v478
      %v956 = vpop.permute.xlu0 %955
      %959 = vset.pattern.permute.xlu0 3
      %960 = vperm.xlu0 %959, %v479
      %v961 = vpop.permute.xlu0 %960
      %964 = vset.pattern.permute.xlu0 3
      %965 = vperm.xlu0 %964, %v480
      %v966 = vpop.permute.xlu0 %965
      %v968 = vmul.f32 %v600, %v811
      %v969 = vmul.f32 %v713, %v811
      %v970 = vmul.f32 %v603, %v816
      %v971 = vmul.f32 %v716, %v816
      %v972 = vmul.f32 %v606, %v821
      %v973 = vmul.f32 %v719, %v821
      %v974 = vmul.f32 %v609, %v826
      %v975 = vmul.f32 %v722, %v826
      %v976 = vmul.f32 %v612, %v831
      %v977 = vmul.f32 %v725, %v831
      %v978 = vmul.f32 %v615, %v836
      %v979 = vmul.f32 %v728, %v836
      %v980 = vmul.f32 %v618, %v841
      %v981 = vmul.f32 %v731, %v841
      %v982 = vmul.f32 %v621, %v846
      %v983 = vmul.f32 %v734, %v846
      %v984 = vmul.f32 %v624, %v851
      %v985 = vmul.f32 %v737, %v851
      %v986 = vmul.f32 %v627, %v856
      %v987 = vmul.f32 %v740, %v856
      %v988 = vmul.f32 %v630, %v861
      %v989 = vmul.f32 %v743, %v861
      %v990 = vmul.f32 %v633, %v866
      %v991 = vmul.f32 %v746, %v866
      %v992 = vmul.f32 %v636, %v871
      %v993 = vmul.f32 %v749, %v871
      %v994 = vmul.f32 %v639, %v876
      %v995 = vmul.f32 %v752, %v876
      %v996 = vmul.f32 %v642, %v881
      %v997 = vmul.f32 %v755, %v881
      %v998 = vmul.f32 %v645, %v886
      %v999 = vmul.f32 %v758, %v886
      %v1000 = vmul.f32 %v648, %v891
      %v1001 = vmul.f32 %v761, %v891
      %v1002 = vmul.f32 %v651, %v896
      %v1003 = vmul.f32 %v764, %v896
      %v1004 = vmul.f32 %v654, %v901
      %v1005 = vmul.f32 %v767, %v901
      %v1006 = vmul.f32 %v657, %v906
      %v1007 = vmul.f32 %v770, %v906
      %v1008 = vmul.f32 %v660, %v911
      %v1009 = vmul.f32 %v773, %v911
      %v1010 = vmul.f32 %v663, %v916
      %v1011 = vmul.f32 %v776, %v916
      %v1012 = vmul.f32 %v666, %v921
      %v1013 = vmul.f32 %v779, %v921
      %v1014 = vmul.f32 %v669, %v926
      %v1015 = vmul.f32 %v782, %v926
      %v1016 = vmul.f32 %v672, %v931
      %v1017 = vmul.f32 %v785, %v931
      %v1018 = vmul.f32 %v675, %v936
      %v1019 = vmul.f32 %v788, %v936
      %v1020 = vmul.f32 %v678, %v941
      %v1021 = vmul.f32 %v791, %v941
      %v1022 = vmul.f32 %v681, %v946
      %v1023 = vmul.f32 %v794, %v946
      %v1024 = vmul.f32 %v684, %v951
      %v1025 = vmul.f32 %v797, %v951
      %v1026 = vmul.f32 %v687, %v956
      %v1027 = vmul.f32 %v800, %v956
      %v1028 = vmul.f32 %v690, %v961
      %v1029 = vmul.f32 %v803, %v961
      %v1030 = vmul.f32 %v693, %v966
      %v1031 = vmul.f32 %v806, %v966
      %v1032 = vperm.slane %v481, 3
      %v1033 = vperm.slane %v482, 3
      %v1034 = vmul.f32 %v968, %v1032
      %v1035 = vmul.f32 %v969, %v1033
      %v1036 = vmul.f32 %v970, %v1032
      %v1037 = vmul.f32 %v971, %v1033
      %v1038 = vmul.f32 %v972, %v1032
      %v1039 = vmul.f32 %v973, %v1033
      %v1040 = vmul.f32 %v974, %v1032
      %v1041 = vmul.f32 %v975, %v1033
      %v1042 = vmul.f32 %v976, %v1032
      %v1043 = vmul.f32 %v977, %v1033
      %v1044 = vmul.f32 %v978, %v1032
      %v1045 = vmul.f32 %v979, %v1033
      %v1046 = vmul.f32 %v980, %v1032
      %v1047 = vmul.f32 %v981, %v1033
      %v1048 = vmul.f32 %v982, %v1032
      %v1049 = vmul.f32 %v983, %v1033
      %v1050 = vmul.f32 %v984, %v1032
      %v1051 = vmul.f32 %v985, %v1033
      %v1052 = vmul.f32 %v986, %v1032
      %v1053 = vmul.f32 %v987, %v1033
      %v1054 = vmul.f32 %v988, %v1032
      %v1055 = vmul.f32 %v989, %v1033
      %v1056 = vmul.f32 %v990, %v1032
      %v1057 = vmul.f32 %v991, %v1033
      %v1058 = vmul.f32 %v992, %v1032
      %v1059 = vmul.f32 %v993, %v1033
      %v1060 = vmul.f32 %v994, %v1032
      %v1061 = vmul.f32 %v995, %v1033
      %v1062 = vmul.f32 %v996, %v1032
      %v1063 = vmul.f32 %v997, %v1033
      %v1064 = vmul.f32 %v998, %v1032
      %v1065 = vmul.f32 %v999, %v1033
      %v1066 = vmul.f32 %v1000, %v1032
      %v1067 = vmul.f32 %v1001, %v1033
      %v1068 = vmul.f32 %v1002, %v1032
      %v1069 = vmul.f32 %v1003, %v1033
      %v1070 = vmul.f32 %v1004, %v1032
      %v1071 = vmul.f32 %v1005, %v1033
      %v1072 = vmul.f32 %v1006, %v1032
      %v1073 = vmul.f32 %v1007, %v1033
      %v1074 = vmul.f32 %v1008, %v1032
      %v1075 = vmul.f32 %v1009, %v1033
      %v1076 = vmul.f32 %v1010, %v1032
      %v1077 = vmul.f32 %v1011, %v1033
      %v1078 = vmul.f32 %v1012, %v1032
      %v1079 = vmul.f32 %v1013, %v1033
      %v1080 = vmul.f32 %v1014, %v1032
      %v1081 = vmul.f32 %v1015, %v1033
      %v1082 = vmul.f32 %v1016, %v1032
      %v1083 = vmul.f32 %v1017, %v1033
      %v1084 = vmul.f32 %v1018, %v1032
      %v1085 = vmul.f32 %v1019, %v1033
      %v1086 = vmul.f32 %v1020, %v1032
      %v1087 = vmul.f32 %v1021, %v1033
      %v1088 = vmul.f32 %v1022, %v1032
      %v1089 = vmul.f32 %v1023, %v1033
      %v1090 = vmul.f32 %v1024, %v1032
      %v1091 = vmul.f32 %v1025, %v1033
      %v1092 = vmul.f32 %v1026, %v1032
      %v1093 = vmul.f32 %v1027, %v1033
      %v1094 = vmul.f32 %v1028, %v1032
      %v1095 = vmul.f32 %v1029, %v1033
      %v1096 = vmul.f32 %v1030, %v1032
      %v1097 = vmul.f32 %v1031, %v1033
      %1098 = vset.pattern.permute.xlu0 0
      %1099 = vperm.xlu0 %1098, %v449
      %v1100 = vpop.permute.xlu0 %1099
      %1102 = vset.pattern.permute.xlu0 0
      %1103 = vperm.xlu0 %1102, %v450
      %v1104 = vpop.permute.xlu0 %1103
      %1106 = vset.pattern.permute.xlu0 0
      %1107 = vperm.xlu0 %1106, %v451
      %v1108 = vpop.permute.xlu0 %1107
      %1110 = vset.pattern.permute.xlu0 0
      %1111 = vperm.xlu0 %1110, %v452
      %v1112 = vpop.permute.xlu0 %1111
      %1114 = vset.pattern.permute.xlu0 0
      %1115 = vperm.xlu0 %1114, %v453
      %v1116 = vpop.permute.xlu0 %1115
      %1118 = vset.pattern.permute.xlu0 0
      %1119 = vperm.xlu0 %1118, %v454
      %v1120 = vpop.permute.xlu0 %1119
      %1122 = vset.pattern.permute.xlu0 0
      %1123 = vperm.xlu0 %1122, %v455
      %v1124 = vpop.permute.xlu0 %1123
      %1126 = vset.pattern.permute.xlu0 0
      %1127 = vperm.xlu0 %1126, %v456
      %v1128 = vpop.permute.xlu0 %1127
      %1130 = vset.pattern.permute.xlu0 0
      %1131 = vperm.xlu0 %1130, %v457
      %v1132 = vpop.permute.xlu0 %1131
      %1134 = vset.pattern.permute.xlu0 0
      %1135 = vperm.xlu0 %1134, %v458
      %v1136 = vpop.permute.xlu0 %1135
      %1138 = vset.pattern.permute.xlu0 0
      %1139 = vperm.xlu0 %1138, %v459
      %v1140 = vpop.permute.xlu0 %1139
      %1142 = vset.pattern.permute.xlu0 0
      %1143 = vperm.xlu0 %1142, %v460
      %v1144 = vpop.permute.xlu0 %1143
      %1146 = vset.pattern.permute.xlu0 0
      %1147 = vperm.xlu0 %1146, %v461
      %v1148 = vpop.permute.xlu0 %1147
      %1150 = vset.pattern.permute.xlu0 0
      %1151 = vperm.xlu0 %1150, %v462
      %v1152 = vpop.permute.xlu0 %1151
      %1154 = vset.pattern.permute.xlu0 0
      %1155 = vperm.xlu0 %1154, %v463
      %v1156 = vpop.permute.xlu0 %1155
      %1158 = vset.pattern.permute.xlu0 0
      %1159 = vperm.xlu0 %1158, %v464
      %v1160 = vpop.permute.xlu0 %1159
      %1162 = vset.pattern.permute.xlu0 0
      %1163 = vperm.xlu0 %1162, %v465
      %v1164 = vpop.permute.xlu0 %1163
      %1166 = vset.pattern.permute.xlu0 0
      %1167 = vperm.xlu0 %1166, %v466
      %v1168 = vpop.permute.xlu0 %1167
      %1170 = vset.pattern.permute.xlu0 0
      %1171 = vperm.xlu0 %1170, %v467
      %v1172 = vpop.permute.xlu0 %1171
      %1174 = vset.pattern.permute.xlu0 0
      %1175 = vperm.xlu0 %1174, %v468
      %v1176 = vpop.permute.xlu0 %1175
      %1178 = vset.pattern.permute.xlu0 0
      %1179 = vperm.xlu0 %1178, %v469
      %v1180 = vpop.permute.xlu0 %1179
      %1182 = vset.pattern.permute.xlu0 0
      %1183 = vperm.xlu0 %1182, %v470
      %v1184 = vpop.permute.xlu0 %1183
      %1186 = vset.pattern.permute.xlu0 0
      %1187 = vperm.xlu0 %1186, %v471
      %v1188 = vpop.permute.xlu0 %1187
      %1190 = vset.pattern.permute.xlu0 0
      %1191 = vperm.xlu0 %1190, %v472
      %v1192 = vpop.permute.xlu0 %1191
      %1194 = vset.pattern.permute.xlu0 0
      %1195 = vperm.xlu0 %1194, %v473
      %v1196 = vpop.permute.xlu0 %1195
      %1198 = vset.pattern.permute.xlu0 0
      %1199 = vperm.xlu0 %1198, %v474
      %v1200 = vpop.permute.xlu0 %1199
      %1202 = vset.pattern.permute.xlu0 0
      %1203 = vperm.xlu0 %1202, %v475
      %v1204 = vpop.permute.xlu0 %1203
      %1206 = vset.pattern.permute.xlu0 0
      %1207 = vperm.xlu0 %1206, %v476
      %v1208 = vpop.permute.xlu0 %1207
      %1210 = vset.pattern.permute.xlu0 0
      %1211 = vperm.xlu0 %1210, %v477
      %v1212 = vpop.permute.xlu0 %1211
      %1214 = vset.pattern.permute.xlu0 0
      %1215 = vperm.xlu0 %1214, %v478
      %v1216 = vpop.permute.xlu0 %1215
      %1218 = vset.pattern.permute.xlu0 0
      %1219 = vperm.xlu0 %1218, %v479
      %v1220 = vpop.permute.xlu0 %1219
      %1222 = vset.pattern.permute.xlu0 0
      %1223 = vperm.xlu0 %1222, %v480
      %v1224 = vpop.permute.xlu0 %1223
      %v1226 = vperm.slane %v481, 0
      %v1227 = vperm.slane %v482, 0
      %v1228 = vsub.f32 %v1100, %v1226
      %v1229 = vsub.f32 %v1100, %v1227
      %v1230 = vsub.f32 %v1104, %v1226
      %v1231 = vsub.f32 %v1104, %v1227
      %v1232 = vsub.f32 %v1108, %v1226
      %v1233 = vsub.f32 %v1108, %v1227
      %v1234 = vsub.f32 %v1112, %v1226
      %v1235 = vsub.f32 %v1112, %v1227
      %v1236 = vsub.f32 %v1116, %v1226
      %v1237 = vsub.f32 %v1116, %v1227
      %v1238 = vsub.f32 %v1120, %v1226
      %v1239 = vsub.f32 %v1120, %v1227
      %v1240 = vsub.f32 %v1124, %v1226
      %v1241 = vsub.f32 %v1124, %v1227
      %v1242 = vsub.f32 %v1128, %v1226
      %v1243 = vsub.f32 %v1128, %v1227
      %v1244 = vsub.f32 %v1132, %v1226
      %v1245 = vsub.f32 %v1132, %v1227
      %v1246 = vsub.f32 %v1136, %v1226
      %v1247 = vsub.f32 %v1136, %v1227
      %v1248 = vsub.f32 %v1140, %v1226
      %v1249 = vsub.f32 %v1140, %v1227
      %v1250 = vsub.f32 %v1144, %v1226
      %v1251 = vsub.f32 %v1144, %v1227
      %v1252 = vsub.f32 %v1148, %v1226
      %v1253 = vsub.f32 %v1148, %v1227
      %v1254 = vsub.f32 %v1152, %v1226
      %v1255 = vsub.f32 %v1152, %v1227
      %v1256 = vsub.f32 %v1156, %v1226
      %v1257 = vsub.f32 %v1156, %v1227
      %v1258 = vsub.f32 %v1160, %v1226
      %v1259 = vsub.f32 %v1160, %v1227
      %v1260 = vsub.f32 %v1164, %v1226
      %v1261 = vsub.f32 %v1164, %v1227
      %v1262 = vsub.f32 %v1168, %v1226
      %v1263 = vsub.f32 %v1168, %v1227
      %v1264 = vsub.f32 %v1172, %v1226
      %v1265 = vsub.f32 %v1172, %v1227
      %v1266 = vsub.f32 %v1176, %v1226
      %v1267 = vsub.f32 %v1176, %v1227
      %v1268 = vsub.f32 %v1180, %v1226
      %v1269 = vsub.f32 %v1180, %v1227
      %v1270 = vsub.f32 %v1184, %v1226
      %v1271 = vsub.f32 %v1184, %v1227
      %v1272 = vsub.f32 %v1188, %v1226
      %v1273 = vsub.f32 %v1188, %v1227
      %v1274 = vsub.f32 %v1192, %v1226
      %v1275 = vsub.f32 %v1192, %v1227
      %v1276 = vsub.f32 %v1196, %v1226
      %v1277 = vsub.f32 %v1196, %v1227
      %v1278 = vsub.f32 %v1200, %v1226
      %v1279 = vsub.f32 %v1200, %v1227
      %v1280 = vsub.f32 %v1204, %v1226
      %v1281 = vsub.f32 %v1204, %v1227
      %v1282 = vsub.f32 %v1208, %v1226
      %v1283 = vsub.f32 %v1208, %v1227
      %v1284 = vsub.f32 %v1212, %v1226
      %v1285 = vsub.f32 %v1212, %v1227
      %v1286 = vsub.f32 %v1216, %v1226
      %v1287 = vsub.f32 %v1216, %v1227
      %v1288 = vsub.f32 %v1220, %v1226
      %v1289 = vsub.f32 %v1220, %v1227
      %v1290 = vsub.f32 %v1224, %v1226
      %v1291 = vsub.f32 %v1224, %v1227
      %v1292 = vmul.f32 %v1228, %v1228
      %v1293 = vmul.f32 %v1229, %v1229
      %v1294 = vmul.f32 %v1230, %v1230
      %v1295 = vmul.f32 %v1231, %v1231
      %v1296 = vmul.f32 %v1232, %v1232
      %v1297 = vmul.f32 %v1233, %v1233
      %v1298 = vmul.f32 %v1234, %v1234
      %v1299 = vmul.f32 %v1235, %v1235
      %v1300 = vmul.f32 %v1236, %v1236
      %v1301 = vmul.f32 %v1237, %v1237
      %v1302 = vmul.f32 %v1238, %v1238
      %v1303 = vmul.f32 %v1239, %v1239
      %v1304 = vmul.f32 %v1240, %v1240
      %v1305 = vmul.f32 %v1241, %v1241
      %v1306 = vmul.f32 %v1242, %v1242
      %v1307 = vmul.f32 %v1243, %v1243
      %v1308 = vmul.f32 %v1244, %v1244
      %v1309 = vmul.f32 %v1245, %v1245
      %v1310 = vmul.f32 %v1246, %v1246
      %v1311 = vmul.f32 %v1247, %v1247
      %v1312 = vmul.f32 %v1248, %v1248
      %v1313 = vmul.f32 %v1249, %v1249
      %v1314 = vmul.f32 %v1250, %v1250
      %v1315 = vmul.f32 %v1251, %v1251
      %v1316 = vmul.f32 %v1252, %v1252
      %v1317 = vmul.f32 %v1253, %v1253
      %v1318 = vmul.f32 %v1254, %v1254
      %v1319 = vmul.f32 %v1255, %v1255
      %v1320 = vmul.f32 %v1256, %v1256
      %v1321 = vmul.f32 %v1257, %v1257
      %v1322 = vmul.f32 %v1258, %v1258
      %v1323 = vmul.f32 %v1259, %v1259
      %v1324 = vmul.f32 %v1260, %v1260
      %v1325 = vmul.f32 %v1261, %v1261
      %v1326 = vmul.f32 %v1262, %v1262
      %v1327 = vmul.f32 %v1263, %v1263
      %v1328 = vmul.f32 %v1264, %v1264
      %v1329 = vmul.f32 %v1265, %v1265
      %v1330 = vmul.f32 %v1266, %v1266
      %v1331 = vmul.f32 %v1267, %v1267
      %v1332 = vmul.f32 %v1268, %v1268
      %v1333 = vmul.f32 %v1269, %v1269
      %v1334 = vmul.f32 %v1270, %v1270
      %v1335 = vmul.f32 %v1271, %v1271
      %v1336 = vmul.f32 %v1272, %v1272
      %v1337 = vmul.f32 %v1273, %v1273
      %v1338 = vmul.f32 %v1274, %v1274
      %v1339 = vmul.f32 %v1275, %v1275
      %v1340 = vmul.f32 %v1276, %v1276
      %v1341 = vmul.f32 %v1277, %v1277
      %v1342 = vmul.f32 %v1278, %v1278
      %v1343 = vmul.f32 %v1279, %v1279
      %v1344 = vmul.f32 %v1280, %v1280
      %v1345 = vmul.f32 %v1281, %v1281
      %v1346 = vmul.f32 %v1282, %v1282
      %v1347 = vmul.f32 %v1283, %v1283
      %v1348 = vmul.f32 %v1284, %v1284
      %v1349 = vmul.f32 %v1285, %v1285
      %v1350 = vmul.f32 %v1286, %v1286
      %v1351 = vmul.f32 %v1287, %v1287
      %v1352 = vmul.f32 %v1288, %v1288
      %v1353 = vmul.f32 %v1289, %v1289
      %v1354 = vmul.f32 %v1290, %v1290
      %v1355 = vmul.f32 %v1291, %v1291
      %1356 = vset.pattern.permute.xlu0 1
      %1357 = vperm.xlu0 %1356, %v449
      %v1358 = vpop.permute.xlu0 %1357
      %1360 = vset.pattern.permute.xlu0 1
      %1361 = vperm.xlu0 %1360, %v450
      %v1362 = vpop.permute.xlu0 %1361
      %1364 = vset.pattern.permute.xlu0 1
      %1365 = vperm.xlu0 %1364, %v451
      %v1366 = vpop.permute.xlu0 %1365
      %1368 = vset.pattern.permute.xlu0 1
      %1369 = vperm.xlu0 %1368, %v452
      %v1370 = vpop.permute.xlu0 %1369
      %1372 = vset.pattern.permute.xlu0 1
      %1373 = vperm.xlu0 %1372, %v453
      %v1374 = vpop.permute.xlu0 %1373
      %1376 = vset.pattern.permute.xlu0 1
      %1377 = vperm.xlu0 %1376, %v454
      %v1378 = vpop.permute.xlu0 %1377
      %1380 = vset.pattern.permute.xlu0 1
      %1381 = vperm.xlu0 %1380, %v455
      %v1382 = vpop.permute.xlu0 %1381
      %1384 = vset.pattern.permute.xlu0 1
      %1385 = vperm.xlu0 %1384, %v456
      %v1386 = vpop.permute.xlu0 %1385
      %1388 = vset.pattern.permute.xlu0 1
      %1389 = vperm.xlu0 %1388, %v457
      %v1390 = vpop.permute.xlu0 %1389
      %1392 = vset.pattern.permute.xlu0 1
      %1393 = vperm.xlu0 %1392, %v458
      %v1394 = vpop.permute.xlu0 %1393
      %1396 = vset.pattern.permute.xlu0 1
      %1397 = vperm.xlu0 %1396, %v459
      %v1398 = vpop.permute.xlu0 %1397
      %1400 = vset.pattern.permute.xlu0 1
      %1401 = vperm.xlu0 %1400, %v460
      %v1402 = vpop.permute.xlu0 %1401
      %1404 = vset.pattern.permute.xlu0 1
      %1405 = vperm.xlu0 %1404, %v461
      %v1406 = vpop.permute.xlu0 %1405
      %1408 = vset.pattern.permute.xlu0 1
      %1409 = vperm.xlu0 %1408, %v462
      %v1410 = vpop.permute.xlu0 %1409
      %1412 = vset.pattern.permute.xlu0 1
      %1413 = vperm.xlu0 %1412, %v463
      %v1414 = vpop.permute.xlu0 %1413
      %1416 = vset.pattern.permute.xlu0 1
      %1417 = vperm.xlu0 %1416, %v464
      %v1418 = vpop.permute.xlu0 %1417
      %1420 = vset.pattern.permute.xlu0 1
      %1421 = vperm.xlu0 %1420, %v465
      %v1422 = vpop.permute.xlu0 %1421
      %1424 = vset.pattern.permute.xlu0 1
      %1425 = vperm.xlu0 %1424, %v466
      %v1426 = vpop.permute.xlu0 %1425
      %1428 = vset.pattern.permute.xlu0 1
      %1429 = vperm.xlu0 %1428, %v467
      %v1430 = vpop.permute.xlu0 %1429
      %1432 = vset.pattern.permute.xlu0 1
      %1433 = vperm.xlu0 %1432, %v468
      %v1434 = vpop.permute.xlu0 %1433
      %1436 = vset.pattern.permute.xlu0 1
      %1437 = vperm.xlu0 %1436, %v469
      %v1438 = vpop.permute.xlu0 %1437
      %1440 = vset.pattern.permute.xlu0 1
      %1441 = vperm.xlu0 %1440, %v470
      %v1442 = vpop.permute.xlu0 %1441
      %1444 = vset.pattern.permute.xlu0 1
      %1445 = vperm.xlu0 %1444, %v471
      %v1446 = vpop.permute.xlu0 %1445
      %1448 = vset.pattern.permute.xlu0 1
      %1449 = vperm.xlu0 %1448, %v472
      %v1450 = vpop.permute.xlu0 %1449
      %1452 = vset.pattern.permute.xlu0 1
      %1453 = vperm.xlu0 %1452, %v473
      %v1454 = vpop.permute.xlu0 %1453
      %1456 = vset.pattern.permute.xlu0 1
      %1457 = vperm.xlu0 %1456, %v474
      %v1458 = vpop.permute.xlu0 %1457
      %1460 = vset.pattern.permute.xlu0 1
      %1461 = vperm.xlu0 %1460, %v475
      %v1462 = vpop.permute.xlu0 %1461
      %1464 = vset.pattern.permute.xlu0 1
      %1465 = vperm.xlu0 %1464, %v476
      %v1466 = vpop.permute.xlu0 %1465
      %1468 = vset.pattern.permute.xlu0 1
      %1469 = vperm.xlu0 %1468, %v477
      %v1470 = vpop.permute.xlu0 %1469
      %1472 = vset.pattern.permute.xlu0 1
      %1473 = vperm.xlu0 %1472, %v478
      %v1474 = vpop.permute.xlu0 %1473
      %1476 = vset.pattern.permute.xlu0 1
      %1477 = vperm.xlu0 %1476, %v479
      %v1478 = vpop.permute.xlu0 %1477
      %1480 = vset.pattern.permute.xlu0 1
      %1481 = vperm.xlu0 %1480, %v480
      %v1482 = vpop.permute.xlu0 %1481
      %v1484 = vadd.f32 %v1358, %v1292
      %v1485 = vadd.f32 %v1358, %v1293
      %v1486 = vadd.f32 %v1362, %v1294
      %v1487 = vadd.f32 %v1362, %v1295
      %v1488 = vadd.f32 %v1366, %v1296
      %v1489 = vadd.f32 %v1366, %v1297
      %v1490 = vadd.f32 %v1370, %v1298
      %v1491 = vadd.f32 %v1370, %v1299
      %v1492 = vadd.f32 %v1374, %v1300
      %v1493 = vadd.f32 %v1374, %v1301
      %v1494 = vadd.f32 %v1378, %v1302
      %v1495 = vadd.f32 %v1378, %v1303
      %v1496 = vadd.f32 %v1382, %v1304
      %v1497 = vadd.f32 %v1382, %v1305
      %v1498 = vadd.f32 %v1386, %v1306
      %v1499 = vadd.f32 %v1386, %v1307
      %v1500 = vadd.f32 %v1390, %v1308
      %v1501 = vadd.f32 %v1390, %v1309
      %v1502 = vadd.f32 %v1394, %v1310
      %v1503 = vadd.f32 %v1394, %v1311
      %v1504 = vadd.f32 %v1398, %v1312
      %v1505 = vadd.f32 %v1398, %v1313
      %v1506 = vadd.f32 %v1402, %v1314
      %v1507 = vadd.f32 %v1402, %v1315
      %v1508 = vadd.f32 %v1406, %v1316
      %v1509 = vadd.f32 %v1406, %v1317
      %v1510 = vadd.f32 %v1410, %v1318
      %v1511 = vadd.f32 %v1410, %v1319
      %v1512 = vadd.f32 %v1414, %v1320
      %v1513 = vadd.f32 %v1414, %v1321
      %v1514 = vadd.f32 %v1418, %v1322
      %v1515 = vadd.f32 %v1418, %v1323
      %v1516 = vadd.f32 %v1422, %v1324
      %v1517 = vadd.f32 %v1422, %v1325
      %v1518 = vadd.f32 %v1426, %v1326
      %v1519 = vadd.f32 %v1426, %v1327
      %v1520 = vadd.f32 %v1430, %v1328
      %v1521 = vadd.f32 %v1430, %v1329
      %v1522 = vadd.f32 %v1434, %v1330
      %v1523 = vadd.f32 %v1434, %v1331
      %v1524 = vadd.f32 %v1438, %v1332
      %v1525 = vadd.f32 %v1438, %v1333
      %v1526 = vadd.f32 %v1442, %v1334
      %v1527 = vadd.f32 %v1442, %v1335
      %v1528 = vadd.f32 %v1446, %v1336
      %v1529 = vadd.f32 %v1446, %v1337
      %v1530 = vadd.f32 %v1450, %v1338
      %v1531 = vadd.f32 %v1450, %v1339
      %v1532 = vadd.f32 %v1454, %v1340
      %v1533 = vadd.f32 %v1454, %v1341
      %v1534 = vadd.f32 %v1458, %v1342
      %v1535 = vadd.f32 %v1458, %v1343
      %v1536 = vadd.f32 %v1462, %v1344
      %v1537 = vadd.f32 %v1462, %v1345
      %v1538 = vadd.f32 %v1466, %v1346
      %v1539 = vadd.f32 %v1466, %v1347
      %v1540 = vadd.f32 %v1470, %v1348
      %v1541 = vadd.f32 %v1470, %v1349
      %v1542 = vadd.f32 %v1474, %v1350
      %v1543 = vadd.f32 %v1474, %v1351
      %v1544 = vadd.f32 %v1478, %v1352
      %v1545 = vadd.f32 %v1478, %v1353
      %v1546 = vadd.f32 %v1482, %v1354
      %v1547 = vadd.f32 %v1482, %v1355
      %v1548 = vperm.slane %v481, 2
      %v1549 = vperm.slane %v482, 2
      %v1550 = vmul.f32 %v1484, %v1548
      %v1551 = vmul.f32 %v1485, %v1549
      %v1552 = vmul.f32 %v1486, %v1548
      %v1553 = vmul.f32 %v1487, %v1549
      %v1554 = vmul.f32 %v1488, %v1548
      %v1555 = vmul.f32 %v1489, %v1549
      %v1556 = vmul.f32 %v1490, %v1548
      %v1557 = vmul.f32 %v1491, %v1549
      %v1558 = vmul.f32 %v1492, %v1548
      %v1559 = vmul.f32 %v1493, %v1549
      %v1560 = vmul.f32 %v1494, %v1548
      %v1561 = vmul.f32 %v1495, %v1549
      %v1562 = vmul.f32 %v1496, %v1548
      %v1563 = vmul.f32 %v1497, %v1549
      %v1564 = vmul.f32 %v1498, %v1548
      %v1565 = vmul.f32 %v1499, %v1549
      %v1566 = vmul.f32 %v1500, %v1548
      %v1567 = vmul.f32 %v1501, %v1549
      %v1568 = vmul.f32 %v1502, %v1548
      %v1569 = vmul.f32 %v1503, %v1549
      %v1570 = vmul.f32 %v1504, %v1548
      %v1571 = vmul.f32 %v1505, %v1549
      %v1572 = vmul.f32 %v1506, %v1548
      %v1573 = vmul.f32 %v1507, %v1549
      %v1574 = vmul.f32 %v1508, %v1548
      %v1575 = vmul.f32 %v1509, %v1549
      %v1576 = vmul.f32 %v1510, %v1548
      %v1577 = vmul.f32 %v1511, %v1549
      %v1578 = vmul.f32 %v1512, %v1548
      %v1579 = vmul.f32 %v1513, %v1549
      %v1580 = vmul.f32 %v1514, %v1548
      %v1581 = vmul.f32 %v1515, %v1549
      %v1582 = vmul.f32 %v1516, %v1548
      %v1583 = vmul.f32 %v1517, %v1549
      %v1584 = vmul.f32 %v1518, %v1548
      %v1585 = vmul.f32 %v1519, %v1549
      %v1586 = vmul.f32 %v1520, %v1548
      %v1587 = vmul.f32 %v1521, %v1549
      %v1588 = vmul.f32 %v1522, %v1548
      %v1589 = vmul.f32 %v1523, %v1549
      %v1590 = vmul.f32 %v1524, %v1548
      %v1591 = vmul.f32 %v1525, %v1549
      %v1592 = vmul.f32 %v1526, %v1548
      %v1593 = vmul.f32 %v1527, %v1549
      %v1594 = vmul.f32 %v1528, %v1548
      %v1595 = vmul.f32 %v1529, %v1549
      %v1596 = vmul.f32 %v1530, %v1548
      %v1597 = vmul.f32 %v1531, %v1549
      %v1598 = vmul.f32 %v1532, %v1548
      %v1599 = vmul.f32 %v1533, %v1549
      %v1600 = vmul.f32 %v1534, %v1548
      %v1601 = vmul.f32 %v1535, %v1549
      %v1602 = vmul.f32 %v1536, %v1548
      %v1603 = vmul.f32 %v1537, %v1549
      %v1604 = vmul.f32 %v1538, %v1548
      %v1605 = vmul.f32 %v1539, %v1549
      %v1606 = vmul.f32 %v1540, %v1548
      %v1607 = vmul.f32 %v1541, %v1549
      %v1608 = vmul.f32 %v1542, %v1548
      %v1609 = vmul.f32 %v1543, %v1549
      %v1610 = vmul.f32 %v1544, %v1548
      %v1611 = vmul.f32 %v1545, %v1549
      %v1612 = vmul.f32 %v1546, %v1548
      %v1613 = vmul.f32 %v1547, %v1549
      %v1614 = vperm.slane %v481, 1
      %v1615 = vperm.slane %v482, 1
      %v1616 = vadd.f32 %v1614, %v1292
      %v1617 = vadd.f32 %v1615, %v1293
      %v1618 = vadd.f32 %v1614, %v1294
      %v1619 = vadd.f32 %v1615, %v1295
      %v1620 = vadd.f32 %v1614, %v1296
      %v1621 = vadd.f32 %v1615, %v1297
      %v1622 = vadd.f32 %v1614, %v1298
      %v1623 = vadd.f32 %v1615, %v1299
      %v1624 = vadd.f32 %v1614, %v1300
      %v1625 = vadd.f32 %v1615, %v1301
      %v1626 = vadd.f32 %v1614, %v1302
      %v1627 = vadd.f32 %v1615, %v1303
      %v1628 = vadd.f32 %v1614, %v1304
      %v1629 = vadd.f32 %v1615, %v1305
      %v1630 = vadd.f32 %v1614, %v1306
      %v1631 = vadd.f32 %v1615, %v1307
      %v1632 = vadd.f32 %v1614, %v1308
      %v1633 = vadd.f32 %v1615, %v1309
      %v1634 = vadd.f32 %v1614, %v1310
      %v1635 = vadd.f32 %v1615, %v1311
      %v1636 = vadd.f32 %v1614, %v1312
      %v1637 = vadd.f32 %v1615, %v1313
      %v1638 = vadd.f32 %v1614, %v1314
      %v1639 = vadd.f32 %v1615, %v1315
      %v1640 = vadd.f32 %v1614, %v1316
      %v1641 = vadd.f32 %v1615, %v1317
      %v1642 = vadd.f32 %v1614, %v1318
      %v1643 = vadd.f32 %v1615, %v1319
      %v1644 = vadd.f32 %v1614, %v1320
      %v1645 = vadd.f32 %v1615, %v1321
      %v1646 = vadd.f32 %v1614, %v1322
      %v1647 = vadd.f32 %v1615, %v1323
      %v1648 = vadd.f32 %v1614, %v1324
      %v1649 = vadd.f32 %v1615, %v1325
      %v1650 = vadd.f32 %v1614, %v1326
      %v1651 = vadd.f32 %v1615, %v1327
      %v1652 = vadd.f32 %v1614, %v1328
      %v1653 = vadd.f32 %v1615, %v1329
      %v1654 = vadd.f32 %v1614, %v1330
      %v1655 = vadd.f32 %v1615, %v1331
      %v1656 = vadd.f32 %v1614, %v1332
      %v1657 = vadd.f32 %v1615, %v1333
      %v1658 = vadd.f32 %v1614, %v1334
      %v1659 = vadd.f32 %v1615, %v1335
      %v1660 = vadd.f32 %v1614, %v1336
      %v1661 = vadd.f32 %v1615, %v1337
      %v1662 = vadd.f32 %v1614, %v1338
      %v1663 = vadd.f32 %v1615, %v1339
      %v1664 = vadd.f32 %v1614, %v1340
      %v1665 = vadd.f32 %v1615, %v1341
      %v1666 = vadd.f32 %v1614, %v1342
      %v1667 = vadd.f32 %v1615, %v1343
      %v1668 = vadd.f32 %v1614, %v1344
      %v1669 = vadd.f32 %v1615, %v1345
      %v1670 = vadd.f32 %v1614, %v1346
      %v1671 = vadd.f32 %v1615, %v1347
      %v1672 = vadd.f32 %v1614, %v1348
      %v1673 = vadd.f32 %v1615, %v1349
      %v1674 = vadd.f32 %v1614, %v1350
      %v1675 = vadd.f32 %v1615, %v1351
      %v1676 = vadd.f32 %v1614, %v1352
      %v1677 = vadd.f32 %v1615, %v1353
      %v1678 = vadd.f32 %v1614, %v1354
      %v1679 = vadd.f32 %v1615, %v1355
      %1680 = vset.pattern.permute.xlu0 2
      %1681 = vperm.xlu0 %1680, %v449
      %v1682 = vpop.permute.xlu0 %1681
      %1684 = vset.pattern.permute.xlu0 2
      %1685 = vperm.xlu0 %1684, %v450
      %v1686 = vpop.permute.xlu0 %1685
      %1688 = vset.pattern.permute.xlu0 2
      %1689 = vperm.xlu0 %1688, %v451
      %v1690 = vpop.permute.xlu0 %1689
      %1692 = vset.pattern.permute.xlu0 2
      %1693 = vperm.xlu0 %1692, %v452
      %v1694 = vpop.permute.xlu0 %1693
      %1696 = vset.pattern.permute.xlu0 2
      %1697 = vperm.xlu0 %1696, %v453
      %v1698 = vpop.permute.xlu0 %1697
      %1700 = vset.pattern.permute.xlu0 2
      %1701 = vperm.xlu0 %1700, %v454
      %v1702 = vpop.permute.xlu0 %1701
      %1704 = vset.pattern.permute.xlu0 2
      %1705 = vperm.xlu0 %1704, %v455
      %v1706 = vpop.permute.xlu0 %1705
      %1708 = vset.pattern.permute.xlu0 2
      %1709 = vperm.xlu0 %1708, %v456
      %v1710 = vpop.permute.xlu0 %1709
      %1712 = vset.pattern.permute.xlu0 2
      %1713 = vperm.xlu0 %1712, %v457
      %v1714 = vpop.permute.xlu0 %1713
      %1716 = vset.pattern.permute.xlu0 2
      %1717 = vperm.xlu0 %1716, %v458
      %v1718 = vpop.permute.xlu0 %1717
      %1720 = vset.pattern.permute.xlu0 2
      %1721 = vperm.xlu0 %1720, %v459
      %v1722 = vpop.permute.xlu0 %1721
      %1724 = vset.pattern.permute.xlu0 2
      %1725 = vperm.xlu0 %1724, %v460
      %v1726 = vpop.permute.xlu0 %1725
      %1728 = vset.pattern.permute.xlu0 2
      %1729 = vperm.xlu0 %1728, %v461
      %v1730 = vpop.permute.xlu0 %1729
      %1732 = vset.pattern.permute.xlu0 2
      %1733 = vperm.xlu0 %1732, %v462
      %v1734 = vpop.permute.xlu0 %1733
      %1736 = vset.pattern.permute.xlu0 2
      %1737 = vperm.xlu0 %1736, %v463
      %v1738 = vpop.permute.xlu0 %1737
      %1740 = vset.pattern.permute.xlu0 2
      %1741 = vperm.xlu0 %1740, %v464
      %v1742 = vpop.permute.xlu0 %1741
      %1744 = vset.pattern.permute.xlu0 2
      %1745 = vperm.xlu0 %1744, %v465
      %v1746 = vpop.permute.xlu0 %1745
      %1748 = vset.pattern.permute.xlu0 2
      %1749 = vperm.xlu0 %1748, %v466
      %v1750 = vpop.permute.xlu0 %1749
      %1752 = vset.pattern.permute.xlu0 2
      %1753 = vperm.xlu0 %1752, %v467
      %v1754 = vpop.permute.xlu0 %1753
      %1756 = vset.pattern.permute.xlu0 2
      %1757 = vperm.xlu0 %1756, %v468
      %v1758 = vpop.permute.xlu0 %1757
      %1760 = vset.pattern.permute.xlu0 2
      %1761 = vperm.xlu0 %1760, %v469
      %v1762 = vpop.permute.xlu0 %1761
      %1764 = vset.pattern.permute.xlu0 2
      %1765 = vperm.xlu0 %1764, %v470
      %v1766 = vpop.permute.xlu0 %1765
      %1768 = vset.pattern.permute.xlu0 2
      %1769 = vperm.xlu0 %1768, %v471
      %v1770 = vpop.permute.xlu0 %1769
      %1772 = vset.pattern.permute.xlu0 2
      %1773 = vperm.xlu0 %1772, %v472
      %v1774 = vpop.permute.xlu0 %1773
      %1776 = vset.pattern.permute.xlu0 2
      %1777 = vperm.xlu0 %1776, %v473
      %v1778 = vpop.permute.xlu0 %1777
      %1780 = vset.pattern.permute.xlu0 2
      %1781 = vperm.xlu0 %1780, %v474
      %v1782 = vpop.permute.xlu0 %1781
      %1784 = vset.pattern.permute.xlu0 2
      %1785 = vperm.xlu0 %1784, %v475
      %v1786 = vpop.permute.xlu0 %1785
      %1788 = vset.pattern.permute.xlu0 2
      %1789 = vperm.xlu0 %1788, %v476
      %v1790 = vpop.permute.xlu0 %1789
      %1792 = vset.pattern.permute.xlu0 2
      %1793 = vperm.xlu0 %1792, %v477
      %v1794 = vpop.permute.xlu0 %1793
      %1796 = vset.pattern.permute.xlu0 2
      %1797 = vperm.xlu0 %1796, %v478
      %v1798 = vpop.permute.xlu0 %1797
      %1800 = vset.pattern.permute.xlu0 2
      %1801 = vperm.xlu0 %1800, %v479
      %v1802 = vpop.permute.xlu0 %1801
      %1804 = vset.pattern.permute.xlu0 2
      %1805 = vperm.xlu0 %1804, %v480
      %v1806 = vpop.permute.xlu0 %1805
      %v1808 = vmul.f32 %v1616, %v1682
      %v1809 = vmul.f32 %v1617, %v1682
      %v1810 = vmul.f32 %v1618, %v1686
      %v1811 = vmul.f32 %v1619, %v1686
      %v1812 = vmul.f32 %v1620, %v1690
      %v1813 = vmul.f32 %v1621, %v1690
      %v1814 = vmul.f32 %v1622, %v1694
      %v1815 = vmul.f32 %v1623, %v1694
      %v1816 = vmul.f32 %v1624, %v1698
      %v1817 = vmul.f32 %v1625, %v1698
      %v1818 = vmul.f32 %v1626, %v1702
      %v1819 = vmul.f32 %v1627, %v1702
      %v1820 = vmul.f32 %v1628, %v1706
      %v1821 = vmul.f32 %v1629, %v1706
      %v1822 = vmul.f32 %v1630, %v1710
      %v1823 = vmul.f32 %v1631, %v1710
      %v1824 = vmul.f32 %v1632, %v1714
      %v1825 = vmul.f32 %v1633, %v1714
      %v1826 = vmul.f32 %v1634, %v1718
      %v1827 = vmul.f32 %v1635, %v1718
      %v1828 = vmul.f32 %v1636, %v1722
      %v1829 = vmul.f32 %v1637, %v1722
      %v1830 = vmul.f32 %v1638, %v1726
      %v1831 = vmul.f32 %v1639, %v1726
      %v1832 = vmul.f32 %v1640, %v1730
      %v1833 = vmul.f32 %v1641, %v1730
      %v1834 = vmul.f32 %v1642, %v1734
      %v1835 = vmul.f32 %v1643, %v1734
      %v1836 = vmul.f32 %v1644, %v1738
      %v1837 = vmul.f32 %v1645, %v1738
      %v1838 = vmul.f32 %v1646, %v1742
      %v1839 = vmul.f32 %v1647, %v1742
      %v1840 = vmul.f32 %v1648, %v1746
      %v1841 = vmul.f32 %v1649, %v1746
      %v1842 = vmul.f32 %v1650, %v1750
      %v1843 = vmul.f32 %v1651, %v1750
      %v1844 = vmul.f32 %v1652, %v1754
      %v1845 = vmul.f32 %v1653, %v1754
      %v1846 = vmul.f32 %v1654, %v1758
      %v1847 = vmul.f32 %v1655, %v1758
      %v1848 = vmul.f32 %v1656, %v1762
      %v1849 = vmul.f32 %v1657, %v1762
      %v1850 = vmul.f32 %v1658, %v1766
      %v1851 = vmul.f32 %v1659, %v1766
      %v1852 = vmul.f32 %v1660, %v1770
      %v1853 = vmul.f32 %v1661, %v1770
      %v1854 = vmul.f32 %v1662, %v1774
      %v1855 = vmul.f32 %v1663, %v1774
      %v1856 = vmul.f32 %v1664, %v1778
      %v1857 = vmul.f32 %v1665, %v1778
      %v1858 = vmul.f32 %v1666, %v1782
      %v1859 = vmul.f32 %v1667, %v1782
      %v1860 = vmul.f32 %v1668, %v1786
      %v1861 = vmul.f32 %v1669, %v1786
      %v1862 = vmul.f32 %v1670, %v1790
      %v1863 = vmul.f32 %v1671, %v1790
      %v1864 = vmul.f32 %v1672, %v1794
      %v1865 = vmul.f32 %v1673, %v1794
      %v1866 = vmul.f32 %v1674, %v1798
      %v1867 = vmul.f32 %v1675, %v1798
      %v1868 = vmul.f32 %v1676, %v1802
      %v1869 = vmul.f32 %v1677, %v1802
      %v1870 = vmul.f32 %v1678, %v1806
      %v1871 = vmul.f32 %v1679, %v1806
      %v1872 = vadd.f32 %v1550, %v1808
      %v1873 = vadd.f32 %v1551, %v1809
      %v1874 = vadd.f32 %v1552, %v1810
      %v1875 = vadd.f32 %v1553, %v1811
      %v1876 = vadd.f32 %v1554, %v1812
      %v1877 = vadd.f32 %v1555, %v1813
      %v1878 = vadd.f32 %v1556, %v1814
      %v1879 = vadd.f32 %v1557, %v1815
      %v1880 = vadd.f32 %v1558, %v1816
      %v1881 = vadd.f32 %v1559, %v1817
      %v1882 = vadd.f32 %v1560, %v1818
      %v1883 = vadd.f32 %v1561, %v1819
      %v1884 = vadd.f32 %v1562, %v1820
      %v1885 = vadd.f32 %v1563, %v1821
      %v1886 = vadd.f32 %v1564, %v1822
      %v1887 = vadd.f32 %v1565, %v1823
      %v1888 = vadd.f32 %v1566, %v1824
      %v1889 = vadd.f32 %v1567, %v1825
      %v1890 = vadd.f32 %v1568, %v1826
      %v1891 = vadd.f32 %v1569, %v1827
      %v1892 = vadd.f32 %v1570, %v1828
      %v1893 = vadd.f32 %v1571, %v1829
      %v1894 = vadd.f32 %v1572, %v1830
      %v1895 = vadd.f32 %v1573, %v1831
      %v1896 = vadd.f32 %v1574, %v1832
      %v1897 = vadd.f32 %v1575, %v1833
      %v1898 = vadd.f32 %v1576, %v1834
      %v1899 = vadd.f32 %v1577, %v1835
      %v1900 = vadd.f32 %v1578, %v1836
      %v1901 = vadd.f32 %v1579, %v1837
      %v1902 = vadd.f32 %v1580, %v1838
      %v1903 = vadd.f32 %v1581, %v1839
      %v1904 = vadd.f32 %v1582, %v1840
      %v1905 = vadd.f32 %v1583, %v1841
      %v1906 = vadd.f32 %v1584, %v1842
      %v1907 = vadd.f32 %v1585, %v1843
      %v1908 = vadd.f32 %v1586, %v1844
      %v1909 = vadd.f32 %v1587, %v1845
      %v1910 = vadd.f32 %v1588, %v1846
      %v1911 = vadd.f32 %v1589, %v1847
      %v1912 = vadd.f32 %v1590, %v1848
      %v1913 = vadd.f32 %v1591, %v1849
      %v1914 = vadd.f32 %v1592, %v1850
      %v1915 = vadd.f32 %v1593, %v1851
      %v1916 = vadd.f32 %v1594, %v1852
      %v1917 = vadd.f32 %v1595, %v1853
      %v1918 = vadd.f32 %v1596, %v1854
      %v1919 = vadd.f32 %v1597, %v1855
      %v1920 = vadd.f32 %v1598, %v1856
      %v1921 = vadd.f32 %v1599, %v1857
      %v1922 = vadd.f32 %v1600, %v1858
      %v1923 = vadd.f32 %v1601, %v1859
      %v1924 = vadd.f32 %v1602, %v1860
      %v1925 = vadd.f32 %v1603, %v1861
      %v1926 = vadd.f32 %v1604, %v1862
      %v1927 = vadd.f32 %v1605, %v1863
      %v1928 = vadd.f32 %v1606, %v1864
      %v1929 = vadd.f32 %v1607, %v1865
      %v1930 = vadd.f32 %v1608, %v1866
      %v1931 = vadd.f32 %v1609, %v1867
      %v1932 = vadd.f32 %v1610, %v1868
      %v1933 = vadd.f32 %v1611, %v1869
      %v1934 = vadd.f32 %v1612, %v1870
      %v1935 = vadd.f32 %v1613, %v1871
      %v1936 = vsub.f32 %v1872, 0.5
      %v1937 = vsub.f32 %v1873, 0.5
      %v1938 = vsub.f32 %v1874, 0.5
      %v1939 = vsub.f32 %v1875, 0.5
      %v1940 = vsub.f32 %v1876, 0.5
      %v1941 = vsub.f32 %v1877, 0.5
      %v1942 = vsub.f32 %v1878, 0.5
      %v1943 = vsub.f32 %v1879, 0.5
      %v1944 = vsub.f32 %v1880, 0.5
      %v1945 = vsub.f32 %v1881, 0.5
      %v1946 = vsub.f32 %v1882, 0.5
      %v1947 = vsub.f32 %v1883, 0.5
      %v1948 = vsub.f32 %v1884, 0.5
      %v1949 = vsub.f32 %v1885, 0.5
      %v1950 = vsub.f32 %v1886, 0.5
      %v1951 = vsub.f32 %v1887, 0.5
      %v1952 = vsub.f32 %v1888, 0.5
      %v1953 = vsub.f32 %v1889, 0.5
      %v1954 = vsub.f32 %v1890, 0.5
      %v1955 = vsub.f32 %v1891, 0.5
      %v1956 = vsub.f32 %v1892, 0.5
      %v1957 = vsub.f32 %v1893, 0.5
      %v1958 = vsub.f32 %v1894, 0.5
      %v1959 = vsub.f32 %v1895, 0.5
      %v1960 = vsub.f32 %v1896, 0.5
      %v1961 = vsub.f32 %v1897, 0.5
      %v1962 = vsub.f32 %v1898, 0.5
      %v1963 = vsub.f32 %v1899, 0.5
      %v1964 = vsub.f32 %v1900, 0.5
      %v1965 = vsub.f32 %v1901, 0.5
      %v1966 = vsub.f32 %v1902, 0.5
      %v1967 = vsub.f32 %v1903, 0.5
      %v1968 = vsub.f32 %v1904, 0.5
      %v1969 = vsub.f32 %v1905, 0.5
      %v1970 = vsub.f32 %v1906, 0.5
      %v1971 = vsub.f32 %v1907, 0.5
      %v1972 = vsub.f32 %v1908, 0.5
      %v1973 = vsub.f32 %v1909, 0.5
      %v1974 = vsub.f32 %v1910, 0.5
      %v1975 = vsub.f32 %v1911, 0.5
      %v1976 = vsub.f32 %v1912, 0.5
      %v1977 = vsub.f32 %v1913, 0.5
      %v1978 = vsub.f32 %v1914, 0.5
      %v1979 = vsub.f32 %v1915, 0.5
      %v1980 = vsub.f32 %v1916, 0.5
      %v1981 = vsub.f32 %v1917, 0.5
      %v1982 = vsub.f32 %v1918, 0.5
      %v1983 = vsub.f32 %v1919, 0.5
      %v1984 = vsub.f32 %v1920, 0.5
      %v1985 = vsub.f32 %v1921, 0.5
      %v1986 = vsub.f32 %v1922, 0.5
      %v1987 = vsub.f32 %v1923, 0.5
      %v1988 = vsub.f32 %v1924, 0.5
      %v1989 = vsub.f32 %v1925, 0.5
      %v1990 = vsub.f32 %v1926, 0.5
      %v1991 = vsub.f32 %v1927, 0.5
      %v1992 = vsub.f32 %v1928, 0.5
      %v1993 = vsub.f32 %v1929, 0.5
      %v1994 = vsub.f32 %v1930, 0.5
      %v1995 = vsub.f32 %v1931, 0.5
      %v1996 = vsub.f32 %v1932, 0.5
      %v1997 = vsub.f32 %v1933, 0.5
      %v1998 = vsub.f32 %v1934, 0.5
      %v1999 = vsub.f32 %v1935, 0.5
      %v2000 = vmul.f32 %v1034, 2.0
      %v2001 = vmul.f32 %v1035, 2.0
      %v2002 = vmul.f32 %v1036, 2.0
      %v2003 = vmul.f32 %v1037, 2.0
      %v2004 = vmul.f32 %v1038, 2.0
      %v2005 = vmul.f32 %v1039, 2.0
      %v2006 = vmul.f32 %v1040, 2.0
      %v2007 = vmul.f32 %v1041, 2.0
      %v2008 = vmul.f32 %v1042, 2.0
      %v2009 = vmul.f32 %v1043, 2.0
      %v2010 = vmul.f32 %v1044, 2.0
      %v2011 = vmul.f32 %v1045, 2.0
      %v2012 = vmul.f32 %v1046, 2.0
      %v2013 = vmul.f32 %v1047, 2.0
      %v2014 = vmul.f32 %v1048, 2.0
      %v2015 = vmul.f32 %v1049, 2.0
      %v2016 = vmul.f32 %v1050, 2.0
      %v2017 = vmul.f32 %v1051, 2.0
      %v2018 = vmul.f32 %v1052, 2.0
      %v2019 = vmul.f32 %v1053, 2.0
      %v2020 = vmul.f32 %v1054, 2.0
      %v2021 = vmul.f32 %v1055, 2.0
      %v2022 = vmul.f32 %v1056, 2.0
      %v2023 = vmul.f32 %v1057, 2.0
      %v2024 = vmul.f32 %v1058, 2.0
      %v2025 = vmul.f32 %v1059, 2.0
      %v2026 = vmul.f32 %v1060, 2.0
      %v2027 = vmul.f32 %v1061, 2.0
      %v2028 = vmul.f32 %v1062, 2.0
      %v2029 = vmul.f32 %v1063, 2.0
      %v2030 = vmul.f32 %v1064, 2.0
      %v2031 = vmul.f32 %v1065, 2.0
      %v2032 = vmul.f32 %v1066, 2.0
      %v2033 = vmul.f32 %v1067, 2.0
      %v2034 = vmul.f32 %v1068, 2.0
      %v2035 = vmul.f32 %v1069, 2.0
      %v2036 = vmul.f32 %v1070, 2.0
      %v2037 = vmul.f32 %v1071, 2.0
      %v2038 = vmul.f32 %v1072, 2.0
      %v2039 = vmul.f32 %v1073, 2.0
      %v2040 = vmul.f32 %v1074, 2.0
      %v2041 = vmul.f32 %v1075, 2.0
      %v2042 = vmul.f32 %v1076, 2.0
      %v2043 = vmul.f32 %v1077, 2.0
      %v2044 = vmul.f32 %v1078, 2.0
      %v2045 = vmul.f32 %v1079, 2.0
      %v2046 = vmul.f32 %v1080, 2.0
      %v2047 = vmul.f32 %v1081, 2.0
      %v2048 = vmul.f32 %v1082, 2.0
      %v2049 = vmul.f32 %v1083, 2.0
      %v2050 = vmul.f32 %v1084, 2.0
      %v2051 = vmul.f32 %v1085, 2.0
      %v2052 = vmul.f32 %v1086, 2.0
      %v2053 = vmul.f32 %v1087, 2.0
      %v2054 = vmul.f32 %v1088, 2.0
      %v2055 = vmul.f32 %v1089, 2.0
      %v2056 = vmul.f32 %v1090, 2.0
      %v2057 = vmul.f32 %v1091, 2.0
      %v2058 = vmul.f32 %v1092, 2.0
      %v2059 = vmul.f32 %v1093, 2.0
      %v2060 = vmul.f32 %v1094, 2.0
      %v2061 = vmul.f32 %v1095, 2.0
      %v2062 = vmul.f32 %v1096, 2.0
      %v2063 = vmul.f32 %v1097, 2.0
      %v2064 = vsub.f32 2.0, %v2000
      %v2065 = vsub.f32 2.0, %v2001
      %v2066 = vsub.f32 2.0, %v2002
      %v2067 = vsub.f32 2.0, %v2003
      %v2068 = vsub.f32 2.0, %v2004
      %v2069 = vsub.f32 2.0, %v2005
      %v2070 = vsub.f32 2.0, %v2006
      %v2071 = vsub.f32 2.0, %v2007
      %v2072 = vsub.f32 2.0, %v2008
      %v2073 = vsub.f32 2.0, %v2009
      %v2074 = vsub.f32 2.0, %v2010
      %v2075 = vsub.f32 2.0, %v2011
      %v2076 = vsub.f32 2.0, %v2012
      %v2077 = vsub.f32 2.0, %v2013
      %v2078 = vsub.f32 2.0, %v2014
      %v2079 = vsub.f32 2.0, %v2015
      %v2080 = vsub.f32 2.0, %v2016
      %v2081 = vsub.f32 2.0, %v2017
      %v2082 = vsub.f32 2.0, %v2018
      %v2083 = vsub.f32 2.0, %v2019
      %v2084 = vsub.f32 2.0, %v2020
      %v2085 = vsub.f32 2.0, %v2021
      %v2086 = vsub.f32 2.0, %v2022
      %v2087 = vsub.f32 2.0, %v2023
      %v2088 = vsub.f32 2.0, %v2024
      %v2089 = vsub.f32 2.0, %v2025
      %v2090 = vsub.f32 2.0, %v2026
      %v2091 = vsub.f32 2.0, %v2027
      %v2092 = vsub.f32 2.0, %v2028
      %v2093 = vsub.f32 2.0, %v2029
      %v2094 = vsub.f32 2.0, %v2030
      %v2095 = vsub.f32 2.0, %v2031
      %v2096 = vsub.f32 2.0, %v2032
      %v2097 = vsub.f32 2.0, %v2033
      %v2098 = vsub.f32 2.0, %v2034
      %v2099 = vsub.f32 2.0, %v2035
      %v2100 = vsub.f32 2.0, %v2036
      %v2101 = vsub.f32 2.0, %v2037
      %v2102 = vsub.f32 2.0, %v2038
      %v2103 = vsub.f32 2.0, %v2039
      %v2104 = vsub.f32 2.0, %v2040
      %v2105 = vsub.f32 2.0, %v2041
      %v2106 = vsub.f32 2.0, %v2042
      %v2107 = vsub.f32 2.0, %v2043
      %v2108 = vsub.f32 2.0, %v2044
      %v2109 = vsub.f32 2.0, %v2045
      %v2110 = vsub.f32 2.0, %v2046
      %v2111 = vsub.f32 2.0, %v2047
      %v2112 = vsub.f32 2.0, %v2048
      %v2113 = vsub.f32 2.0, %v2049
      %v2114 = vsub.f32 2.0, %v2050
      %v2115 = vsub.f32 2.0, %v2051
      %v2116 = vsub.f32 2.0, %v2052
      %v2117 = vsub.f32 2.0, %v2053
      %v2118 = vsub.f32 2.0, %v2054
      %v2119 = vsub.f32 2.0, %v2055
      %v2120 = vsub.f32 2.0, %v2056
      %v2121 = vsub.f32 2.0, %v2057
      %v2122 = vsub.f32 2.0, %v2058
      %v2123 = vsub.f32 2.0, %v2059
      %v2124 = vsub.f32 2.0, %v2060
      %v2125 = vsub.f32 2.0, %v2061
      %v2126 = vsub.f32 2.0, %v2062
      %v2127 = vsub.f32 2.0, %v2063
      %v2128 = vadd.f32 %v1936, %v2064
      %v2129 = vadd.f32 %v1937, %v2065
      %v2130 = vadd.f32 %v1938, %v2066
      %v2131 = vadd.f32 %v1939, %v2067
      %v2132 = vadd.f32 %v1940, %v2068
      %v2133 = vadd.f32 %v1941, %v2069
      %v2134 = vadd.f32 %v1942, %v2070
      %v2135 = vadd.f32 %v1943, %v2071
      %v2136 = vadd.f32 %v1944, %v2072
      %v2137 = vadd.f32 %v1945, %v2073
      %v2138 = vadd.f32 %v1946, %v2074
      %v2139 = vadd.f32 %v1947, %v2075
      %v2140 = vadd.f32 %v1948, %v2076
      %v2141 = vadd.f32 %v1949, %v2077
      %v2142 = vadd.f32 %v1950, %v2078
      %v2143 = vadd.f32 %v1951, %v2079
      %v2144 = vadd.f32 %v1952, %v2080
      %v2145 = vadd.f32 %v1953, %v2081
      %v2146 = vadd.f32 %v1954, %v2082
      %v2147 = vadd.f32 %v1955, %v2083
      %v2148 = vadd.f32 %v1956, %v2084
      %v2149 = vadd.f32 %v1957, %v2085
      %v2150 = vadd.f32 %v1958, %v2086
      %v2151 = vadd.f32 %v1959, %v2087
      %v2152 = vadd.f32 %v1960, %v2088
      %v2153 = vadd.f32 %v1961, %v2089
      %v2154 = vadd.f32 %v1962, %v2090
      %v2155 = vadd.f32 %v1963, %v2091
      %v2156 = vadd.f32 %v1964, %v2092
      %v2157 = vadd.f32 %v1965, %v2093
      %v2158 = vadd.f32 %v1966, %v2094
      %v2159 = vadd.f32 %v1967, %v2095
      %v2160 = vadd.f32 %v1968, %v2096
      %v2161 = vadd.f32 %v1969, %v2097
      %v2162 = vadd.f32 %v1970, %v2098
      %v2163 = vadd.f32 %v1971, %v2099
      %v2164 = vadd.f32 %v1972, %v2100
      %v2165 = vadd.f32 %v1973, %v2101
      %v2166 = vadd.f32 %v1974, %v2102
      %v2167 = vadd.f32 %v1975, %v2103
      %v2168 = vadd.f32 %v1976, %v2104
      %v2169 = vadd.f32 %v1977, %v2105
      %v2170 = vadd.f32 %v1978, %v2106
      %v2171 = vadd.f32 %v1979, %v2107
      %v2172 = vadd.f32 %v1980, %v2108
      %v2173 = vadd.f32 %v1981, %v2109
      %v2174 = vadd.f32 %v1982, %v2110
      %v2175 = vadd.f32 %v1983, %v2111
      %v2176 = vadd.f32 %v1984, %v2112
      %v2177 = vadd.f32 %v1985, %v2113
      %v2178 = vadd.f32 %v1986, %v2114
      %v2179 = vadd.f32 %v1987, %v2115
      %v2180 = vadd.f32 %v1988, %v2116
      %v2181 = vadd.f32 %v1989, %v2117
      %v2182 = vadd.f32 %v1990, %v2118
      %v2183 = vadd.f32 %v1991, %v2119
      %v2184 = vadd.f32 %v1992, %v2120
      %v2185 = vadd.f32 %v1993, %v2121
      %v2186 = vadd.f32 %v1994, %v2122
      %v2187 = vadd.f32 %v1995, %v2123
      %v2188 = vadd.f32 %v1996, %v2124
      %v2189 = vadd.f32 %v1997, %v2125
      %v2190 = vadd.f32 %v1998, %v2126
      %v2191 = vadd.f32 %v1999, %v2127
      %v2192 = vmul.f32 %v2128, 0.33333334
      %v2193 = vmul.f32 %v2129, 0.33333334
      %v2194 = vmul.f32 %v2130, 0.33333334
      %v2195 = vmul.f32 %v2131, 0.33333334
      %v2196 = vmul.f32 %v2132, 0.33333334
      %v2197 = vmul.f32 %v2133, 0.33333334
      %v2198 = vmul.f32 %v2134, 0.33333334
      %v2199 = vmul.f32 %v2135, 0.33333334
      %v2200 = vmul.f32 %v2136, 0.33333334
      %v2201 = vmul.f32 %v2137, 0.33333334
      %v2202 = vmul.f32 %v2138, 0.33333334
      %v2203 = vmul.f32 %v2139, 0.33333334
      %v2204 = vmul.f32 %v2140, 0.33333334
      %v2205 = vmul.f32 %v2141, 0.33333334
      %v2206 = vmul.f32 %v2142, 0.33333334
      %v2207 = vmul.f32 %v2143, 0.33333334
      %v2208 = vmul.f32 %v2144, 0.33333334
      %v2209 = vmul.f32 %v2145, 0.33333334
      %v2210 = vmul.f32 %v2146, 0.33333334
      %v2211 = vmul.f32 %v2147, 0.33333334
      %v2212 = vmul.f32 %v2148, 0.33333334
      %v2213 = vmul.f32 %v2149, 0.33333334
      %v2214 = vmul.f32 %v2150, 0.33333334
      %v2215 = vmul.f32 %v2151, 0.33333334
      %v2216 = vmul.f32 %v2152, 0.33333334
      %v2217 = vmul.f32 %v2153, 0.33333334
      %v2218 = vmul.f32 %v2154, 0.33333334
      %v2219 = vmul.f32 %v2155, 0.33333334
      %v2220 = vmul.f32 %v2156, 0.33333334
      %v2221 = vmul.f32 %v2157, 0.33333334
      %v2222 = vmul.f32 %v2158, 0.33333334
      %v2223 = vmul.f32 %v2159, 0.33333334
      %v2224 = vmul.f32 %v2160, 0.33333334
      %v2225 = vmul.f32 %v2161, 0.33333334
      %v2226 = vmul.f32 %v2162, 0.33333334
      %v2227 = vmul.f32 %v2163, 0.33333334
      %v2228 = vmul.f32 %v2164, 0.33333334
      %v2229 = vmul.f32 %v2165, 0.33333334
      %v2230 = vmul.f32 %v2166, 0.33333334
      %v2231 = vmul.f32 %v2167, 0.33333334
      %v2232 = vmul.f32 %v2168, 0.33333334
      %v2233 = vmul.f32 %v2169, 0.33333334
      %v2234 = vmul.f32 %v2170, 0.33333334
      %v2235 = vmul.f32 %v2171, 0.33333334
      %v2236 = vmul.f32 %v2172, 0.33333334
      %v2237 = vmul.f32 %v2173, 0.33333334
      %v2238 = vmul.f32 %v2174, 0.33333334
      %v2239 = vmul.f32 %v2175, 0.33333334
      %v2240 = vmul.f32 %v2176, 0.33333334
      %v2241 = vmul.f32 %v2177, 0.33333334
      %v2242 = vmul.f32 %v2178, 0.33333334
      %v2243 = vmul.f32 %v2179, 0.33333334
      %v2244 = vmul.f32 %v2180, 0.33333334
      %v2245 = vmul.f32 %v2181, 0.33333334
      %v2246 = vmul.f32 %v2182, 0.33333334
      %v2247 = vmul.f32 %v2183, 0.33333334
      %v2248 = vmul.f32 %v2184, 0.33333334
      %v2249 = vmul.f32 %v2185, 0.33333334
      %v2250 = vmul.f32 %v2186, 0.33333334
      %v2251 = vmul.f32 %v2187, 0.33333334
      %v2252 = vmul.f32 %v2188, 0.33333334
      %v2253 = vmul.f32 %v2189, 0.33333334
      %v2254 = vmul.f32 %v2190, 0.33333334
      %v2255 = vmul.f32 %v2191, 0.33333334
      %v2256 = vmul.f32 %v2192, %v2192
      %v2257 = vmul.f32 %v2193, %v2193
      %v2258 = vmul.f32 %v2194, %v2194
      %v2259 = vmul.f32 %v2195, %v2195
      %v2260 = vmul.f32 %v2196, %v2196
      %v2261 = vmul.f32 %v2197, %v2197
      %v2262 = vmul.f32 %v2198, %v2198
      %v2263 = vmul.f32 %v2199, %v2199
      %v2264 = vmul.f32 %v2200, %v2200
      %v2265 = vmul.f32 %v2201, %v2201
      %v2266 = vmul.f32 %v2202, %v2202
      %v2267 = vmul.f32 %v2203, %v2203
      %v2268 = vmul.f32 %v2204, %v2204
      %v2269 = vmul.f32 %v2205, %v2205
      %v2270 = vmul.f32 %v2206, %v2206
      %v2271 = vmul.f32 %v2207, %v2207
      %v2272 = vmul.f32 %v2208, %v2208
      %v2273 = vmul.f32 %v2209, %v2209
      %v2274 = vmul.f32 %v2210, %v2210
      %v2275 = vmul.f32 %v2211, %v2211
      %v2276 = vmul.f32 %v2212, %v2212
      %v2277 = vmul.f32 %v2213, %v2213
      %v2278 = vmul.f32 %v2214, %v2214
      %v2279 = vmul.f32 %v2215, %v2215
      %v2280 = vmul.f32 %v2216, %v2216
      %v2281 = vmul.f32 %v2217, %v2217
      %v2282 = vmul.f32 %v2218, %v2218
      %v2283 = vmul.f32 %v2219, %v2219
      %v2284 = vmul.f32 %v2220, %v2220
      %v2285 = vmul.f32 %v2221, %v2221
      %v2286 = vmul.f32 %v2222, %v2222
      %v2287 = vmul.f32 %v2223, %v2223
      %v2288 = vmul.f32 %v2224, %v2224
      %v2289 = vmul.f32 %v2225, %v2225
      %v2290 = vmul.f32 %v2226, %v2226
      %v2291 = vmul.f32 %v2227, %v2227
      %v2292 = vmul.f32 %v2228, %v2228
      %v2293 = vmul.f32 %v2229, %v2229
      %v2294 = vmul.f32 %v2230, %v2230
      %v2295 = vmul.f32 %v2231, %v2231
      %v2296 = vmul.f32 %v2232, %v2232
      %v2297 = vmul.f32 %v2233, %v2233
      %v2298 = vmul.f32 %v2234, %v2234
      %v2299 = vmul.f32 %v2235, %v2235
      %v2300 = vmul.f32 %v2236, %v2236
      %v2301 = vmul.f32 %v2237, %v2237
      %v2302 = vmul.f32 %v2238, %v2238
      %v2303 = vmul.f32 %v2239, %v2239
      %v2304 = vmul.f32 %v2240, %v2240
      %v2305 = vmul.f32 %v2241, %v2241
      %v2306 = vmul.f32 %v2242, %v2242
      %v2307 = vmul.f32 %v2243, %v2243
      %v2308 = vmul.f32 %v2244, %v2244
      %v2309 = vmul.f32 %v2245, %v2245
      %v2310 = vmul.f32 %v2246, %v2246
      %v2311 = vmul.f32 %v2247, %v2247
      %v2312 = vmul.f32 %v2248, %v2248
      %v2313 = vmul.f32 %v2249, %v2249
      %v2314 = vmul.f32 %v2250, %v2250
      %v2315 = vmul.f32 %v2251, %v2251
      %v2316 = vmul.f32 %v2252, %v2252
      %v2317 = vmul.f32 %v2253, %v2253
      %v2318 = vmul.f32 %v2254, %v2254
      %v2319 = vmul.f32 %v2255, %v2255
      %v2320 = vsub.f32 0.0, %v2256
      %v2321 = vsub.f32 0.0, %v2257
      %v2322 = vsub.f32 0.0, %v2258
      %v2323 = vsub.f32 0.0, %v2259
      %v2324 = vsub.f32 0.0, %v2260
      %v2325 = vsub.f32 0.0, %v2261
      %v2326 = vsub.f32 0.0, %v2262
      %v2327 = vsub.f32 0.0, %v2263
      %v2328 = vsub.f32 0.0, %v2264
      %v2329 = vsub.f32 0.0, %v2265
      %v2330 = vsub.f32 0.0, %v2266
      %v2331 = vsub.f32 0.0, %v2267
      %v2332 = vsub.f32 0.0, %v2268
      %v2333 = vsub.f32 0.0, %v2269
      %v2334 = vsub.f32 0.0, %v2270
      %v2335 = vsub.f32 0.0, %v2271
      %v2336 = vsub.f32 0.0, %v2272
      %v2337 = vsub.f32 0.0, %v2273
      %v2338 = vsub.f32 0.0, %v2274
      %v2339 = vsub.f32 0.0, %v2275
      %v2340 = vsub.f32 0.0, %v2276
      %v2341 = vsub.f32 0.0, %v2277
      %v2342 = vsub.f32 0.0, %v2278
      %v2343 = vsub.f32 0.0, %v2279
      %v2344 = vsub.f32 0.0, %v2280
      %v2345 = vsub.f32 0.0, %v2281
      %v2346 = vsub.f32 0.0, %v2282
      %v2347 = vsub.f32 0.0, %v2283
      %v2348 = vsub.f32 0.0, %v2284
      %v2349 = vsub.f32 0.0, %v2285
      %v2350 = vsub.f32 0.0, %v2286
      %v2351 = vsub.f32 0.0, %v2287
      %v2352 = vsub.f32 0.0, %v2288
      %v2353 = vsub.f32 0.0, %v2289
      %v2354 = vsub.f32 0.0, %v2290
      %v2355 = vsub.f32 0.0, %v2291
      %v2356 = vsub.f32 0.0, %v2292
      %v2357 = vsub.f32 0.0, %v2293
      %v2358 = vsub.f32 0.0, %v2294
      %v2359 = vsub.f32 0.0, %v2295
      %v2360 = vsub.f32 0.0, %v2296
      %v2361 = vsub.f32 0.0, %v2297
      %v2362 = vsub.f32 0.0, %v2298
      %v2363 = vsub.f32 0.0, %v2299
      %v2364 = vsub.f32 0.0, %v2300
      %v2365 = vsub.f32 0.0, %v2301
      %v2366 = vsub.f32 0.0, %v2302
      %v2367 = vsub.f32 0.0, %v2303
      %v2368 = vsub.f32 0.0, %v2304
      %v2369 = vsub.f32 0.0, %v2305
      %v2370 = vsub.f32 0.0, %v2306
      %v2371 = vsub.f32 0.0, %v2307
      %v2372 = vsub.f32 0.0, %v2308
      %v2373 = vsub.f32 0.0, %v2309
      %v2374 = vsub.f32 0.0, %v2310
      %v2375 = vsub.f32 0.0, %v2311
      %v2376 = vsub.f32 0.0, %v2312
      %v2377 = vsub.f32 0.0, %v2313
      %v2378 = vsub.f32 0.0, %v2314
      %v2379 = vsub.f32 0.0, %v2315
      %v2380 = vsub.f32 0.0, %v2316
      %v2381 = vsub.f32 0.0, %v2317
      %v2382 = vsub.f32 0.0, %v2318
      %v2383 = vsub.f32 0.0, %v2319
      %v2384 = vmul.f32 %v2320, 4.0
      %v2385 = vmul.f32 %v2321, 4.0
      %v2386 = vmul.f32 %v2322, 4.0
      %v2387 = vmul.f32 %v2323, 4.0
      %v2388 = vmul.f32 %v2324, 4.0
      %v2389 = vmul.f32 %v2325, 4.0
      %v2390 = vmul.f32 %v2326, 4.0
      %v2391 = vmul.f32 %v2327, 4.0
      %v2392 = vmul.f32 %v2328, 4.0
      %v2393 = vmul.f32 %v2329, 4.0
      %v2394 = vmul.f32 %v2330, 4.0
      %v2395 = vmul.f32 %v2331, 4.0
      %v2396 = vmul.f32 %v2332, 4.0
      %v2397 = vmul.f32 %v2333, 4.0
      %v2398 = vmul.f32 %v2334, 4.0
      %v2399 = vmul.f32 %v2335, 4.0
      %v2400 = vmul.f32 %v2336, 4.0
      %v2401 = vmul.f32 %v2337, 4.0
      %v2402 = vmul.f32 %v2338, 4.0
      %v2403 = vmul.f32 %v2339, 4.0
      %v2404 = vmul.f32 %v2340, 4.0
      %v2405 = vmul.f32 %v2341, 4.0
      %v2406 = vmul.f32 %v2342, 4.0
      %v2407 = vmul.f32 %v2343, 4.0
      %v2408 = vmul.f32 %v2344, 4.0
      %v2409 = vmul.f32 %v2345, 4.0
      %v2410 = vmul.f32 %v2346, 4.0
      %v2411 = vmul.f32 %v2347, 4.0
      %v2412 = vmul.f32 %v2348, 4.0
      %v2413 = vmul.f32 %v2349, 4.0
      %v2414 = vmul.f32 %v2350, 4.0
      %v2415 = vmul.f32 %v2351, 4.0
      %v2416 = vmul.f32 %v2352, 4.0
      %v2417 = vmul.f32 %v2353, 4.0
      %v2418 = vmul.f32 %v2354, 4.0
      %v2419 = vmul.f32 %v2355, 4.0
      %v2420 = vmul.f32 %v2356, 4.0
      %v2421 = vmul.f32 %v2357, 4.0
      %v2422 = vmul.f32 %v2358, 4.0
      %v2423 = vmul.f32 %v2359, 4.0
      %v2424 = vmul.f32 %v2360, 4.0
      %v2425 = vmul.f32 %v2361, 4.0
      %v2426 = vmul.f32 %v2362, 4.0
      %v2427 = vmul.f32 %v2363, 4.0
      %v2428 = vmul.f32 %v2364, 4.0
      %v2429 = vmul.f32 %v2365, 4.0
      %v2430 = vmul.f32 %v2366, 4.0
      %v2431 = vmul.f32 %v2367, 4.0
      %v2432 = vmul.f32 %v2368, 4.0
      %v2433 = vmul.f32 %v2369, 4.0
      %v2434 = vmul.f32 %v2370, 4.0
      %v2435 = vmul.f32 %v2371, 4.0
      %v2436 = vmul.f32 %v2372, 4.0
      %v2437 = vmul.f32 %v2373, 4.0
      %v2438 = vmul.f32 %v2374, 4.0
      %v2439 = vmul.f32 %v2375, 4.0
      %v2440 = vmul.f32 %v2376, 4.0
      %v2441 = vmul.f32 %v2377, 4.0
      %v2442 = vmul.f32 %v2378, 4.0
      %v2443 = vmul.f32 %v2379, 4.0
      %v2444 = vmul.f32 %v2380, 4.0
      %v2445 = vmul.f32 %v2381, 4.0
      %v2446 = vmul.f32 %v2382, 4.0
      %v2447 = vmul.f32 %v2383, 4.0
      %v2448 = vmul.f32 %v2384, 1.442695
      %v2449 = vpow.pop %v2448
      %v2450 = vmul.f32 %v2385, 1.442695
      %v2451 = vpow.pop %v2450
      %v2452 = vmul.f32 %v2386, 1.442695
      %v2453 = vpow.pop %v2452
      %v2454 = vmul.f32 %v2387, 1.442695
      %v2455 = vpow.pop %v2454
      %v2456 = vmul.f32 %v2388, 1.442695
      %v2457 = vpow.pop %v2456
      %v2458 = vmul.f32 %v2389, 1.442695
      %v2459 = vpow.pop %v2458
      %v2460 = vmul.f32 %v2390, 1.442695
      %v2461 = vpow.pop %v2460
      %v2462 = vmul.f32 %v2391, 1.442695
      %v2463 = vpow.pop %v2462
      %v2464 = vmul.f32 %v2392, 1.442695
      %v2465 = vpow.pop %v2464
      %v2466 = vmul.f32 %v2393, 1.442695
      %v2467 = vpow.pop %v2466
      %v2468 = vmul.f32 %v2394, 1.442695
      %v2469 = vpow.pop %v2468
      %v2470 = vmul.f32 %v2395, 1.442695
      %v2471 = vpow.pop %v2470
      %v2472 = vmul.f32 %v2396, 1.442695
      %v2473 = vpow.pop %v2472
      %v2474 = vmul.f32 %v2397, 1.442695
      %v2475 = vpow.pop %v2474
      %v2476 = vmul.f32 %v2398, 1.442695
      %v2477 = vpow.pop %v2476
      %v2478 = vmul.f32 %v2399, 1.442695
      %v2479 = vpow.pop %v2478
      %v2480 = vmul.f32 %v2400, 1.442695
      %v2481 = vpow.pop %v2480
      %v2482 = vmul.f32 %v2401, 1.442695
      %v2483 = vpow.pop %v2482
      %v2484 = vmul.f32 %v2402, 1.442695
      %v2485 = vpow.pop %v2484
      %v2486 = vmul.f32 %v2403, 1.442695
      %v2487 = vpow.pop %v2486
      %v2488 = vmul.f32 %v2404, 1.442695
      %v2489 = vpow.pop %v2488
      %v2490 = vmul.f32 %v2405, 1.442695
      %v2491 = vpow.pop %v2490
      %v2492 = vmul.f32 %v2406, 1.442695
      %v2493 = vpow.pop %v2492
      %v2494 = vmul.f32 %v2407, 1.442695
      %v2495 = vpow.pop %v2494
      %v2496 = vmul.f32 %v2408, 1.442695
      %v2497 = vpow.pop %v2496
      %v2498 = vmul.f32 %v2409, 1.442695
      %v2499 = vpow.pop %v2498
      %v2500 = vmul.f32 %v2410, 1.442695
      %v2501 = vpow.pop %v2500
      %v2502 = vmul.f32 %v2411, 1.442695
      %v2503 = vpow.pop %v2502
      %v2504 = vmul.f32 %v2412, 1.442695
      %v2505 = vpow.pop %v2504
      %v2506 = vmul.f32 %v2413, 1.442695
      %v2507 = vpow.pop %v2506
      %v2508 = vmul.f32 %v2414, 1.442695
      %v2509 = vpow.pop %v2508
      %v2510 = vmul.f32 %v2415, 1.442695
      %v2511 = vpow.pop %v2510
      %v2512 = vmul.f32 %v2416, 1.442695
      %v2513 = vpow.pop %v2512
      %v2514 = vmul.f32 %v2417, 1.442695
      %v2515 = vpow.pop %v2514
      %v2516 = vmul.f32 %v2418, 1.442695
      %v2517 = vpow.pop %v2516
      %v2518 = vmul.f32 %v2419, 1.442695
      %v2519 = vpow.pop %v2518
      %v2520 = vmul.f32 %v2420, 1.442695
      %v2521 = vpow.pop %v2520
      %v2522 = vmul.f32 %v2421, 1.442695
      %v2523 = vpow.pop %v2522
      %v2524 = vmul.f32 %v2422, 1.442695
      %v2525 = vpow.pop %v2524
      %v2526 = vmul.f32 %v2423, 1.442695
      %v2527 = vpow.pop %v2526
      %v2528 = vmul.f32 %v2424, 1.442695
      %v2529 = vpow.pop %v2528
      %v2530 = vmul.f32 %v2425, 1.442695
      %v2531 = vpow.pop %v2530
      %v2532 = vmul.f32 %v2426, 1.442695
      %v2533 = vpow.pop %v2532
      %v2534 = vmul.f32 %v2427, 1.442695
      %v2535 = vpow.pop %v2534
      %v2536 = vmul.f32 %v2428, 1.442695
      %v2537 = vpow.pop %v2536
      %v2538 = vmul.f32 %v2429, 1.442695
      %v2539 = vpow.pop %v2538
      %v2540 = vmul.f32 %v2430, 1.442695
      %v2541 = vpow.pop %v2540
      %v2542 = vmul.f32 %v2431, 1.442695
      %v2543 = vpow.pop %v2542
      %v2544 = vmul.f32 %v2432, 1.442695
      %v2545 = vpow.pop %v2544
      %v2546 = vmul.f32 %v2433, 1.442695
      %v2547 = vpow.pop %v2546
      %v2548 = vmul.f32 %v2434, 1.442695
      %v2549 = vpow.pop %v2548
      %v2550 = vmul.f32 %v2435, 1.442695
      %v2551 = vpow.pop %v2550
      %v2552 = vmul.f32 %v2436, 1.442695
      %v2553 = vpow.pop %v2552
      %v2554 = vmul.f32 %v2437, 1.442695
      %v2555 = vpow.pop %v2554
      %v2556 = vmul.f32 %v2438, 1.442695
      %v2557 = vpow.pop %v2556
      %v2558 = vmul.f32 %v2439, 1.442695
      %v2559 = vpow.pop %v2558
      %v2560 = vmul.f32 %v2440, 1.442695
      %v2561 = vpow.pop %v2560
      %v2562 = vmul.f32 %v2441, 1.442695
      %v2563 = vpow.pop %v2562
      %v2564 = vmul.f32 %v2442, 1.442695
      %v2565 = vpow.pop %v2564
      %v2566 = vmul.f32 %v2443, 1.442695
      %v2567 = vpow.pop %v2566
      %v2568 = vmul.f32 %v2444, 1.442695
      %v2569 = vpow.pop %v2568
      %v2570 = vmul.f32 %v2445, 1.442695
      %v2571 = vpow.pop %v2570
      %v2572 = vmul.f32 %v2446, 1.442695
      %v2573 = vpow.pop %v2572
      %v2574 = vmul.f32 %v2447, 1.442695
      %v2575 = vpow.pop %v2574
      %2576 = vset.pattern.permute.xlu0 4
      %2577 = vperm.xlu0 %2576, %v449
      %v2578 = vpop.permute.xlu0 %2577
      %2580 = vset.pattern.permute.xlu0 4
      %2581 = vperm.xlu0 %2580, %v450
      %v2582 = vpop.permute.xlu0 %2581
      %2584 = vset.pattern.permute.xlu0 4
      %2585 = vperm.xlu0 %2584, %v451
      %v2586 = vpop.permute.xlu0 %2585
      %2588 = vset.pattern.permute.xlu0 4
      %2589 = vperm.xlu0 %2588, %v452
      %v2590 = vpop.permute.xlu0 %2589
      %2592 = vset.pattern.permute.xlu0 4
      %2593 = vperm.xlu0 %2592, %v453
      %v2594 = vpop.permute.xlu0 %2593
      %2596 = vset.pattern.permute.xlu0 4
      %2597 = vperm.xlu0 %2596, %v454
      %v2598 = vpop.permute.xlu0 %2597
      %2600 = vset.pattern.permute.xlu0 4
      %2601 = vperm.xlu0 %2600, %v455
      %v2602 = vpop.permute.xlu0 %2601
      %2604 = vset.pattern.permute.xlu0 4
      %2605 = vperm.xlu0 %2604, %v456
      %v2606 = vpop.permute.xlu0 %2605
      %2608 = vset.pattern.permute.xlu0 4
      %2609 = vperm.xlu0 %2608, %v457
      %v2610 = vpop.permute.xlu0 %2609
      %2612 = vset.pattern.permute.xlu0 4
      %2613 = vperm.xlu0 %2612, %v458
      %v2614 = vpop.permute.xlu0 %2613
      %2616 = vset.pattern.permute.xlu0 4
      %2617 = vperm.xlu0 %2616, %v459
      %v2618 = vpop.permute.xlu0 %2617
      %2620 = vset.pattern.permute.xlu0 4
      %2621 = vperm.xlu0 %2620, %v460
      %v2622 = vpop.permute.xlu0 %2621
      %2624 = vset.pattern.permute.xlu0 4
      %2625 = vperm.xlu0 %2624, %v461
      %v2626 = vpop.permute.xlu0 %2625
      %2628 = vset.pattern.permute.xlu0 4
      %2629 = vperm.xlu0 %2628, %v462
      %v2630 = vpop.permute.xlu0 %2629
      %2632 = vset.pattern.permute.xlu0 4
      %2633 = vperm.xlu0 %2632, %v463
      %v2634 = vpop.permute.xlu0 %2633
      %2636 = vset.pattern.permute.xlu0 4
      %2637 = vperm.xlu0 %2636, %v464
      %v2638 = vpop.permute.xlu0 %2637
      %2640 = vset.pattern.permute.xlu0 4
      %2641 = vperm.xlu0 %2640, %v465
      %v2642 = vpop.permute.xlu0 %2641
      %2644 = vset.pattern.permute.xlu0 4
      %2645 = vperm.xlu0 %2644, %v466
      %v2646 = vpop.permute.xlu0 %2645
      %2648 = vset.pattern.permute.xlu0 4
      %2649 = vperm.xlu0 %2648, %v467
      %v2650 = vpop.permute.xlu0 %2649
      %2652 = vset.pattern.permute.xlu0 4
      %2653 = vperm.xlu0 %2652, %v468
      %v2654 = vpop.permute.xlu0 %2653
      %2656 = vset.pattern.permute.xlu0 4
      %2657 = vperm.xlu0 %2656, %v469
      %v2658 = vpop.permute.xlu0 %2657
      %2660 = vset.pattern.permute.xlu0 4
      %2661 = vperm.xlu0 %2660, %v470
      %v2662 = vpop.permute.xlu0 %2661
      %2664 = vset.pattern.permute.xlu0 4
      %2665 = vperm.xlu0 %2664, %v471
      %v2666 = vpop.permute.xlu0 %2665
      %2668 = vset.pattern.permute.xlu0 4
      %2669 = vperm.xlu0 %2668, %v472
      %v2670 = vpop.permute.xlu0 %2669
      %2672 = vset.pattern.permute.xlu0 4
      %2673 = vperm.xlu0 %2672, %v473
      %v2674 = vpop.permute.xlu0 %2673
      %2676 = vset.pattern.permute.xlu0 4
      %2677 = vperm.xlu0 %2676, %v474
      %v2678 = vpop.permute.xlu0 %2677
      %2680 = vset.pattern.permute.xlu0 4
      %2681 = vperm.xlu0 %2680, %v475
      %v2682 = vpop.permute.xlu0 %2681
      %2684 = vset.pattern.permute.xlu0 4
      %2685 = vperm.xlu0 %2684, %v476
      %v2686 = vpop.permute.xlu0 %2685
      %2688 = vset.pattern.permute.xlu0 4
      %2689 = vperm.xlu0 %2688, %v477
      %v2690 = vpop.permute.xlu0 %2689
      %2692 = vset.pattern.permute.xlu0 4
      %2693 = vperm.xlu0 %2692, %v478
      %v2694 = vpop.permute.xlu0 %2693
      %2696 = vset.pattern.permute.xlu0 4
      %2697 = vperm.xlu0 %2696, %v479
      %v2698 = vpop.permute.xlu0 %2697
      %2700 = vset.pattern.permute.xlu0 4
      %2701 = vperm.xlu0 %2700, %v480
      %v2702 = vpop.permute.xlu0 %2701
      %v2704 = vperm.slane %v481, 4
      %v2705 = vperm.slane %v482, 4
      %v2706 = vmul.f32 %v2578, %v2704
      %v2707 = vmul.f32 %v2578, %v2705
      %v2708 = vmul.f32 %v2582, %v2704
      %v2709 = vmul.f32 %v2582, %v2705
      %v2710 = vmul.f32 %v2586, %v2704
      %v2711 = vmul.f32 %v2586, %v2705
      %v2712 = vmul.f32 %v2590, %v2704
      %v2713 = vmul.f32 %v2590, %v2705
      %v2714 = vmul.f32 %v2594, %v2704
      %v2715 = vmul.f32 %v2594, %v2705
      %v2716 = vmul.f32 %v2598, %v2704
      %v2717 = vmul.f32 %v2598, %v2705
      %v2718 = vmul.f32 %v2602, %v2704
      %v2719 = vmul.f32 %v2602, %v2705
      %v2720 = vmul.f32 %v2606, %v2704
      %v2721 = vmul.f32 %v2606, %v2705
      %v2722 = vmul.f32 %v2610, %v2704
      %v2723 = vmul.f32 %v2610, %v2705
      %v2724 = vmul.f32 %v2614, %v2704
      %v2725 = vmul.f32 %v2614, %v2705
      %v2726 = vmul.f32 %v2618, %v2704
      %v2727 = vmul.f32 %v2618, %v2705
      %v2728 = vmul.f32 %v2622, %v2704
      %v2729 = vmul.f32 %v2622, %v2705
      %v2730 = vmul.f32 %v2626, %v2704
      %v2731 = vmul.f32 %v2626, %v2705
      %v2732 = vmul.f32 %v2630, %v2704
      %v2733 = vmul.f32 %v2630, %v2705
      %v2734 = vmul.f32 %v2634, %v2704
      %v2735 = vmul.f32 %v2634, %v2705
      %v2736 = vmul.f32 %v2638, %v2704
      %v2737 = vmul.f32 %v2638, %v2705
      %v2738 = vmul.f32 %v2642, %v2704
      %v2739 = vmul.f32 %v2642, %v2705
      %v2740 = vmul.f32 %v2646, %v2704
      %v2741 = vmul.f32 %v2646, %v2705
      %v2742 = vmul.f32 %v2650, %v2704
      %v2743 = vmul.f32 %v2650, %v2705
      %v2744 = vmul.f32 %v2654, %v2704
      %v2745 = vmul.f32 %v2654, %v2705
      %v2746 = vmul.f32 %v2658, %v2704
      %v2747 = vmul.f32 %v2658, %v2705
      %v2748 = vmul.f32 %v2662, %v2704
      %v2749 = vmul.f32 %v2662, %v2705
      %v2750 = vmul.f32 %v2666, %v2704
      %v2751 = vmul.f32 %v2666, %v2705
      %v2752 = vmul.f32 %v2670, %v2704
      %v2753 = vmul.f32 %v2670, %v2705
      %v2754 = vmul.f32 %v2674, %v2704
      %v2755 = vmul.f32 %v2674, %v2705
      %v2756 = vmul.f32 %v2678, %v2704
      %v2757 = vmul.f32 %v2678, %v2705
      %v2758 = vmul.f32 %v2682, %v2704
      %v2759 = vmul.f32 %v2682, %v2705
      %v2760 = vmul.f32 %v2686, %v2704
      %v2761 = vmul.f32 %v2686, %v2705
      %v2762 = vmul.f32 %v2690, %v2704
      %v2763 = vmul.f32 %v2690, %v2705
      %v2764 = vmul.f32 %v2694, %v2704
      %v2765 = vmul.f32 %v2694, %v2705
      %v2766 = vmul.f32 %v2698, %v2704
      %v2767 = vmul.f32 %v2698, %v2705
      %v2768 = vmul.f32 %v2702, %v2704
      %v2769 = vmul.f32 %v2702, %v2705
      %2770 = vset.pattern.permute.xlu0 7
      %2771 = vperm.xlu0 %2770, %v449
      %v2772 = vpop.permute.xlu0 %2771
      %2774 = vset.pattern.permute.xlu0 7
      %2775 = vperm.xlu0 %2774, %v450
      %v2776 = vpop.permute.xlu0 %2775
      %2778 = vset.pattern.permute.xlu0 7
      %2779 = vperm.xlu0 %2778, %v451
      %v2780 = vpop.permute.xlu0 %2779
      %2782 = vset.pattern.permute.xlu0 7
      %2783 = vperm.xlu0 %2782, %v452
      %v2784 = vpop.permute.xlu0 %2783
      %2786 = vset.pattern.permute.xlu0 7
      %2787 = vperm.xlu0 %2786, %v453
      %v2788 = vpop.permute.xlu0 %2787
      %2790 = vset.pattern.permute.xlu0 7
      %2791 = vperm.xlu0 %2790, %v454
      %v2792 = vpop.permute.xlu0 %2791
      %2794 = vset.pattern.permute.xlu0 7
      %2795 = vperm.xlu0 %2794, %v455
      %v2796 = vpop.permute.xlu0 %2795
      %2798 = vset.pattern.permute.xlu0 7
      %2799 = vperm.xlu0 %2798, %v456
      %v2800 = vpop.permute.xlu0 %2799
      %2802 = vset.pattern.permute.xlu0 7
      %2803 = vperm.xlu0 %2802, %v457
      %v2804 = vpop.permute.xlu0 %2803
      %2806 = vset.pattern.permute.xlu0 7
      %2807 = vperm.xlu0 %2806, %v458
      %v2808 = vpop.permute.xlu0 %2807
      %2810 = vset.pattern.permute.xlu0 7
      %2811 = vperm.xlu0 %2810, %v459
      %v2812 = vpop.permute.xlu0 %2811
      %2814 = vset.pattern.permute.xlu0 7
      %2815 = vperm.xlu0 %2814, %v460
      %v2816 = vpop.permute.xlu0 %2815
      %2818 = vset.pattern.permute.xlu0 7
      %2819 = vperm.xlu0 %2818, %v461
      %v2820 = vpop.permute.xlu0 %2819
      %2822 = vset.pattern.permute.xlu0 7
      %2823 = vperm.xlu0 %2822, %v462
      %v2824 = vpop.permute.xlu0 %2823
      %2826 = vset.pattern.permute.xlu0 7
      %2827 = vperm.xlu0 %2826, %v463
      %v2828 = vpop.permute.xlu0 %2827
      %2830 = vset.pattern.permute.xlu0 7
      %2831 = vperm.xlu0 %2830, %v464
      %v2832 = vpop.permute.xlu0 %2831
      %2834 = vset.pattern.permute.xlu0 7
      %2835 = vperm.xlu0 %2834, %v465
      %v2836 = vpop.permute.xlu0 %2835
      %2838 = vset.pattern.permute.xlu0 7
      %2839 = vperm.xlu0 %2838, %v466
      %v2840 = vpop.permute.xlu0 %2839
      %2842 = vset.pattern.permute.xlu0 7
      %2843 = vperm.xlu0 %2842, %v467
      %v2844 = vpop.permute.xlu0 %2843
      %2846 = vset.pattern.permute.xlu0 7
      %2847 = vperm.xlu0 %2846, %v468
      %v2848 = vpop.permute.xlu0 %2847
      %2850 = vset.pattern.permute.xlu0 7
      %2851 = vperm.xlu0 %2850, %v469
      %v2852 = vpop.permute.xlu0 %2851
      %2854 = vset.pattern.permute.xlu0 7
      %2855 = vperm.xlu0 %2854, %v470
      %v2856 = vpop.permute.xlu0 %2855
      %2858 = vset.pattern.permute.xlu0 7
      %2859 = vperm.xlu0 %2858, %v471
      %v2860 = vpop.permute.xlu0 %2859
      %2862 = vset.pattern.permute.xlu0 7
      %2863 = vperm.xlu0 %2862, %v472
      %v2864 = vpop.permute.xlu0 %2863
      %2866 = vset.pattern.permute.xlu0 7
      %2867 = vperm.xlu0 %2866, %v473
      %v2868 = vpop.permute.xlu0 %2867
      %2870 = vset.pattern.permute.xlu0 7
      %2871 = vperm.xlu0 %2870, %v474
      %v2872 = vpop.permute.xlu0 %2871
      %2874 = vset.pattern.permute.xlu0 7
      %2875 = vperm.xlu0 %2874, %v475
      %v2876 = vpop.permute.xlu0 %2875
      %2878 = vset.pattern.permute.xlu0 7
      %2879 = vperm.xlu0 %2878, %v476
      %v2880 = vpop.permute.xlu0 %2879
      %2882 = vset.pattern.permute.xlu0 7
      %2883 = vperm.xlu0 %2882, %v477
      %v2884 = vpop.permute.xlu0 %2883
      %2886 = vset.pattern.permute.xlu0 7
      %2887 = vperm.xlu0 %2886, %v478
      %v2888 = vpop.permute.xlu0 %2887
      %2890 = vset.pattern.permute.xlu0 7
      %2891 = vperm.xlu0 %2890, %v479
      %v2892 = vpop.permute.xlu0 %2891
      %2894 = vset.pattern.permute.xlu0 7
      %2895 = vperm.xlu0 %2894, %v480
      %v2896 = vpop.permute.xlu0 %2895
      %v2898 = vperm.slane %v481, 7
      %v2899 = vperm.slane %v482, 7
      %v2900 = vadd.f32 %v2772, %v2898
      %v2901 = vadd.f32 %v2772, %v2899
      %v2902 = vadd.f32 %v2776, %v2898
      %v2903 = vadd.f32 %v2776, %v2899
      %v2904 = vadd.f32 %v2780, %v2898
      %v2905 = vadd.f32 %v2780, %v2899
      %v2906 = vadd.f32 %v2784, %v2898
      %v2907 = vadd.f32 %v2784, %v2899
      %v2908 = vadd.f32 %v2788, %v2898
      %v2909 = vadd.f32 %v2788, %v2899
      %v2910 = vadd.f32 %v2792, %v2898
      %v2911 = vadd.f32 %v2792, %v2899
      %v2912 = vadd.f32 %v2796, %v2898
      %v2913 = vadd.f32 %v2796, %v2899
      %v2914 = vadd.f32 %v2800, %v2898
      %v2915 = vadd.f32 %v2800, %v2899
      %v2916 = vadd.f32 %v2804, %v2898
      %v2917 = vadd.f32 %v2804, %v2899
      %v2918 = vadd.f32 %v2808, %v2898
      %v2919 = vadd.f32 %v2808, %v2899
      %v2920 = vadd.f32 %v2812, %v2898
      %v2921 = vadd.f32 %v2812, %v2899
      %v2922 = vadd.f32 %v2816, %v2898
      %v2923 = vadd.f32 %v2816, %v2899
      %v2924 = vadd.f32 %v2820, %v2898
      %v2925 = vadd.f32 %v2820, %v2899
      %v2926 = vadd.f32 %v2824, %v2898
      %v2927 = vadd.f32 %v2824, %v2899
      %v2928 = vadd.f32 %v2828, %v2898
      %v2929 = vadd.f32 %v2828, %v2899
      %v2930 = vadd.f32 %v2832, %v2898
      %v2931 = vadd.f32 %v2832, %v2899
      %v2932 = vadd.f32 %v2836, %v2898
      %v2933 = vadd.f32 %v2836, %v2899
      %v2934 = vadd.f32 %v2840, %v2898
      %v2935 = vadd.f32 %v2840, %v2899
      %v2936 = vadd.f32 %v2844, %v2898
      %v2937 = vadd.f32 %v2844, %v2899
      %v2938 = vadd.f32 %v2848, %v2898
      %v2939 = vadd.f32 %v2848, %v2899
      %v2940 = vadd.f32 %v2852, %v2898
      %v2941 = vadd.f32 %v2852, %v2899
      %v2942 = vadd.f32 %v2856, %v2898
      %v2943 = vadd.f32 %v2856, %v2899
      %v2944 = vadd.f32 %v2860, %v2898
      %v2945 = vadd.f32 %v2860, %v2899
      %v2946 = vadd.f32 %v2864, %v2898
      %v2947 = vadd.f32 %v2864, %v2899
      %v2948 = vadd.f32 %v2868, %v2898
      %v2949 = vadd.f32 %v2868, %v2899
      %v2950 = vadd.f32 %v2872, %v2898
      %v2951 = vadd.f32 %v2872, %v2899
      %v2952 = vadd.f32 %v2876, %v2898
      %v2953 = vadd.f32 %v2876, %v2899
      %v2954 = vadd.f32 %v2880, %v2898
      %v2955 = vadd.f32 %v2880, %v2899
      %v2956 = vadd.f32 %v2884, %v2898
      %v2957 = vadd.f32 %v2884, %v2899
      %v2958 = vadd.f32 %v2888, %v2898
      %v2959 = vadd.f32 %v2888, %v2899
      %v2960 = vadd.f32 %v2892, %v2898
      %v2961 = vadd.f32 %v2892, %v2899
      %v2962 = vadd.f32 %v2896, %v2898
      %v2963 = vadd.f32 %v2896, %v2899
      %v2964 = vrcp.pop %v2900
      %v2965 = vrcp.pop %v2901
      %v2966 = vrcp.pop %v2902
      %v2967 = vrcp.pop %v2903
      %v2968 = vrcp.pop %v2904
      %v2969 = vrcp.pop %v2905
      %v2970 = vrcp.pop %v2906
      %v2971 = vrcp.pop %v2907
      %v2972 = vrcp.pop %v2908
      %v2973 = vrcp.pop %v2909
      %v2974 = vrcp.pop %v2910
      %v2975 = vrcp.pop %v2911
      %v2976 = vrcp.pop %v2912
      %v2977 = vrcp.pop %v2913
      %v2978 = vrcp.pop %v2914
      %v2979 = vrcp.pop %v2915
      %v2980 = vrcp.pop %v2916
      %v2981 = vrcp.pop %v2917
      %v2982 = vrcp.pop %v2918
      %v2983 = vrcp.pop %v2919
      %v2984 = vrcp.pop %v2920
      %v2985 = vrcp.pop %v2921
      %v2986 = vrcp.pop %v2922
      %v2987 = vrcp.pop %v2923
      %v2988 = vrcp.pop %v2924
      %v2989 = vrcp.pop %v2925
      %v2990 = vrcp.pop %v2926
      %v2991 = vrcp.pop %v2927
      %v2992 = vrcp.pop %v2928
      %v2993 = vrcp.pop %v2929
      %v2994 = vrcp.pop %v2930
      %v2995 = vrcp.pop %v2931
      %v2996 = vrcp.pop %v2932
      %v2997 = vrcp.pop %v2933
      %v2998 = vrcp.pop %v2934
      %v2999 = vrcp.pop %v2935
      %v3000 = vrcp.pop %v2936
      %v3001 = vrcp.pop %v2937
      %v3002 = vrcp.pop %v2938
      %v3003 = vrcp.pop %v2939
      %v3004 = vrcp.pop %v2940
      %v3005 = vrcp.pop %v2941
      %v3006 = vrcp.pop %v2942
      %v3007 = vrcp.pop %v2943
      %v3008 = vrcp.pop %v2944
      %v3009 = vrcp.pop %v2945
      %v3010 = vrcp.pop %v2946
      %v3011 = vrcp.pop %v2947
      %v3012 = vrcp.pop %v2948
      %v3013 = vrcp.pop %v2949
      %v3014 = vrcp.pop %v2950
      %v3015 = vrcp.pop %v2951
      %v3016 = vrcp.pop %v2952
      %v3017 = vrcp.pop %v2953
      %v3018 = vrcp.pop %v2954
      %v3019 = vrcp.pop %v2955
      %v3020 = vrcp.pop %v2956
      %v3021 = vrcp.pop %v2957
      %v3022 = vrcp.pop %v2958
      %v3023 = vrcp.pop %v2959
      %v3024 = vrcp.pop %v2960
      %v3025 = vrcp.pop %v2961
      %v3026 = vrcp.pop %v2962
      %v3027 = vrcp.pop %v2963
      %v3028 = vmul.f32 %v2706, %v2964
      %v3029 = vmul.f32 %v2707, %v2965
      %v3030 = vmul.f32 %v2708, %v2966
      %v3031 = vmul.f32 %v2709, %v2967
      %v3032 = vmul.f32 %v2710, %v2968
      %v3033 = vmul.f32 %v2711, %v2969
      %v3034 = vmul.f32 %v2712, %v2970
      %v3035 = vmul.f32 %v2713, %v2971
      %v3036 = vmul.f32 %v2714, %v2972
      %v3037 = vmul.f32 %v2715, %v2973
      %v3038 = vmul.f32 %v2716, %v2974
      %v3039 = vmul.f32 %v2717, %v2975
      %v3040 = vmul.f32 %v2718, %v2976
      %v3041 = vmul.f32 %v2719, %v2977
      %v3042 = vmul.f32 %v2720, %v2978
      %v3043 = vmul.f32 %v2721, %v2979
      %v3044 = vmul.f32 %v2722, %v2980
      %v3045 = vmul.f32 %v2723, %v2981
      %v3046 = vmul.f32 %v2724, %v2982
      %v3047 = vmul.f32 %v2725, %v2983
      %v3048 = vmul.f32 %v2726, %v2984
      %v3049 = vmul.f32 %v2727, %v2985
      %v3050 = vmul.f32 %v2728, %v2986
      %v3051 = vmul.f32 %v2729, %v2987
      %v3052 = vmul.f32 %v2730, %v2988
      %v3053 = vmul.f32 %v2731, %v2989
      %v3054 = vmul.f32 %v2732, %v2990
      %v3055 = vmul.f32 %v2733, %v2991
      %v3056 = vmul.f32 %v2734, %v2992
      %v3057 = vmul.f32 %v2735, %v2993
      %v3058 = vmul.f32 %v2736, %v2994
      %v3059 = vmul.f32 %v2737, %v2995
      %v3060 = vmul.f32 %v2738, %v2996
      %v3061 = vmul.f32 %v2739, %v2997
      %v3062 = vmul.f32 %v2740, %v2998
      %v3063 = vmul.f32 %v2741, %v2999
      %v3064 = vmul.f32 %v2742, %v3000
      %v3065 = vmul.f32 %v2743, %v3001
      %v3066 = vmul.f32 %v2744, %v3002
      %v3067 = vmul.f32 %v2745, %v3003
      %v3068 = vmul.f32 %v2746, %v3004
      %v3069 = vmul.f32 %v2747, %v3005
      %v3070 = vmul.f32 %v2748, %v3006
      %v3071 = vmul.f32 %v2749, %v3007
      %v3072 = vmul.f32 %v2750, %v3008
      %v3073 = vmul.f32 %v2751, %v3009
      %v3074 = vmul.f32 %v2752, %v3010
      %v3075 = vmul.f32 %v2753, %v3011
      %v3076 = vmul.f32 %v2754, %v3012
      %v3077 = vmul.f32 %v2755, %v3013
      %v3078 = vmul.f32 %v2756, %v3014
      %v3079 = vmul.f32 %v2757, %v3015
      %v3080 = vmul.f32 %v2758, %v3016
      %v3081 = vmul.f32 %v2759, %v3017
      %v3082 = vmul.f32 %v2760, %v3018
      %v3083 = vmul.f32 %v2761, %v3019
      %v3084 = vmul.f32 %v2762, %v3020
      %v3085 = vmul.f32 %v2763, %v3021
      %v3086 = vmul.f32 %v2764, %v3022
      %v3087 = vmul.f32 %v2765, %v3023
      %v3088 = vmul.f32 %v2766, %v3024
      %v3089 = vmul.f32 %v2767, %v3025
      %v3090 = vmul.f32 %v2768, %v3026
      %v3091 = vmul.f32 %v2769, %v3027
      %3092 = vset.pattern.permute.xlu0 5
      %3093 = vperm.xlu0 %3092, %v449
      %v3094 = vpop.permute.xlu0 %3093
      %3096 = vset.pattern.permute.xlu0 5
      %3097 = vperm.xlu0 %3096, %v450
      %v3098 = vpop.permute.xlu0 %3097
      %3100 = vset.pattern.permute.xlu0 5
      %3101 = vperm.xlu0 %3100, %v451
      %v3102 = vpop.permute.xlu0 %3101
      %3104 = vset.pattern.permute.xlu0 5
      %3105 = vperm.xlu0 %3104, %v452
      %v3106 = vpop.permute.xlu0 %3105
      %3108 = vset.pattern.permute.xlu0 5
      %3109 = vperm.xlu0 %3108, %v453
      %v3110 = vpop.permute.xlu0 %3109
      %3112 = vset.pattern.permute.xlu0 5
      %3113 = vperm.xlu0 %3112, %v454
      %v3114 = vpop.permute.xlu0 %3113
      %3116 = vset.pattern.permute.xlu0 5
      %3117 = vperm.xlu0 %3116, %v455
      %v3118 = vpop.permute.xlu0 %3117
      %3120 = vset.pattern.permute.xlu0 5
      %3121 = vperm.xlu0 %3120, %v456
      %v3122 = vpop.permute.xlu0 %3121
      %3124 = vset.pattern.permute.xlu0 5
      %3125 = vperm.xlu0 %3124, %v457
      %v3126 = vpop.permute.xlu0 %3125
      %3128 = vset.pattern.permute.xlu0 5
      %3129 = vperm.xlu0 %3128, %v458
      %v3130 = vpop.permute.xlu0 %3129
      %3132 = vset.pattern.permute.xlu0 5
      %3133 = vperm.xlu0 %3132, %v459
      %v3134 = vpop.permute.xlu0 %3133
      %3136 = vset.pattern.permute.xlu0 5
      %3137 = vperm.xlu0 %3136, %v460
      %v3138 = vpop.permute.xlu0 %3137
      %3140 = vset.pattern.permute.xlu0 5
      %3141 = vperm.xlu0 %3140, %v461
      %v3142 = vpop.permute.xlu0 %3141
      %3144 = vset.pattern.permute.xlu0 5
      %3145 = vperm.xlu0 %3144, %v462
      %v3146 = vpop.permute.xlu0 %3145
      %3148 = vset.pattern.permute.xlu0 5
      %3149 = vperm.xlu0 %3148, %v463
      %v3150 = vpop.permute.xlu0 %3149
      %3152 = vset.pattern.permute.xlu0 5
      %3153 = vperm.xlu0 %3152, %v464
      %v3154 = vpop.permute.xlu0 %3153
      %3156 = vset.pattern.permute.xlu0 5
      %3157 = vperm.xlu0 %3156, %v465
      %v3158 = vpop.permute.xlu0 %3157
      %3160 = vset.pattern.permute.xlu0 5
      %3161 = vperm.xlu0 %3160, %v466
      %v3162 = vpop.permute.xlu0 %3161
      %3164 = vset.pattern.permute.xlu0 5
      %3165 = vperm.xlu0 %3164, %v467
      %v3166 = vpop.permute.xlu0 %3165
      %3168 = vset.pattern.permute.xlu0 5
      %3169 = vperm.xlu0 %3168, %v468
      %v3170 = vpop.permute.xlu0 %3169
      %3172 = vset.pattern.permute.xlu0 5
      %3173 = vperm.xlu0 %3172, %v469
      %v3174 = vpop.permute.xlu0 %3173
      %3176 = vset.pattern.permute.xlu0 5
      %3177 = vperm.xlu0 %3176, %v470
      %v3178 = vpop.permute.xlu0 %3177
      %3180 = vset.pattern.permute.xlu0 5
      %3181 = vperm.xlu0 %3180, %v471
      %v3182 = vpop.permute.xlu0 %3181
      %3184 = vset.pattern.permute.xlu0 5
      %3185 = vperm.xlu0 %3184, %v472
      %v3186 = vpop.permute.xlu0 %3185
      %3188 = vset.pattern.permute.xlu0 5
      %3189 = vperm.xlu0 %3188, %v473
      %v3190 = vpop.permute.xlu0 %3189
      %3192 = vset.pattern.permute.xlu0 5
      %3193 = vperm.xlu0 %3192, %v474
      %v3194 = vpop.permute.xlu0 %3193
      %3196 = vset.pattern.permute.xlu0 5
      %3197 = vperm.xlu0 %3196, %v475
      %v3198 = vpop.permute.xlu0 %3197
      %3200 = vset.pattern.permute.xlu0 5
      %3201 = vperm.xlu0 %3200, %v476
      %v3202 = vpop.permute.xlu0 %3201
      %3204 = vset.pattern.permute.xlu0 5
      %3205 = vperm.xlu0 %3204, %v477
      %v3206 = vpop.permute.xlu0 %3205
      %3208 = vset.pattern.permute.xlu0 5
      %3209 = vperm.xlu0 %3208, %v478
      %v3210 = vpop.permute.xlu0 %3209
      %3212 = vset.pattern.permute.xlu0 5
      %3213 = vperm.xlu0 %3212, %v479
      %v3214 = vpop.permute.xlu0 %3213
      %3216 = vset.pattern.permute.xlu0 5
      %3217 = vperm.xlu0 %3216, %v480
      %v3218 = vpop.permute.xlu0 %3217
      %v3220 = vperm.slane %v481, 5
      %v3221 = vperm.slane %v482, 5
      %v3222 = vmul.f32 %v3094, %v3220
      %v3223 = vmul.f32 %v3094, %v3221
      %v3224 = vmul.f32 %v3098, %v3220
      %v3225 = vmul.f32 %v3098, %v3221
      %v3226 = vmul.f32 %v3102, %v3220
      %v3227 = vmul.f32 %v3102, %v3221
      %v3228 = vmul.f32 %v3106, %v3220
      %v3229 = vmul.f32 %v3106, %v3221
      %v3230 = vmul.f32 %v3110, %v3220
      %v3231 = vmul.f32 %v3110, %v3221
      %v3232 = vmul.f32 %v3114, %v3220
      %v3233 = vmul.f32 %v3114, %v3221
      %v3234 = vmul.f32 %v3118, %v3220
      %v3235 = vmul.f32 %v3118, %v3221
      %v3236 = vmul.f32 %v3122, %v3220
      %v3237 = vmul.f32 %v3122, %v3221
      %v3238 = vmul.f32 %v3126, %v3220
      %v3239 = vmul.f32 %v3126, %v3221
      %v3240 = vmul.f32 %v3130, %v3220
      %v3241 = vmul.f32 %v3130, %v3221
      %v3242 = vmul.f32 %v3134, %v3220
      %v3243 = vmul.f32 %v3134, %v3221
      %v3244 = vmul.f32 %v3138, %v3220
      %v3245 = vmul.f32 %v3138, %v3221
      %v3246 = vmul.f32 %v3142, %v3220
      %v3247 = vmul.f32 %v3142, %v3221
      %v3248 = vmul.f32 %v3146, %v3220
      %v3249 = vmul.f32 %v3146, %v3221
      %v3250 = vmul.f32 %v3150, %v3220
      %v3251 = vmul.f32 %v3150, %v3221
      %v3252 = vmul.f32 %v3154, %v3220
      %v3253 = vmul.f32 %v3154, %v3221
      %v3254 = vmul.f32 %v3158, %v3220
      %v3255 = vmul.f32 %v3158, %v3221
      %v3256 = vmul.f32 %v3162, %v3220
      %v3257 = vmul.f32 %v3162, %v3221
      %v3258 = vmul.f32 %v3166, %v3220
      %v3259 = vmul.f32 %v3166, %v3221
      %v3260 = vmul.f32 %v3170, %v3220
      %v3261 = vmul.f32 %v3170, %v3221
      %v3262 = vmul.f32 %v3174, %v3220
      %v3263 = vmul.f32 %v3174, %v3221
      %v3264 = vmul.f32 %v3178, %v3220
      %v3265 = vmul.f32 %v3178, %v3221
      %v3266 = vmul.f32 %v3182, %v3220
      %v3267 = vmul.f32 %v3182, %v3221
      %v3268 = vmul.f32 %v3186, %v3220
      %v3269 = vmul.f32 %v3186, %v3221
      %v3270 = vmul.f32 %v3190, %v3220
      %v3271 = vmul.f32 %v3190, %v3221
      %v3272 = vmul.f32 %v3194, %v3220
      %v3273 = vmul.f32 %v3194, %v3221
      %v3274 = vmul.f32 %v3198, %v3220
      %v3275 = vmul.f32 %v3198, %v3221
      %v3276 = vmul.f32 %v3202, %v3220
      %v3277 = vmul.f32 %v3202, %v3221
      %v3278 = vmul.f32 %v3206, %v3220
      %v3279 = vmul.f32 %v3206, %v3221
      %v3280 = vmul.f32 %v3210, %v3220
      %v3281 = vmul.f32 %v3210, %v3221
      %v3282 = vmul.f32 %v3214, %v3220
      %v3283 = vmul.f32 %v3214, %v3221
      %v3284 = vmul.f32 %v3218, %v3220
      %v3285 = vmul.f32 %v3218, %v3221
      %3286 = vset.pattern.permute.xlu0 8
      %3287 = vperm.xlu0 %3286, %v449
      %v3288 = vpop.permute.xlu0 %3287
      %3290 = vset.pattern.permute.xlu0 8
      %3291 = vperm.xlu0 %3290, %v450
      %v3292 = vpop.permute.xlu0 %3291
      %3294 = vset.pattern.permute.xlu0 8
      %3295 = vperm.xlu0 %3294, %v451
      %v3296 = vpop.permute.xlu0 %3295
      %3298 = vset.pattern.permute.xlu0 8
      %3299 = vperm.xlu0 %3298, %v452
      %v3300 = vpop.permute.xlu0 %3299
      %3302 = vset.pattern.permute.xlu0 8
      %3303 = vperm.xlu0 %3302, %v453
      %v3304 = vpop.permute.xlu0 %3303
      %3306 = vset.pattern.permute.xlu0 8
      %3307 = vperm.xlu0 %3306, %v454
      %v3308 = vpop.permute.xlu0 %3307
      %3310 = vset.pattern.permute.xlu0 8
      %3311 = vperm.xlu0 %3310, %v455
      %v3312 = vpop.permute.xlu0 %3311
      %3314 = vset.pattern.permute.xlu0 8
      %3315 = vperm.xlu0 %3314, %v456
      %v3316 = vpop.permute.xlu0 %3315
      %3318 = vset.pattern.permute.xlu0 8
      %3319 = vperm.xlu0 %3318, %v457
      %v3320 = vpop.permute.xlu0 %3319
      %3322 = vset.pattern.permute.xlu0 8
      %3323 = vperm.xlu0 %3322, %v458
      %v3324 = vpop.permute.xlu0 %3323
      %3326 = vset.pattern.permute.xlu0 8
      %3327 = vperm.xlu0 %3326, %v459
      %v3328 = vpop.permute.xlu0 %3327
      %3330 = vset.pattern.permute.xlu0 8
      %3331 = vperm.xlu0 %3330, %v460
      %v3332 = vpop.permute.xlu0 %3331
      %3334 = vset.pattern.permute.xlu0 8
      %3335 = vperm.xlu0 %3334, %v461
      %v3336 = vpop.permute.xlu0 %3335
      %3338 = vset.pattern.permute.xlu0 8
      %3339 = vperm.xlu0 %3338, %v462
      %v3340 = vpop.permute.xlu0 %3339
      %3342 = vset.pattern.permute.xlu0 8
      %3343 = vperm.xlu0 %3342, %v463
      %v3344 = vpop.permute.xlu0 %3343
      %3346 = vset.pattern.permute.xlu0 8
      %3347 = vperm.xlu0 %3346, %v464
      %v3348 = vpop.permute.xlu0 %3347
      %3350 = vset.pattern.permute.xlu0 8
      %3351 = vperm.xlu0 %3350, %v465
      %v3352 = vpop.permute.xlu0 %3351
      %3354 = vset.pattern.permute.xlu0 8
      %3355 = vperm.xlu0 %3354, %v466
      %v3356 = vpop.permute.xlu0 %3355
      %3358 = vset.pattern.permute.xlu0 8
      %3359 = vperm.xlu0 %3358, %v467
      %v3360 = vpop.permute.xlu0 %3359
      %3362 = vset.pattern.permute.xlu0 8
      %3363 = vperm.xlu0 %3362, %v468
      %v3364 = vpop.permute.xlu0 %3363
      %3366 = vset.pattern.permute.xlu0 8
      %3367 = vperm.xlu0 %3366, %v469
      %v3368 = vpop.permute.xlu0 %3367
      %3370 = vset.pattern.permute.xlu0 8
      %3371 = vperm.xlu0 %3370, %v470
      %v3372 = vpop.permute.xlu0 %3371
      %3374 = vset.pattern.permute.xlu0 8
      %3375 = vperm.xlu0 %3374, %v471
      %v3376 = vpop.permute.xlu0 %3375
      %3378 = vset.pattern.permute.xlu0 8
      %3379 = vperm.xlu0 %3378, %v472
      %v3380 = vpop.permute.xlu0 %3379
      %3382 = vset.pattern.permute.xlu0 8
      %3383 = vperm.xlu0 %3382, %v473
      %v3384 = vpop.permute.xlu0 %3383
      %3386 = vset.pattern.permute.xlu0 8
      %3387 = vperm.xlu0 %3386, %v474
      %v3388 = vpop.permute.xlu0 %3387
      %3390 = vset.pattern.permute.xlu0 8
      %3391 = vperm.xlu0 %3390, %v475
      %v3392 = vpop.permute.xlu0 %3391
      %3394 = vset.pattern.permute.xlu0 8
      %3395 = vperm.xlu0 %3394, %v476
      %v3396 = vpop.permute.xlu0 %3395
      %3398 = vset.pattern.permute.xlu0 8
      %3399 = vperm.xlu0 %3398, %v477
      %v3400 = vpop.permute.xlu0 %3399
      %3402 = vset.pattern.permute.xlu0 8
      %3403 = vperm.xlu0 %3402, %v478
      %v3404 = vpop.permute.xlu0 %3403
      %3406 = vset.pattern.permute.xlu0 8
      %3407 = vperm.xlu0 %3406, %v479
      %v3408 = vpop.permute.xlu0 %3407
      %3410 = vset.pattern.permute.xlu0 8
      %3411 = vperm.xlu0 %3410, %v480
      %v3412 = vpop.permute.xlu0 %3411
      %v3414 = vperm.slane %v483, 0
      %v3415 = vperm.slane %v484, 0
      %v3416 = vadd.f32 %v3288, %v3414
      %v3417 = vadd.f32 %v3288, %v3415
      %v3418 = vadd.f32 %v3292, %v3414
      %v3419 = vadd.f32 %v3292, %v3415
      %v3420 = vadd.f32 %v3296, %v3414
      %v3421 = vadd.f32 %v3296, %v3415
      %v3422 = vadd.f32 %v3300, %v3414
      %v3423 = vadd.f32 %v3300, %v3415
      %v3424 = vadd.f32 %v3304, %v3414
      %v3425 = vadd.f32 %v3304, %v3415
      %v3426 = vadd.f32 %v3308, %v3414
      %v3427 = vadd.f32 %v3308, %v3415
      %v3428 = vadd.f32 %v3312, %v3414
      %v3429 = vadd.f32 %v3312, %v3415
      %v3430 = vadd.f32 %v3316, %v3414
      %v3431 = vadd.f32 %v3316, %v3415
      %v3432 = vadd.f32 %v3320, %v3414
      %v3433 = vadd.f32 %v3320, %v3415
      %v3434 = vadd.f32 %v3324, %v3414
      %v3435 = vadd.f32 %v3324, %v3415
      %v3436 = vadd.f32 %v3328, %v3414
      %v3437 = vadd.f32 %v3328, %v3415
      %v3438 = vadd.f32 %v3332, %v3414
      %v3439 = vadd.f32 %v3332, %v3415
      %v3440 = vadd.f32 %v3336, %v3414
      %v3441 = vadd.f32 %v3336, %v3415
      %v3442 = vadd.f32 %v3340, %v3414
      %v3443 = vadd.f32 %v3340, %v3415
      %v3444 = vadd.f32 %v3344, %v3414
      %v3445 = vadd.f32 %v3344, %v3415
      %v3446 = vadd.f32 %v3348, %v3414
      %v3447 = vadd.f32 %v3348, %v3415
      %v3448 = vadd.f32 %v3352, %v3414
      %v3449 = vadd.f32 %v3352, %v3415
      %v3450 = vadd.f32 %v3356, %v3414
      %v3451 = vadd.f32 %v3356, %v3415
      %v3452 = vadd.f32 %v3360, %v3414
      %v3453 = vadd.f32 %v3360, %v3415
      %v3454 = vadd.f32 %v3364, %v3414
      %v3455 = vadd.f32 %v3364, %v3415
      %v3456 = vadd.f32 %v3368, %v3414
      %v3457 = vadd.f32 %v3368, %v3415
      %v3458 = vadd.f32 %v3372, %v3414
      %v3459 = vadd.f32 %v3372, %v3415
      %v3460 = vadd.f32 %v3376, %v3414
      %v3461 = vadd.f32 %v3376, %v3415
      %v3462 = vadd.f32 %v3380, %v3414
      %v3463 = vadd.f32 %v3380, %v3415
      %v3464 = vadd.f32 %v3384, %v3414
      %v3465 = vadd.f32 %v3384, %v3415
      %v3466 = vadd.f32 %v3388, %v3414
      %v3467 = vadd.f32 %v3388, %v3415
      %v3468 = vadd.f32 %v3392, %v3414
      %v3469 = vadd.f32 %v3392, %v3415
      %v3470 = vadd.f32 %v3396, %v3414
      %v3471 = vadd.f32 %v3396, %v3415
      %v3472 = vadd.f32 %v3400, %v3414
      %v3473 = vadd.f32 %v3400, %v3415
      %v3474 = vadd.f32 %v3404, %v3414
      %v3475 = vadd.f32 %v3404, %v3415
      %v3476 = vadd.f32 %v3408, %v3414
      %v3477 = vadd.f32 %v3408, %v3415
      %v3478 = vadd.f32 %v3412, %v3414
      %v3479 = vadd.f32 %v3412, %v3415
      %v3480 = vrcp.pop %v3416
      %v3481 = vrcp.pop %v3417
      %v3482 = vrcp.pop %v3418
      %v3483 = vrcp.pop %v3419
      %v3484 = vrcp.pop %v3420
      %v3485 = vrcp.pop %v3421
      %v3486 = vrcp.pop %v3422
      %v3487 = vrcp.pop %v3423
      %v3488 = vrcp.pop %v3424
      %v3489 = vrcp.pop %v3425
      %v3490 = vrcp.pop %v3426
      %v3491 = vrcp.pop %v3427
      %v3492 = vrcp.pop %v3428
      %v3493 = vrcp.pop %v3429
      %v3494 = vrcp.pop %v3430
      %v3495 = vrcp.pop %v3431
      %v3496 = vrcp.pop %v3432
      %v3497 = vrcp.pop %v3433
      %v3498 = vrcp.pop %v3434
      %v3499 = vrcp.pop %v3435
      %v3500 = vrcp.pop %v3436
      %v3501 = vrcp.pop %v3437
      %v3502 = vrcp.pop %v3438
      %v3503 = vrcp.pop %v3439
      %v3504 = vrcp.pop %v3440
      %v3505 = vrcp.pop %v3441
      %v3506 = vrcp.pop %v3442
      %v3507 = vrcp.pop %v3443
      %v3508 = vrcp.pop %v3444
      %v3509 = vrcp.pop %v3445
      %v3510 = vrcp.pop %v3446
      %v3511 = vrcp.pop %v3447
      %v3512 = vrcp.pop %v3448
      %v3513 = vrcp.pop %v3449
      %v3514 = vrcp.pop %v3450
      %v3515 = vrcp.pop %v3451
      %v3516 = vrcp.pop %v3452
      %v3517 = vrcp.pop %v3453
      %v3518 = vrcp.pop %v3454
      %v3519 = vrcp.pop %v3455
      %v3520 = vrcp.pop %v3456
      %v3521 = vrcp.pop %v3457
      %v3522 = vrcp.pop %v3458
      %v3523 = vrcp.pop %v3459
      %v3524 = vrcp.pop %v3460
      %v3525 = vrcp.pop %v3461
      %v3526 = vrcp.pop %v3462
      %v3527 = vrcp.pop %v3463
      %v3528 = vrcp.pop %v3464
      %v3529 = vrcp.pop %v3465
      %v3530 = vrcp.pop %v3466
      %v3531 = vrcp.pop %v3467
      %v3532 = vrcp.pop %v3468
      %v3533 = vrcp.pop %v3469
      %v3534 = vrcp.pop %v3470
      %v3535 = vrcp.pop %v3471
      %v3536 = vrcp.pop %v3472
      %v3537 = vrcp.pop %v3473
      %v3538 = vrcp.pop %v3474
      %v3539 = vrcp.pop %v3475
      %v3540 = vrcp.pop %v3476
      %v3541 = vrcp.pop %v3477
      %v3542 = vrcp.pop %v3478
      %v3543 = vrcp.pop %v3479
      %v3544 = vmul.f32 %v3222, %v3480
      %v3545 = vmul.f32 %v3223, %v3481
      %v3546 = vmul.f32 %v3224, %v3482
      %v3547 = vmul.f32 %v3225, %v3483
      %v3548 = vmul.f32 %v3226, %v3484
      %v3549 = vmul.f32 %v3227, %v3485
      %v3550 = vmul.f32 %v3228, %v3486
      %v3551 = vmul.f32 %v3229, %v3487
      %v3552 = vmul.f32 %v3230, %v3488
      %v3553 = vmul.f32 %v3231, %v3489
      %v3554 = vmul.f32 %v3232, %v3490
      %v3555 = vmul.f32 %v3233, %v3491
      %v3556 = vmul.f32 %v3234, %v3492
      %v3557 = vmul.f32 %v3235, %v3493
      %v3558 = vmul.f32 %v3236, %v3494
      %v3559 = vmul.f32 %v3237, %v3495
      %v3560 = vmul.f32 %v3238, %v3496
      %v3561 = vmul.f32 %v3239, %v3497
      %v3562 = vmul.f32 %v3240, %v3498
      %v3563 = vmul.f32 %v3241, %v3499
      %v3564 = vmul.f32 %v3242, %v3500
      %v3565 = vmul.f32 %v3243, %v3501
      %v3566 = vmul.f32 %v3244, %v3502
      %v3567 = vmul.f32 %v3245, %v3503
      %v3568 = vmul.f32 %v3246, %v3504
      %v3569 = vmul.f32 %v3247, %v3505
      %v3570 = vmul.f32 %v3248, %v3506
      %v3571 = vmul.f32 %v3249, %v3507
      %v3572 = vmul.f32 %v3250, %v3508
      %v3573 = vmul.f32 %v3251, %v3509
      %v3574 = vmul.f32 %v3252, %v3510
      %v3575 = vmul.f32 %v3253, %v3511
      %v3576 = vmul.f32 %v3254, %v3512
      %v3577 = vmul.f32 %v3255, %v3513
      %v3578 = vmul.f32 %v3256, %v3514
      %v3579 = vmul.f32 %v3257, %v3515
      %v3580 = vmul.f32 %v3258, %v3516
      %v3581 = vmul.f32 %v3259, %v3517
      %v3582 = vmul.f32 %v3260, %v3518
      %v3583 = vmul.f32 %v3261, %v3519
      %v3584 = vmul.f32 %v3262, %v3520
      %v3585 = vmul.f32 %v3263, %v3521
      %v3586 = vmul.f32 %v3264, %v3522
      %v3587 = vmul.f32 %v3265, %v3523
      %v3588 = vmul.f32 %v3266, %v3524
      %v3589 = vmul.f32 %v3267, %v3525
      %v3590 = vmul.f32 %v3268, %v3526
      %v3591 = vmul.f32 %v3269, %v3527
      %v3592 = vmul.f32 %v3270, %v3528
      %v3593 = vmul.f32 %v3271, %v3529
      %v3594 = vmul.f32 %v3272, %v3530
      %v3595 = vmul.f32 %v3273, %v3531
      %v3596 = vmul.f32 %v3274, %v3532
      %v3597 = vmul.f32 %v3275, %v3533
      %v3598 = vmul.f32 %v3276, %v3534
      %v3599 = vmul.f32 %v3277, %v3535
      %v3600 = vmul.f32 %v3278, %v3536
      %v3601 = vmul.f32 %v3279, %v3537
      %v3602 = vmul.f32 %v3280, %v3538
      %v3603 = vmul.f32 %v3281, %v3539
      %v3604 = vmul.f32 %v3282, %v3540
      %v3605 = vmul.f32 %v3283, %v3541
      %v3606 = vmul.f32 %v3284, %v3542
      %v3607 = vmul.f32 %v3285, %v3543
      %v3608 = vadd.f32 %v3028, %v3544
      %v3609 = vadd.f32 %v3029, %v3545
      %v3610 = vadd.f32 %v3030, %v3546
      %v3611 = vadd.f32 %v3031, %v3547
      %v3612 = vadd.f32 %v3032, %v3548
      %v3613 = vadd.f32 %v3033, %v3549
      %v3614 = vadd.f32 %v3034, %v3550
      %v3615 = vadd.f32 %v3035, %v3551
      %v3616 = vadd.f32 %v3036, %v3552
      %v3617 = vadd.f32 %v3037, %v3553
      %v3618 = vadd.f32 %v3038, %v3554
      %v3619 = vadd.f32 %v3039, %v3555
      %v3620 = vadd.f32 %v3040, %v3556
      %v3621 = vadd.f32 %v3041, %v3557
      %v3622 = vadd.f32 %v3042, %v3558
      %v3623 = vadd.f32 %v3043, %v3559
      %v3624 = vadd.f32 %v3044, %v3560
      %v3625 = vadd.f32 %v3045, %v3561
      %v3626 = vadd.f32 %v3046, %v3562
      %v3627 = vadd.f32 %v3047, %v3563
      %v3628 = vadd.f32 %v3048, %v3564
      %v3629 = vadd.f32 %v3049, %v3565
      %v3630 = vadd.f32 %v3050, %v3566
      %v3631 = vadd.f32 %v3051, %v3567
      %v3632 = vadd.f32 %v3052, %v3568
      %v3633 = vadd.f32 %v3053, %v3569
      %v3634 = vadd.f32 %v3054, %v3570
      %v3635 = vadd.f32 %v3055, %v3571
      %v3636 = vadd.f32 %v3056, %v3572
      %v3637 = vadd.f32 %v3057, %v3573
      %v3638 = vadd.f32 %v3058, %v3574
      %v3639 = vadd.f32 %v3059, %v3575
      %v3640 = vadd.f32 %v3060, %v3576
      %v3641 = vadd.f32 %v3061, %v3577
      %v3642 = vadd.f32 %v3062, %v3578
      %v3643 = vadd.f32 %v3063, %v3579
      %v3644 = vadd.f32 %v3064, %v3580
      %v3645 = vadd.f32 %v3065, %v3581
      %v3646 = vadd.f32 %v3066, %v3582
      %v3647 = vadd.f32 %v3067, %v3583
      %v3648 = vadd.f32 %v3068, %v3584
      %v3649 = vadd.f32 %v3069, %v3585
      %v3650 = vadd.f32 %v3070, %v3586
      %v3651 = vadd.f32 %v3071, %v3587
      %v3652 = vadd.f32 %v3072, %v3588
      %v3653 = vadd.f32 %v3073, %v3589
      %v3654 = vadd.f32 %v3074, %v3590
      %v3655 = vadd.f32 %v3075, %v3591
      %v3656 = vadd.f32 %v3076, %v3592
      %v3657 = vadd.f32 %v3077, %v3593
      %v3658 = vadd.f32 %v3078, %v3594
      %v3659 = vadd.f32 %v3079, %v3595
      %v3660 = vadd.f32 %v3080, %v3596
      %v3661 = vadd.f32 %v3081, %v3597
      %v3662 = vadd.f32 %v3082, %v3598
      %v3663 = vadd.f32 %v3083, %v3599
      %v3664 = vadd.f32 %v3084, %v3600
      %v3665 = vadd.f32 %v3085, %v3601
      %v3666 = vadd.f32 %v3086, %v3602
      %v3667 = vadd.f32 %v3087, %v3603
      %v3668 = vadd.f32 %v3088, %v3604
      %v3669 = vadd.f32 %v3089, %v3605
      %v3670 = vadd.f32 %v3090, %v3606
      %v3671 = vadd.f32 %v3091, %v3607
      %3672 = vset.pattern.permute.xlu0 6
      %3673 = vperm.xlu0 %3672, %v449
      %v3674 = vpop.permute.xlu0 %3673
      %3676 = vset.pattern.permute.xlu0 6
      %3677 = vperm.xlu0 %3676, %v450
      %v3678 = vpop.permute.xlu0 %3677
      %3680 = vset.pattern.permute.xlu0 6
      %3681 = vperm.xlu0 %3680, %v451
      %v3682 = vpop.permute.xlu0 %3681
      %3684 = vset.pattern.permute.xlu0 6
      %3685 = vperm.xlu0 %3684, %v452
      %v3686 = vpop.permute.xlu0 %3685
      %3688 = vset.pattern.permute.xlu0 6
      %3689 = vperm.xlu0 %3688, %v453
      %v3690 = vpop.permute.xlu0 %3689
      %3692 = vset.pattern.permute.xlu0 6
      %3693 = vperm.xlu0 %3692, %v454
      %v3694 = vpop.permute.xlu0 %3693
      %3696 = vset.pattern.permute.xlu0 6
      %3697 = vperm.xlu0 %3696, %v455
      %v3698 = vpop.permute.xlu0 %3697
      %3700 = vset.pattern.permute.xlu0 6
      %3701 = vperm.xlu0 %3700, %v456
      %v3702 = vpop.permute.xlu0 %3701
      %3704 = vset.pattern.permute.xlu0 6
      %3705 = vperm.xlu0 %3704, %v457
      %v3706 = vpop.permute.xlu0 %3705
      %3708 = vset.pattern.permute.xlu0 6
      %3709 = vperm.xlu0 %3708, %v458
      %v3710 = vpop.permute.xlu0 %3709
      %3712 = vset.pattern.permute.xlu0 6
      %3713 = vperm.xlu0 %3712, %v459
      %v3714 = vpop.permute.xlu0 %3713
      %3716 = vset.pattern.permute.xlu0 6
      %3717 = vperm.xlu0 %3716, %v460
      %v3718 = vpop.permute.xlu0 %3717
      %3720 = vset.pattern.permute.xlu0 6
      %3721 = vperm.xlu0 %3720, %v461
      %v3722 = vpop.permute.xlu0 %3721
      %3724 = vset.pattern.permute.xlu0 6
      %3725 = vperm.xlu0 %3724, %v462
      %v3726 = vpop.permute.xlu0 %3725
      %3728 = vset.pattern.permute.xlu0 6
      %3729 = vperm.xlu0 %3728, %v463
      %v3730 = vpop.permute.xlu0 %3729
      %3732 = vset.pattern.permute.xlu0 6
      %3733 = vperm.xlu0 %3732, %v464
      %v3734 = vpop.permute.xlu0 %3733
      %3736 = vset.pattern.permute.xlu0 6
      %3737 = vperm.xlu0 %3736, %v465
      %v3738 = vpop.permute.xlu0 %3737
      %3740 = vset.pattern.permute.xlu0 6
      %3741 = vperm.xlu0 %3740, %v466
      %v3742 = vpop.permute.xlu0 %3741
      %3744 = vset.pattern.permute.xlu0 6
      %3745 = vperm.xlu0 %3744, %v467
      %v3746 = vpop.permute.xlu0 %3745
      %3748 = vset.pattern.permute.xlu0 6
      %3749 = vperm.xlu0 %3748, %v468
      %v3750 = vpop.permute.xlu0 %3749
      %3752 = vset.pattern.permute.xlu0 6
      %3753 = vperm.xlu0 %3752, %v469
      %v3754 = vpop.permute.xlu0 %3753
      %3756 = vset.pattern.permute.xlu0 6
      %3757 = vperm.xlu0 %3756, %v470
      %v3758 = vpop.permute.xlu0 %3757
      %3760 = vset.pattern.permute.xlu0 6
      %3761 = vperm.xlu0 %3760, %v471
      %v3762 = vpop.permute.xlu0 %3761
      %3764 = vset.pattern.permute.xlu0 6
      %3765 = vperm.xlu0 %3764, %v472
      %v3766 = vpop.permute.xlu0 %3765
      %3768 = vset.pattern.permute.xlu0 6
      %3769 = vperm.xlu0 %3768, %v473
      %v3770 = vpop.permute.xlu0 %3769
      %3772 = vset.pattern.permute.xlu0 6
      %3773 = vperm.xlu0 %3772, %v474
      %v3774 = vpop.permute.xlu0 %3773
      %3776 = vset.pattern.permute.xlu0 6
      %3777 = vperm.xlu0 %3776, %v475
      %v3778 = vpop.permute.xlu0 %3777
      %3780 = vset.pattern.permute.xlu0 6
      %3781 = vperm.xlu0 %3780, %v476
      %v3782 = vpop.permute.xlu0 %3781
      %3784 = vset.pattern.permute.xlu0 6
      %3785 = vperm.xlu0 %3784, %v477
      %v3786 = vpop.permute.xlu0 %3785
      %3788 = vset.pattern.permute.xlu0 6
      %3789 = vperm.xlu0 %3788, %v478
      %v3790 = vpop.permute.xlu0 %3789
      %3792 = vset.pattern.permute.xlu0 6
      %3793 = vperm.xlu0 %3792, %v479
      %v3794 = vpop.permute.xlu0 %3793
      %3796 = vset.pattern.permute.xlu0 6
      %3797 = vperm.xlu0 %3796, %v480
      %v3798 = vpop.permute.xlu0 %3797
      %v3800 = vperm.slane %v481, 6
      %v3801 = vperm.slane %v482, 6
      %v3802 = vmul.f32 %v3674, %v3800
      %v3803 = vmul.f32 %v3674, %v3801
      %v3804 = vmul.f32 %v3678, %v3800
      %v3805 = vmul.f32 %v3678, %v3801
      %v3806 = vmul.f32 %v3682, %v3800
      %v3807 = vmul.f32 %v3682, %v3801
      %v3808 = vmul.f32 %v3686, %v3800
      %v3809 = vmul.f32 %v3686, %v3801
      %v3810 = vmul.f32 %v3690, %v3800
      %v3811 = vmul.f32 %v3690, %v3801
      %v3812 = vmul.f32 %v3694, %v3800
      %v3813 = vmul.f32 %v3694, %v3801
      %v3814 = vmul.f32 %v3698, %v3800
      %v3815 = vmul.f32 %v3698, %v3801
      %v3816 = vmul.f32 %v3702, %v3800
      %v3817 = vmul.f32 %v3702, %v3801
      %v3818 = vmul.f32 %v3706, %v3800
      %v3819 = vmul.f32 %v3706, %v3801
      %v3820 = vmul.f32 %v3710, %v3800
      %v3821 = vmul.f32 %v3710, %v3801
      %v3822 = vmul.f32 %v3714, %v3800
      %v3823 = vmul.f32 %v3714, %v3801
      %v3824 = vmul.f32 %v3718, %v3800
      %v3825 = vmul.f32 %v3718, %v3801
      %v3826 = vmul.f32 %v3722, %v3800
      %v3827 = vmul.f32 %v3722, %v3801
      %v3828 = vmul.f32 %v3726, %v3800
      %v3829 = vmul.f32 %v3726, %v3801
      %v3830 = vmul.f32 %v3730, %v3800
      %v3831 = vmul.f32 %v3730, %v3801
      %v3832 = vmul.f32 %v3734, %v3800
      %v3833 = vmul.f32 %v3734, %v3801
      %v3834 = vmul.f32 %v3738, %v3800
      %v3835 = vmul.f32 %v3738, %v3801
      %v3836 = vmul.f32 %v3742, %v3800
      %v3837 = vmul.f32 %v3742, %v3801
      %v3838 = vmul.f32 %v3746, %v3800
      %v3839 = vmul.f32 %v3746, %v3801
      %v3840 = vmul.f32 %v3750, %v3800
      %v3841 = vmul.f32 %v3750, %v3801
      %v3842 = vmul.f32 %v3754, %v3800
      %v3843 = vmul.f32 %v3754, %v3801
      %v3844 = vmul.f32 %v3758, %v3800
      %v3845 = vmul.f32 %v3758, %v3801
      %v3846 = vmul.f32 %v3762, %v3800
      %v3847 = vmul.f32 %v3762, %v3801
      %v3848 = vmul.f32 %v3766, %v3800
      %v3849 = vmul.f32 %v3766, %v3801
      %v3850 = vmul.f32 %v3770, %v3800
      %v3851 = vmul.f32 %v3770, %v3801
      %v3852 = vmul.f32 %v3774, %v3800
      %v3853 = vmul.f32 %v3774, %v3801
      %v3854 = vmul.f32 %v3778, %v3800
      %v3855 = vmul.f32 %v3778, %v3801
      %v3856 = vmul.f32 %v3782, %v3800
      %v3857 = vmul.f32 %v3782, %v3801
      %v3858 = vmul.f32 %v3786, %v3800
      %v3859 = vmul.f32 %v3786, %v3801
      %v3860 = vmul.f32 %v3790, %v3800
      %v3861 = vmul.f32 %v3790, %v3801
      %v3862 = vmul.f32 %v3794, %v3800
      %v3863 = vmul.f32 %v3794, %v3801
      %v3864 = vmul.f32 %v3798, %v3800
      %v3865 = vmul.f32 %v3798, %v3801
      %3866 = vset.pattern.permute.xlu0 9
      %3867 = vperm.xlu0 %3866, %v449
      %v3868 = vpop.permute.xlu0 %3867
      %3870 = vset.pattern.permute.xlu0 9
      %3871 = vperm.xlu0 %3870, %v450
      %v3872 = vpop.permute.xlu0 %3871
      %3874 = vset.pattern.permute.xlu0 9
      %3875 = vperm.xlu0 %3874, %v451
      %v3876 = vpop.permute.xlu0 %3875
      %3878 = vset.pattern.permute.xlu0 9
      %3879 = vperm.xlu0 %3878, %v452
      %v3880 = vpop.permute.xlu0 %3879
      %3882 = vset.pattern.permute.xlu0 9
      %3883 = vperm.xlu0 %3882, %v453
      %v3884 = vpop.permute.xlu0 %3883
      %3886 = vset.pattern.permute.xlu0 9
      %3887 = vperm.xlu0 %3886, %v454
      %v3888 = vpop.permute.xlu0 %3887
      %3890 = vset.pattern.permute.xlu0 9
      %3891 = vperm.xlu0 %3890, %v455
      %v3892 = vpop.permute.xlu0 %3891
      %3894 = vset.pattern.permute.xlu0 9
      %3895 = vperm.xlu0 %3894, %v456
      %v3896 = vpop.permute.xlu0 %3895
      %3898 = vset.pattern.permute.xlu0 9
      %3899 = vperm.xlu0 %3898, %v457
      %v3900 = vpop.permute.xlu0 %3899
      %3902 = vset.pattern.permute.xlu0 9
      %3903 = vperm.xlu0 %3902, %v458
      %v3904 = vpop.permute.xlu0 %3903
      %3906 = vset.pattern.permute.xlu0 9
      %3907 = vperm.xlu0 %3906, %v459
      %v3908 = vpop.permute.xlu0 %3907
      %3910 = vset.pattern.permute.xlu0 9
      %3911 = vperm.xlu0 %3910, %v460
      %v3912 = vpop.permute.xlu0 %3911
      %3914 = vset.pattern.permute.xlu0 9
      %3915 = vperm.xlu0 %3914, %v461
      %v3916 = vpop.permute.xlu0 %3915
      %3918 = vset.pattern.permute.xlu0 9
      %3919 = vperm.xlu0 %3918, %v462
      %v3920 = vpop.permute.xlu0 %3919
      %3922 = vset.pattern.permute.xlu0 9
      %3923 = vperm.xlu0 %3922, %v463
      %v3924 = vpop.permute.xlu0 %3923
      %3926 = vset.pattern.permute.xlu0 9
      %3927 = vperm.xlu0 %3926, %v464
      %v3928 = vpop.permute.xlu0 %3927
      %3930 = vset.pattern.permute.xlu0 9
      %3931 = vperm.xlu0 %3930, %v465
      %v3932 = vpop.permute.xlu0 %3931
      %3934 = vset.pattern.permute.xlu0 9
      %3935 = vperm.xlu0 %3934, %v466
      %v3936 = vpop.permute.xlu0 %3935
      %3938 = vset.pattern.permute.xlu0 9
      %3939 = vperm.xlu0 %3938, %v467
      %v3940 = vpop.permute.xlu0 %3939
      %3942 = vset.pattern.permute.xlu0 9
      %3943 = vperm.xlu0 %3942, %v468
      %v3944 = vpop.permute.xlu0 %3943
      %3946 = vset.pattern.permute.xlu0 9
      %3947 = vperm.xlu0 %3946, %v469
      %v3948 = vpop.permute.xlu0 %3947
      %3950 = vset.pattern.permute.xlu0 9
      %3951 = vperm.xlu0 %3950, %v470
      %v3952 = vpop.permute.xlu0 %3951
      %3954 = vset.pattern.permute.xlu0 9
      %3955 = vperm.xlu0 %3954, %v471
      %v3956 = vpop.permute.xlu0 %3955
      %3958 = vset.pattern.permute.xlu0 9
      %3959 = vperm.xlu0 %3958, %v472
      %v3960 = vpop.permute.xlu0 %3959
      %3962 = vset.pattern.permute.xlu0 9
      %3963 = vperm.xlu0 %3962, %v473
      %v3964 = vpop.permute.xlu0 %3963
      %3966 = vset.pattern.permute.xlu0 9
      %3967 = vperm.xlu0 %3966, %v474
      %v3968 = vpop.permute.xlu0 %3967
      %3970 = vset.pattern.permute.xlu0 9
      %3971 = vperm.xlu0 %3970, %v475
      %v3972 = vpop.permute.xlu0 %3971
      %3974 = vset.pattern.permute.xlu0 9
      %3975 = vperm.xlu0 %3974, %v476
      %v3976 = vpop.permute.xlu0 %3975
      %3978 = vset.pattern.permute.xlu0 9
      %3979 = vperm.xlu0 %3978, %v477
      %v3980 = vpop.permute.xlu0 %3979
      %3982 = vset.pattern.permute.xlu0 9
      %3983 = vperm.xlu0 %3982, %v478
      %v3984 = vpop.permute.xlu0 %3983
      %3986 = vset.pattern.permute.xlu0 9
      %3987 = vperm.xlu0 %3986, %v479
      %v3988 = vpop.permute.xlu0 %3987
      %3990 = vset.pattern.permute.xlu0 9
      %3991 = vperm.xlu0 %3990, %v480
      %v3992 = vpop.permute.xlu0 %3991
      %v3994 = vperm.slane %v483, 1
      %v3995 = vperm.slane %v484, 1
      %v3996 = vadd.f32 %v3868, %v3994
      %v3997 = vadd.f32 %v3868, %v3995
      %v3998 = vadd.f32 %v3872, %v3994
      %v3999 = vadd.f32 %v3872, %v3995
      %v4000 = vadd.f32 %v3876, %v3994
      %v4001 = vadd.f32 %v3876, %v3995
      %v4002 = vadd.f32 %v3880, %v3994
      %v4003 = vadd.f32 %v3880, %v3995
      %v4004 = vadd.f32 %v3884, %v3994
      %v4005 = vadd.f32 %v3884, %v3995
      %v4006 = vadd.f32 %v3888, %v3994
      %v4007 = vadd.f32 %v3888, %v3995
      %v4008 = vadd.f32 %v3892, %v3994
      %v4009 = vadd.f32 %v3892, %v3995
      %v4010 = vadd.f32 %v3896, %v3994
      %v4011 = vadd.f32 %v3896, %v3995
      %v4012 = vadd.f32 %v3900, %v3994
      %v4013 = vadd.f32 %v3900, %v3995
      %v4014 = vadd.f32 %v3904, %v3994
      %v4015 = vadd.f32 %v3904, %v3995
      %v4016 = vadd.f32 %v3908, %v3994
      %v4017 = vadd.f32 %v3908, %v3995
      %v4018 = vadd.f32 %v3912, %v3994
      %v4019 = vadd.f32 %v3912, %v3995
      %v4020 = vadd.f32 %v3916, %v3994
      %v4021 = vadd.f32 %v3916, %v3995
      %v4022 = vadd.f32 %v3920, %v3994
      %v4023 = vadd.f32 %v3920, %v3995
      %v4024 = vadd.f32 %v3924, %v3994
      %v4025 = vadd.f32 %v3924, %v3995
      %v4026 = vadd.f32 %v3928, %v3994
      %v4027 = vadd.f32 %v3928, %v3995
      %v4028 = vadd.f32 %v3932, %v3994
      %v4029 = vadd.f32 %v3932, %v3995
      %v4030 = vadd.f32 %v3936, %v3994
      %v4031 = vadd.f32 %v3936, %v3995
      %v4032 = vadd.f32 %v3940, %v3994
      %v4033 = vadd.f32 %v3940, %v3995
      %v4034 = vadd.f32 %v3944, %v3994
      %v4035 = vadd.f32 %v3944, %v3995
      %v4036 = vadd.f32 %v3948, %v3994
      %v4037 = vadd.f32 %v3948, %v3995
      %v4038 = vadd.f32 %v3952, %v3994
      %v4039 = vadd.f32 %v3952, %v3995
      %v4040 = vadd.f32 %v3956, %v3994
      %v4041 = vadd.f32 %v3956, %v3995
      %v4042 = vadd.f32 %v3960, %v3994
      %v4043 = vadd.f32 %v3960, %v3995
      %v4044 = vadd.f32 %v3964, %v3994
      %v4045 = vadd.f32 %v3964, %v3995
      %v4046 = vadd.f32 %v3968, %v3994
      %v4047 = vadd.f32 %v3968, %v3995
      %v4048 = vadd.f32 %v3972, %v3994
      %v4049 = vadd.f32 %v3972, %v3995
      %v4050 = vadd.f32 %v3976, %v3994
      %v4051 = vadd.f32 %v3976, %v3995
      %v4052 = vadd.f32 %v3980, %v3994
      %v4053 = vadd.f32 %v3980, %v3995
      %v4054 = vadd.f32 %v3984, %v3994
      %v4055 = vadd.f32 %v3984, %v3995
      %v4056 = vadd.f32 %v3988, %v3994
      %v4057 = vadd.f32 %v3988, %v3995
      %v4058 = vadd.f32 %v3992, %v3994
      %v4059 = vadd.f32 %v3992, %v3995
      %v4060 = vrcp.pop %v3996
      %v4061 = vrcp.pop %v3997
      %v4062 = vrcp.pop %v3998
      %v4063 = vrcp.pop %v3999
      %v4064 = vrcp.pop %v4000
      %v4065 = vrcp.pop %v4001
      %v4066 = vrcp.pop %v4002
      %v4067 = vrcp.pop %v4003
      %v4068 = vrcp.pop %v4004
      %v4069 = vrcp.pop %v4005
      %v4070 = vrcp.pop %v4006
      %v4071 = vrcp.pop %v4007
      %v4072 = vrcp.pop %v4008
      %v4073 = vrcp.pop %v4009
      %v4074 = vrcp.pop %v4010
      %v4075 = vrcp.pop %v4011
      %v4076 = vrcp.pop %v4012
      %v4077 = vrcp.pop %v4013
      %v4078 = vrcp.pop %v4014
      %v4079 = vrcp.pop %v4015
      %v4080 = vrcp.pop %v4016
      %v4081 = vrcp.pop %v4017
      %v4082 = vrcp.pop %v4018
      %v4083 = vrcp.pop %v4019
      %v4084 = vrcp.pop %v4020
      %v4085 = vrcp.pop %v4021
      %v4086 = vrcp.pop %v4022
      %v4087 = vrcp.pop %v4023
      %v4088 = vrcp.pop %v4024
      %v4089 = vrcp.pop %v4025
      %v4090 = vrcp.pop %v4026
      %v4091 = vrcp.pop %v4027
      %v4092 = vrcp.pop %v4028
      %v4093 = vrcp.pop %v4029
      %v4094 = vrcp.pop %v4030
      %v4095 = vrcp.pop %v4031
      %v4096 = vrcp.pop %v4032
      %v4097 = vrcp.pop %v4033
      %v4098 = vrcp.pop %v4034
      %v4099 = vrcp.pop %v4035
      %v4100 = vrcp.pop %v4036
      %v4101 = vrcp.pop %v4037
      %v4102 = vrcp.pop %v4038
      %v4103 = vrcp.pop %v4039
      %v4104 = vrcp.pop %v4040
      %v4105 = vrcp.pop %v4041
      %v4106 = vrcp.pop %v4042
      %v4107 = vrcp.pop %v4043
      %v4108 = vrcp.pop %v4044
      %v4109 = vrcp.pop %v4045
      %v4110 = vrcp.pop %v4046
      %v4111 = vrcp.pop %v4047
      %v4112 = vrcp.pop %v4048
      %v4113 = vrcp.pop %v4049
      %v4114 = vrcp.pop %v4050
      %v4115 = vrcp.pop %v4051
      %v4116 = vrcp.pop %v4052
      %v4117 = vrcp.pop %v4053
      %v4118 = vrcp.pop %v4054
      %v4119 = vrcp.pop %v4055
      %v4120 = vrcp.pop %v4056
      %v4121 = vrcp.pop %v4057
      %v4122 = vrcp.pop %v4058
      %v4123 = vrcp.pop %v4059
      %v4124 = vmul.f32 %v3802, %v4060
      %v4125 = vmul.f32 %v3803, %v4061
      %v4126 = vmul.f32 %v3804, %v4062
      %v4127 = vmul.f32 %v3805, %v4063
      %v4128 = vmul.f32 %v3806, %v4064
      %v4129 = vmul.f32 %v3807, %v4065
      %v4130 = vmul.f32 %v3808, %v4066
      %v4131 = vmul.f32 %v3809, %v4067
      %v4132 = vmul.f32 %v3810, %v4068
      %v4133 = vmul.f32 %v3811, %v4069
      %v4134 = vmul.f32 %v3812, %v4070
      %v4135 = vmul.f32 %v3813, %v4071
      %v4136 = vmul.f32 %v3814, %v4072
      %v4137 = vmul.f32 %v3815, %v4073
      %v4138 = vmul.f32 %v3816, %v4074
      %v4139 = vmul.f32 %v3817, %v4075
      %v4140 = vmul.f32 %v3818, %v4076
      %v4141 = vmul.f32 %v3819, %v4077
      %v4142 = vmul.f32 %v3820, %v4078
      %v4143 = vmul.f32 %v3821, %v4079
      %v4144 = vmul.f32 %v3822, %v4080
      %v4145 = vmul.f32 %v3823, %v4081
      %v4146 = vmul.f32 %v3824, %v4082
      %v4147 = vmul.f32 %v3825, %v4083
      %v4148 = vmul.f32 %v3826, %v4084
      %v4149 = vmul.f32 %v3827, %v4085
      %v4150 = vmul.f32 %v3828, %v4086
      %v4151 = vmul.f32 %v3829, %v4087
      %v4152 = vmul.f32 %v3830, %v4088
      %v4153 = vmul.f32 %v3831, %v4089
      %v4154 = vmul.f32 %v3832, %v4090
      %v4155 = vmul.f32 %v3833, %v4091
      %v4156 = vmul.f32 %v3834, %v4092
      %v4157 = vmul.f32 %v3835, %v4093
      %v4158 = vmul.f32 %v3836, %v4094
      %v4159 = vmul.f32 %v3837, %v4095
      %v4160 = vmul.f32 %v3838, %v4096
      %v4161 = vmul.f32 %v3839, %v4097
      %v4162 = vmul.f32 %v3840, %v4098
      %v4163 = vmul.f32 %v3841, %v4099
      %v4164 = vmul.f32 %v3842, %v4100
      %v4165 = vmul.f32 %v3843, %v4101
      %v4166 = vmul.f32 %v3844, %v4102
      %v4167 = vmul.f32 %v3845, %v4103
      %v4168 = vmul.f32 %v3846, %v4104
      %v4169 = vmul.f32 %v3847, %v4105
      %v4170 = vmul.f32 %v3848, %v4106
      %v4171 = vmul.f32 %v3849, %v4107
      %v4172 = vmul.f32 %v3850, %v4108
      %v4173 = vmul.f32 %v3851, %v4109
      %v4174 = vmul.f32 %v3852, %v4110
      %v4175 = vmul.f32 %v3853, %v4111
      %v4176 = vmul.f32 %v3854, %v4112
      %v4177 = vmul.f32 %v3855, %v4113
      %v4178 = vmul.f32 %v3856, %v4114
      %v4179 = vmul.f32 %v3857, %v4115
      %v4180 = vmul.f32 %v3858, %v4116
      %v4181 = vmul.f32 %v3859, %v4117
      %v4182 = vmul.f32 %v3860, %v4118
      %v4183 = vmul.f32 %v3861, %v4119
      %v4184 = vmul.f32 %v3862, %v4120
      %v4185 = vmul.f32 %v3863, %v4121
      %v4186 = vmul.f32 %v3864, %v4122
      %v4187 = vmul.f32 %v3865, %v4123
      %v4188 = vadd.f32 %v3608, %v4124
      %v4189 = vadd.f32 %v3609, %v4125
      %v4190 = vadd.f32 %v3610, %v4126
      %v4191 = vadd.f32 %v3611, %v4127
      %v4192 = vadd.f32 %v3612, %v4128
      %v4193 = vadd.f32 %v3613, %v4129
      %v4194 = vadd.f32 %v3614, %v4130
      %v4195 = vadd.f32 %v3615, %v4131
      %v4196 = vadd.f32 %v3616, %v4132
      %v4197 = vadd.f32 %v3617, %v4133
      %v4198 = vadd.f32 %v3618, %v4134
      %v4199 = vadd.f32 %v3619, %v4135
      %v4200 = vadd.f32 %v3620, %v4136
      %v4201 = vadd.f32 %v3621, %v4137
      %v4202 = vadd.f32 %v3622, %v4138
      %v4203 = vadd.f32 %v3623, %v4139
      %v4204 = vadd.f32 %v3624, %v4140
      %v4205 = vadd.f32 %v3625, %v4141
      %v4206 = vadd.f32 %v3626, %v4142
      %v4207 = vadd.f32 %v3627, %v4143
      %v4208 = vadd.f32 %v3628, %v4144
      %v4209 = vadd.f32 %v3629, %v4145
      %v4210 = vadd.f32 %v3630, %v4146
      %v4211 = vadd.f32 %v3631, %v4147
      %v4212 = vadd.f32 %v3632, %v4148
      %v4213 = vadd.f32 %v3633, %v4149
      %v4214 = vadd.f32 %v3634, %v4150
      %v4215 = vadd.f32 %v3635, %v4151
      %v4216 = vadd.f32 %v3636, %v4152
      %v4217 = vadd.f32 %v3637, %v4153
      %v4218 = vadd.f32 %v3638, %v4154
      %v4219 = vadd.f32 %v3639, %v4155
      %v4220 = vadd.f32 %v3640, %v4156
      %v4221 = vadd.f32 %v3641, %v4157
      %v4222 = vadd.f32 %v3642, %v4158
      %v4223 = vadd.f32 %v3643, %v4159
      %v4224 = vadd.f32 %v3644, %v4160
      %v4225 = vadd.f32 %v3645, %v4161
      %v4226 = vadd.f32 %v3646, %v4162
      %v4227 = vadd.f32 %v3647, %v4163
      %v4228 = vadd.f32 %v3648, %v4164
      %v4229 = vadd.f32 %v3649, %v4165
      %v4230 = vadd.f32 %v3650, %v4166
      %v4231 = vadd.f32 %v3651, %v4167
      %v4232 = vadd.f32 %v3652, %v4168
      %v4233 = vadd.f32 %v3653, %v4169
      %v4234 = vadd.f32 %v3654, %v4170
      %v4235 = vadd.f32 %v3655, %v4171
      %v4236 = vadd.f32 %v3656, %v4172
      %v4237 = vadd.f32 %v3657, %v4173
      %v4238 = vadd.f32 %v3658, %v4174
      %v4239 = vadd.f32 %v3659, %v4175
      %v4240 = vadd.f32 %v3660, %v4176
      %v4241 = vadd.f32 %v3661, %v4177
      %v4242 = vadd.f32 %v3662, %v4178
      %v4243 = vadd.f32 %v3663, %v4179
      %v4244 = vadd.f32 %v3664, %v4180
      %v4245 = vadd.f32 %v3665, %v4181
      %v4246 = vadd.f32 %v3666, %v4182
      %v4247 = vadd.f32 %v3667, %v4183
      %v4248 = vadd.f32 %v3668, %v4184
      %v4249 = vadd.f32 %v3669, %v4185
      %v4250 = vadd.f32 %v3670, %v4186
      %v4251 = vadd.f32 %v3671, %v4187
      %v4252 = vld [vmem:[#allocation2] sm:$0xff]
      %v4253 = vld [vmem:[#allocation2 + $0x8] sm:$0xff]
      %v4254 = vld [vmem:[#allocation2 + $0x10] sm:$0xff]
      %v4255 = vld [vmem:[#allocation2 + $0x18] sm:$0xff]
      %v4256 = vld [vmem:[#allocation2 + $0x20] sm:$0xff]
      %v4257 = vld [vmem:[#allocation2 + $0x28] sm:$0xff]
      %v4258 = vld [vmem:[#allocation2 + $0x30] sm:$0xff]
      %v4259 = vld [vmem:[#allocation2 + $0x38] sm:$0xff]
      %v4260 = vld [vmem:[#allocation2 + $0x40] sm:$0xff]
      %v4261 = vld [vmem:[#allocation2 + $0x48] sm:$0xff]
      %v4262 = vld [vmem:[#allocation2 + $0x50] sm:$0xff]
      %v4263 = vld [vmem:[#allocation2 + $0x58] sm:$0xff]
      %v4264 = vld [vmem:[#allocation2 + $0x60] sm:$0xff]
      %v4265 = vld [vmem:[#allocation2 + $0x68] sm:$0xff]
      %v4266 = vld [vmem:[#allocation2 + $0x70] sm:$0xff]
      %v4267 = vld [vmem:[#allocation2 + $0x78] sm:$0xff]
      %v4268 = vld [vmem:[#allocation2 + $0x80] sm:$0xff]
      %v4269 = vld [vmem:[#allocation2 + $0x88] sm:$0xff]
      %v4270 = vld [vmem:[#allocation2 + $0x90] sm:$0xff]
      %v4271 = vld [vmem:[#allocation2 + $0x98] sm:$0xff]
      %v4272 = vld [vmem:[#allocation2 + $0xa0] sm:$0xff]
      %v4273 = vld [vmem:[#allocation2 + $0xa8] sm:$0xff]
      %v4274 = vld [vmem:[#allocation2 + $0xb0] sm:$0xff]
      %v4275 = vld [vmem:[#allocation2 + $0xb8] sm:$0xff]
      %v4276 = vld [vmem:[#allocation2 + $0xc0] sm:$0xff]
      %v4277 = vld [vmem:[#allocation2 + $0xc8] sm:$0xff]
      %v4278 = vld [vmem:[#allocation2 + $0xd0] sm:$0xff]
      %v4279 = vld [vmem:[#allocation2 + $0xd8] sm:$0xff]
      %v4280 = vld [vmem:[#allocation2 + $0xe0] sm:$0xff]
      %v4281 = vld [vmem:[#allocation2 + $0xe8] sm:$0xff]
      %v4282 = vld [vmem:[#allocation2 + $0xf0] sm:$0xff]
      %v4283 = vld [vmem:[#allocation2 + $0xf8] sm:$0xff]
      %v4284 = vld [vmem:[#allocation2 + $0x100] sm:$0xff]
      %v4285 = vld [vmem:[#allocation2 + $0x108] sm:$0xff]
      %v4286 = vld [vmem:[#allocation2 + $0x110] sm:$0xff]
      %v4287 = vld [vmem:[#allocation2 + $0x118] sm:$0xff]
      %v4288 = vld [vmem:[#allocation2 + $0x120] sm:$0xff]
      %v4289 = vld [vmem:[#allocation2 + $0x128] sm:$0xff]
      %v4290 = vld [vmem:[#allocation2 + $0x130] sm:$0xff]
      %v4291 = vld [vmem:[#allocation2 + $0x138] sm:$0xff]
      %v4292 = vld [vmem:[#allocation2 + $0x140] sm:$0xff]
      %v4293 = vld [vmem:[#allocation2 + $0x148] sm:$0xff]
      %v4294 = vld [vmem:[#allocation2 + $0x150] sm:$0xff]
      %v4295 = vld [vmem:[#allocation2 + $0x158] sm:$0xff]
      %v4296 = vld [vmem:[#allocation2 + $0x160] sm:$0xff]
      %v4297 = vld [vmem:[#allocation2 + $0x168] sm:$0xff]
      %v4298 = vld [vmem:[#allocation2 + $0x170] sm:$0xff]
      %v4299 = vld [vmem:[#allocation2 + $0x178] sm:$0xff]
      %v4300 = vld [vmem:[#allocation2 + $0x180] sm:$0xff]
      %v4301 = vld [vmem:[#allocation2 + $0x188] sm:$0xff]
      %v4302 = vld [vmem:[#allocation2 + $0x190] sm:$0xff]
      %v4303 = vld [vmem:[#allocation2 + $0x198] sm:$0xff]
      %v4304 = vld [vmem:[#allocation2 + $0x1a0] sm:$0xff]
      %v4305 = vld [vmem:[#allocation2 + $0x1a8] sm:$0xff]
      %v4306 = vld [vmem:[#allocation2 + $0x1b0] sm:$0xff]
      %v4307 = vld [vmem:[#allocation2 + $0x1b8] sm:$0xff]
      %v4308 = vld [vmem:[#allocation2 + $0x1c0] sm:$0xff]
      %v4309 = vld [vmem:[#allocation2 + $0x1c8] sm:$0xff]
      %v4310 = vld [vmem:[#allocation2 + $0x1d0] sm:$0xff]
      %v4311 = vld [vmem:[#allocation2 + $0x1d8] sm:$0xff]
      %v4312 = vld [vmem:[#allocation2 + $0x1e0] sm:$0xff]
      %v4313 = vld [vmem:[#allocation2 + $0x1e8] sm:$0xff]
      %v4314 = vld [vmem:[#allocation2 + $0x1f0] sm:$0xff]
      %v4315 = vld [vmem:[#allocation2 + $0x1f8] sm:$0xff]
      %v4316 = vmul.f32 %v2449, %v4188
      %v4317 = vmul.f32 %v2451, %v4189
      %v4318 = vmul.f32 %v2453, %v4190
      %v4319 = vmul.f32 %v2455, %v4191
      %v4320 = vmul.f32 %v2457, %v4192
      %v4321 = vmul.f32 %v2459, %v4193
      %v4322 = vmul.f32 %v2461, %v4194
      %v4323 = vmul.f32 %v2463, %v4195
      %v4324 = vmul.f32 %v2465, %v4196
      %v4325 = vmul.f32 %v2467, %v4197
      %v4326 = vmul.f32 %v2469, %v4198
      %v4327 = vmul.f32 %v2471, %v4199
      %v4328 = vmul.f32 %v2473, %v4200
      %v4329 = vmul.f32 %v2475, %v4201
      %v4330 = vmul.f32 %v2477, %v4202
      %v4331 = vmul.f32 %v2479, %v4203
      %v4332 = vmul.f32 %v2481, %v4204
      %v4333 = vmul.f32 %v2483, %v4205
      %v4334 = vmul.f32 %v2485, %v4206
      %v4335 = vmul.f32 %v2487, %v4207
      %v4336 = vmul.f32 %v2489, %v4208
      %v4337 = vmul.f32 %v2491, %v4209
      %v4338 = vmul.f32 %v2493, %v4210
      %v4339 = vmul.f32 %v2495, %v4211
      %v4340 = vmul.f32 %v2497, %v4212
      %v4341 = vmul.f32 %v2499, %v4213
      %v4342 = vmul.f32 %v2501, %v4214
      %v4343 = vmul.f32 %v2503, %v4215
      %v4344 = vmul.f32 %v2505, %v4216
      %v4345 = vmul.f32 %v2507, %v4217
      %v4346 = vmul.f32 %v2509, %v4218
      %v4347 = vmul.f32 %v2511, %v4219
      %v4348 = vmul.f32 %v2513, %v4220
      %v4349 = vmul.f32 %v2515, %v4221
      %v4350 = vmul.f32 %v2517, %v4222
      %v4351 = vmul.f32 %v2519, %v4223
      %v4352 = vmul.f32 %v2521, %v4224
      %v4353 = vmul.f32 %v2523, %v4225
      %v4354 = vmul.f32 %v2525, %v4226
      %v4355 = vmul.f32 %v2527, %v4227
      %v4356 = vmul.f32 %v2529, %v4228
      %v4357 = vmul.f32 %v2531, %v4229
      %v4358 = vmul.f32 %v2533, %v4230
      %v4359 = vmul.f32 %v2535, %v4231
      %v4360 = vmul.f32 %v2537, %v4232
      %v4361 = vmul.f32 %v2539, %v4233
      %v4362 = vmul.f32 %v2541, %v4234
      %v4363 = vmul.f32 %v2543, %v4235
      %v4364 = vmul.f32 %v2545, %v4236
      %v4365 = vmul.f32 %v2547, %v4237
      %v4366 = vmul.f32 %v2549, %v4238
      %v4367 = vmul.f32 %v2551, %v4239
      %v4368 = vmul.f32 %v2553, %v4240
      %v4369 = vmul.f32 %v2555, %v4241
      %v4370 = vmul.f32 %v2557, %v4242
      %v4371 = vmul.f32 %v2559, %v4243
      %v4372 = vmul.f32 %v2561, %v4244
      %v4373 = vmul.f32 %v2563, %v4245
      %v4374 = vmul.f32 %v2565, %v4246
      %v4375 = vmul.f32 %v2567, %v4247
      %v4376 = vmul.f32 %v2569, %v4248
      %v4377 = vmul.f32 %v2571, %v4249
      %v4378 = vmul.f32 %v2573, %v4250
      %v4379 = vmul.f32 %v2575, %v4251
      %v4380 = vadd.f32 %v4252, %v4316
      %v4381 = vadd.f32 %v4253, %v4317
      %v4382 = vadd.f32 %v4254, %v4318
      %v4383 = vadd.f32 %v4255, %v4319
      %v4384 = vadd.f32 %v4256, %v4320
      %v4385 = vadd.f32 %v4257, %v4321
      %v4386 = vadd.f32 %v4258, %v4322
      %v4387 = vadd.f32 %v4259, %v4323
      %v4388 = vadd.f32 %v4260, %v4324
      %v4389 = vadd.f32 %v4261, %v4325
      %v4390 = vadd.f32 %v4262, %v4326
      %v4391 = vadd.f32 %v4263, %v4327
      %v4392 = vadd.f32 %v4264, %v4328
      %v4393 = vadd.f32 %v4265, %v4329
      %v4394 = vadd.f32 %v4266, %v4330
      %v4395 = vadd.f32 %v4267, %v4331
      %v4396 = vadd.f32 %v4268, %v4332
      %v4397 = vadd.f32 %v4269, %v4333
      %v4398 = vadd.f32 %v4270, %v4334
      %v4399 = vadd.f32 %v4271, %v4335
      %v4400 = vadd.f32 %v4272, %v4336
      %v4401 = vadd.f32 %v4273, %v4337
      %v4402 = vadd.f32 %v4274, %v4338
      %v4403 = vadd.f32 %v4275, %v4339
      %v4404 = vadd.f32 %v4276, %v4340
      %v4405 = vadd.f32 %v4277, %v4341
      %v4406 = vadd.f32 %v4278, %v4342
      %v4407 = vadd.f32 %v4279, %v4343
      %v4408 = vadd.f32 %v4280, %v4344
      %v4409 = vadd.f32 %v4281, %v4345
      %v4410 = vadd.f32 %v4282, %v4346
      %v4411 = vadd.f32 %v4283, %v4347
      %v4412 = vadd.f32 %v4284, %v4348
      %v4413 = vadd.f32 %v4285, %v4349
      %v4414 = vadd.f32 %v4286, %v4350
      %v4415 = vadd.f32 %v4287, %v4351
      %v4416 = vadd.f32 %v4288, %v4352
      %v4417 = vadd.f32 %v4289, %v4353
      %v4418 = vadd.f32 %v4290, %v4354
      %v4419 = vadd.f32 %v4291, %v4355
      %v4420 = vadd.f32 %v4292, %v4356
      %v4421 = vadd.f32 %v4293, %v4357
      %v4422 = vadd.f32 %v4294, %v4358
      %v4423 = vadd.f32 %v4295, %v4359
      %v4424 = vadd.f32 %v4296, %v4360
      %v4425 = vadd.f32 %v4297, %v4361
      %v4426 = vadd.f32 %v4298, %v4362
      %v4427 = vadd.f32 %v4299, %v4363
      %v4428 = vadd.f32 %v4300, %v4364
      %v4429 = vadd.f32 %v4301, %v4365
      %v4430 = vadd.f32 %v4302, %v4366
      %v4431 = vadd.f32 %v4303, %v4367
      %v4432 = vadd.f32 %v4304, %v4368
      %v4433 = vadd.f32 %v4305, %v4369
      %v4434 = vadd.f32 %v4306, %v4370
      %v4435 = vadd.f32 %v4307, %v4371
      %v4436 = vadd.f32 %v4308, %v4372
      %v4437 = vadd.f32 %v4309, %v4373
      %v4438 = vadd.f32 %v4310, %v4374
      %v4439 = vadd.f32 %v4311, %v4375
      %v4440 = vadd.f32 %v4312, %v4376
      %v4441 = vadd.f32 %v4313, %v4377
      %v4442 = vadd.f32 %v4314, %v4378
      %v4443 = vadd.f32 %v4315, %v4379
      %4444 = vst [vmem:[#allocation2] sm:$0xff] %v4380
      %4445 = vst [vmem:[#allocation2 + $0x8] sm:$0xff] %v4381
      %4446 = vst [vmem:[#allocation2 + $0x10] sm:$0xff] %v4382
      %4447 = vst [vmem:[#allocation2 + $0x18] sm:$0xff] %v4383
      %4448 = vst [vmem:[#allocation2 + $0x20] sm:$0xff] %v4384
      %4449 = vst [vmem:[#allocation2 + $0x28] sm:$0xff] %v4385
      %4450 = vst [vmem:[#allocation2 + $0x30] sm:$0xff] %v4386
      %4451 = vst [vmem:[#allocation2 + $0x38] sm:$0xff] %v4387
      %4452 = vst [vmem:[#allocation2 + $0x40] sm:$0xff] %v4388
      %4453 = vst [vmem:[#allocation2 + $0x48] sm:$0xff] %v4389
      %4454 = vst [vmem:[#allocation2 + $0x50] sm:$0xff] %v4390
      %4455 = vst [vmem:[#allocation2 + $0x58] sm:$0xff] %v4391
      %4456 = vst [vmem:[#allocation2 + $0x60] sm:$0xff] %v4392
      %4457 = vst [vmem:[#allocation2 + $0x68] sm:$0xff] %v4393
      %4458 = vst [vmem:[#allocation2 + $0x70] sm:$0xff] %v4394
      %4459 = vst [vmem:[#allocation2 + $0x78] sm:$0xff] %v4395
      %4460 = vst [vmem:[#allocation2 + $0x80] sm:$0xff] %v4396
      %4461 = vst [vmem:[#allocation2 + $0x88] sm:$0xff] %v4397
      %4462 = vst [vmem:[#allocation2 + $0x90] sm:$0xff] %v4398
      %4463 = vst [vmem:[#allocation2 + $0x98] sm:$0xff] %v4399
      %4464 = vst [vmem:[#allocation2 + $0xa0] sm:$0xff] %v4400
      %4465 = vst [vmem:[#allocation2 + $0xa8] sm:$0xff] %v4401
      %4466 = vst [vmem:[#allocation2 + $0xb0] sm:$0xff] %v4402
      %4467 = vst [vmem:[#allocation2 + $0xb8] sm:$0xff] %v4403
      %4468 = vst [vmem:[#allocation2 + $0xc0] sm:$0xff] %v4404
      %4469 = vst [vmem:[#allocation2 + $0xc8] sm:$0xff] %v4405
      %4470 = vst [vmem:[#allocation2 + $0xd0] sm:$0xff] %v4406
      %4471 = vst [vmem:[#allocation2 + $0xd8] sm:$0xff] %v4407
      %4472 = vst [vmem:[#allocation2 + $0xe0] sm:$0xff] %v4408
      %4473 = vst [vmem:[#allocation2 + $0xe8] sm:$0xff] %v4409
      %4474 = vst [vmem:[#allocation2 + $0xf0] sm:$0xff] %v4410
      %4475 = vst [vmem:[#allocation2 + $0xf8] sm:$0xff] %v4411
      %4476 = vst [vmem:[#allocation2 + $0x100] sm:$0xff] %v4412
      %4477 = vst [vmem:[#allocation2 + $0x108] sm:$0xff] %v4413
      %4478 = vst [vmem:[#allocation2 + $0x110] sm:$0xff] %v4414
      %4479 = vst [vmem:[#allocation2 + $0x118] sm:$0xff] %v4415
      %4480 = vst [vmem:[#allocation2 + $0x120] sm:$0xff] %v4416
      %4481 = vst [vmem:[#allocation2 + $0x128] sm:$0xff] %v4417
      %4482 = vst [vmem:[#allocation2 + $0x130] sm:$0xff] %v4418
      %4483 = vst [vmem:[#allocation2 + $0x138] sm:$0xff] %v4419
      %4484 = vst [vmem:[#allocation2 + $0x140] sm:$0xff] %v4420
      %4485 = vst [vmem:[#allocation2 + $0x148] sm:$0xff] %v4421
      %4486 = vst [vmem:[#allocation2 + $0x150] sm:$0xff] %v4422
      %4487 = vst [vmem:[#allocation2 + $0x158] sm:$0xff] %v4423
      %4488 = vst [vmem:[#allocation2 + $0x160] sm:$0xff] %v4424
      %4489 = vst [vmem:[#allocation2 + $0x168] sm:$0xff] %v4425
      %4490 = vst [vmem:[#allocation2 + $0x170] sm:$0xff] %v4426
      %4491 = vst [vmem:[#allocation2 + $0x178] sm:$0xff] %v4427
      %4492 = vst [vmem:[#allocation2 + $0x180] sm:$0xff] %v4428
      %4493 = vst [vmem:[#allocation2 + $0x188] sm:$0xff] %v4429
      %4494 = vst [vmem:[#allocation2 + $0x190] sm:$0xff] %v4430
      %4495 = vst [vmem:[#allocation2 + $0x198] sm:$0xff] %v4431
      %4496 = vst [vmem:[#allocation2 + $0x1a0] sm:$0xff] %v4432
      %4497 = vst [vmem:[#allocation2 + $0x1a8] sm:$0xff] %v4433
      %4498 = vst [vmem:[#allocation2 + $0x1b0] sm:$0xff] %v4434
      %4499 = vst [vmem:[#allocation2 + $0x1b8] sm:$0xff] %v4435
      %4500 = vst [vmem:[#allocation2 + $0x1c0] sm:$0xff] %v4436
      %4501 = vst [vmem:[#allocation2 + $0x1c8] sm:$0xff] %v4437
      %4502 = vst [vmem:[#allocation2 + $0x1d0] sm:$0xff] %v4438
      %4503 = vst [vmem:[#allocation2 + $0x1d8] sm:$0xff] %v4439
      %4504 = vst [vmem:[#allocation2 + $0x1e0] sm:$0xff] %v4440
      %4505 = vst [vmem:[#allocation2 + $0x1e8] sm:$0xff] %v4441
      %4506 = vst [vmem:[#allocation2 + $0x1f0] sm:$0xff] %v4442
      %4507 = vst [vmem:[#allocation2 + $0x1f8] sm:$0xff] %v4443
      // Predicated region
      $region41: #{fcwcrf_loss.1} parent=35 // pred_check
        %p4508 = pneg %p347
      $region42: #{fcwcrf_loss.1} parent=35 // pred_check_branch
        %4510 = sbr.rel (%p4508) target = $region44
      $region43: #{fcwcrf_loss.1} parent=35 // pred_region
        %v4511 = vld [vmem:[#allocation2] sm:$0xff]
        %v4512 = vld [vmem:[#allocation2 + $0x8] sm:$0xff]
        %v4513 = vld [vmem:[#allocation2 + $0x10] sm:$0xff]
        %v4514 = vld [vmem:[#allocation2 + $0x18] sm:$0xff]
        %v4515 = vld [vmem:[#allocation2 + $0x20] sm:$0xff]
        %v4516 = vld [vmem:[#allocation2 + $0x28] sm:$0xff]
        %v4517 = vld [vmem:[#allocation2 + $0x30] sm:$0xff]
        %v4518 = vld [vmem:[#allocation2 + $0x38] sm:$0xff]
        %v4519 = vld [vmem:[#allocation2 + $0x40] sm:$0xff]
        %v4520 = vld [vmem:[#allocation2 + $0x48] sm:$0xff]
        %v4521 = vld [vmem:[#allocation2 + $0x50] sm:$0xff]
        %v4522 = vld [vmem:[#allocation2 + $0x58] sm:$0xff]
        %v4523 = vld [vmem:[#allocation2 + $0x60] sm:$0xff]
        %v4524 = vld [vmem:[#allocation2 + $0x68] sm:$0xff]
        %v4525 = vld [vmem:[#allocation2 + $0x70] sm:$0xff]
        %v4526 = vld [vmem:[#allocation2 + $0x78] sm:$0xff]
        %v4527 = vld [vmem:[#allocation2 + $0x80] sm:$0xff]
        %v4528 = vld [vmem:[#allocation2 + $0x88] sm:$0xff]
        %v4529 = vld [vmem:[#allocation2 + $0x90] sm:$0xff]
        %v4530 = vld [vmem:[#allocation2 + $0x98] sm:$0xff]
        %v4531 = vld [vmem:[#allocation2 + $0xa0] sm:$0xff]
        %v4532 = vld [vmem:[#allocation2 + $0xa8] sm:$0xff]
        %v4533 = vld [vmem:[#allocation2 + $0xb0] sm:$0xff]
        %v4534 = vld [vmem:[#allocation2 + $0xb8] sm:$0xff]
        %v4535 = vld [vmem:[#allocation2 + $0xc0] sm:$0xff]
        %v4536 = vld [vmem:[#allocation2 + $0xc8] sm:$0xff]
        %v4537 = vld [vmem:[#allocation2 + $0xd0] sm:$0xff]
        %v4538 = vld [vmem:[#allocation2 + $0xd8] sm:$0xff]
        %v4539 = vld [vmem:[#allocation2 + $0xe0] sm:$0xff]
        %v4540 = vld [vmem:[#allocation2 + $0xe8] sm:$0xff]
        %v4541 = vld [vmem:[#allocation2 + $0xf0] sm:$0xff]
        %v4542 = vld [vmem:[#allocation2 + $0xf8] sm:$0xff]
        %v4543 = vld [vmem:[#allocation2 + $0x100] sm:$0xff]
        %v4544 = vld [vmem:[#allocation2 + $0x108] sm:$0xff]
        %v4545 = vld [vmem:[#allocation2 + $0x110] sm:$0xff]
        %v4546 = vld [vmem:[#allocation2 + $0x118] sm:$0xff]
        %v4547 = vld [vmem:[#allocation2 + $0x120] sm:$0xff]
        %v4548 = vld [vmem:[#allocation2 + $0x128] sm:$0xff]
        %v4549 = vld [vmem:[#allocation2 + $0x130] sm:$0xff]
        %v4550 = vld [vmem:[#allocation2 + $0x138] sm:$0xff]
        %v4551 = vld [vmem:[#allocation2 + $0x140] sm:$0xff]
        %v4552 = vld [vmem:[#allocation2 + $0x148] sm:$0xff]
        %v4553 = vld [vmem:[#allocation2 + $0x150] sm:$0xff]
        %v4554 = vld [vmem:[#allocation2 + $0x158] sm:$0xff]
        %v4555 = vld [vmem:[#allocation2 + $0x160] sm:$0xff]
        %v4556 = vld [vmem:[#allocation2 + $0x168] sm:$0xff]
        %v4557 = vld [vmem:[#allocation2 + $0x170] sm:$0xff]
        %v4558 = vld [vmem:[#allocation2 + $0x178] sm:$0xff]
        %v4559 = vld [vmem:[#allocation2 + $0x180] sm:$0xff]
        %v4560 = vld [vmem:[#allocation2 + $0x188] sm:$0xff]
        %v4561 = vld [vmem:[#allocation2 + $0x190] sm:$0xff]
        %v4562 = vld [vmem:[#allocation2 + $0x198] sm:$0xff]
        %v4563 = vld [vmem:[#allocation2 + $0x1a0] sm:$0xff]
        %v4564 = vld [vmem:[#allocation2 + $0x1a8] sm:$0xff]
        %v4565 = vld [vmem:[#allocation2 + $0x1b0] sm:$0xff]
        %v4566 = vld [vmem:[#allocation2 + $0x1b8] sm:$0xff]
        %v4567 = vld [vmem:[#allocation2 + $0x1c0] sm:$0xff]
        %v4568 = vld [vmem:[#allocation2 + $0x1c8] sm:$0xff]
        %v4569 = vld [vmem:[#allocation2 + $0x1d0] sm:$0xff]
        %v4570 = vld [vmem:[#allocation2 + $0x1d8] sm:$0xff]
        %v4571 = vld [vmem:[#allocation2 + $0x1e0] sm:$0xff]
        %v4572 = vld [vmem:[#allocation2 + $0x1e8] sm:$0xff]
        %v4573 = vld [vmem:[#allocation2 + $0x1f0] sm:$0xff]
        %v4574 = vld [vmem:[#allocation2 + $0x1f8] sm:$0xff]
        %v4575 = vadd.f32 %v4511, %v4512
        %v4576 = vadd.f32 %v4575, %v4513
        %v4577 = vadd.f32 %v4576, %v4514
        %v4578 = vadd.f32 %v4577, %v4515
        %v4579 = vadd.f32 %v4578, %v4516
        %v4580 = vadd.f32 %v4579, %v4517
        %v4581 = vadd.f32 %v4580, %v4518
        %v4582 = vadd.f32 %v4581, %v4519
        %v4583 = vadd.f32 %v4582, %v4520
        %v4584 = vadd.f32 %v4583, %v4521
        %v4585 = vadd.f32 %v4584, %v4522
        %v4586 = vadd.f32 %v4585, %v4523
        %v4587 = vadd.f32 %v4586, %v4524
        %v4588 = vadd.f32 %v4587, %v4525
        %v4589 = vadd.f32 %v4588, %v4526
        %v4590 = vadd.f32 %v4589, %v4527
        %v4591 = vadd.f32 %v4590, %v4528
        %v4592 = vadd.f32 %v4591, %v4529
        %v4593 = vadd.f32 %v4592, %v4530
        %v4594 = vadd.f32 %v4593, %v4531
        %v4595 = vadd.f32 %v4594, %v4532
        %v4596 = vadd.f32 %v4595, %v4533
        %v4597 = vadd.f32 %v4596, %v4534
        %v4598 = vadd.f32 %v4597, %v4535
        %v4599 = vadd.f32 %v4598, %v4536
        %v4600 = vadd.f32 %v4599, %v4537
        %v4601 = vadd.f32 %v4600, %v4538
        %v4602 = vadd.f32 %v4601, %v4539
        %v4603 = vadd.f32 %v4602, %v4540
        %v4604 = vadd.f32 %v4603, %v4541
        %v4605 = vadd.f32 %v4604, %v4542
        %v4606 = vadd.f32 %v4605, %v4543
        %v4607 = vadd.f32 %v4606, %v4544
        %v4608 = vadd.f32 %v4607, %v4545
        %v4609 = vadd.f32 %v4608, %v4546
        %v4610 = vadd.f32 %v4609, %v4547
        %v4611 = vadd.f32 %v4610, %v4548
        %v4612 = vadd.f32 %v4611, %v4549
        %v4613 = vadd.f32 %v4612, %v4550
        %v4614 = vadd.f32 %v4613, %v4551
        %v4615 = vadd.f32 %v4614, %v4552
        %v4616 = vadd.f32 %v4615, %v4553
        %v4617 = vadd.f32 %v4616, %v4554
        %v4618 = vadd.f32 %v4617, %v4555
        %v4619 = vadd.f32 %v4618, %v4556
        %v4620 = vadd.f32 %v4619, %v4557
        %v4621 = vadd.f32 %v4620, %v4558
        %v4622 = vadd.f32 %v4621, %v4559
        %v4623 = vadd.f32 %v4622, %v4560
        %v4624 = vadd.f32 %v4623, %v4561
        %v4625 = vadd.f32 %v4624, %v4562
        %v4626 = vadd.f32 %v4625, %v4563
        %v4627 = vadd.f32 %v4626, %v4564
        %v4628 = vadd.f32 %v4627, %v4565
        %v4629 = vadd.f32 %v4628, %v4566
        %v4630 = vadd.f32 %v4629, %v4567
        %v4631 = vadd.f32 %v4630, %v4568
        %v4632 = vadd.f32 %v4631, %v4569
        %v4633 = vadd.f32 %v4632, %v4570
        %v4634 = vadd.f32 %v4633, %v4571
        %v4635 = vadd.f32 %v4634, %v4572
        %v4636 = vadd.f32 %v4635, %v4573
        %v4637 = vadd.f32 %v4636, %v4574
        %4638 = vadd.xlane.f32.xlu0 %v4637
        %v4639 = vpop.xlane.xlu0 %4638
        %v4640 = vrot.slane %v4639, 4
        %v4641 = vadd.f32 %v4639, %v4640
        %v4642 = vrot.slane %v4641, 2
        %v4643 = vadd.f32 %v4641, %v4642
        %v4644 = vrot.slane %v4643, 1
        %v4645 = vadd.f32 %v4643, %v4644
        %s4646 = vtos %v4645
        %v4647 = vstv %s4646
        %4648 = vst [vmem:[%s346] sm:$0xff] %v4647
      $region44: #{fcwcrf_loss.1} parent=35 // pred_fallthru
        _
      %p4649 = scmp.lt.s32.totalorder %s20, 1
      %s4650 = scalar_select %p4649, %s20, 1
      %p4651 = scmp.lt.s32.totalorder %s21, 0
      %s4652 = scalar_select %p4651, %s21, 0
      %s4653 = sadd.s32 %s4652, %s4650
      %s4654 = smul.addr %s4653, 8
      %s4655 = scalar_lea.vmem %s4, %s4654
      // Predicated region
      $region45: #{fcwcrf_loss.1} parent=35 // pred_check
        %p4656 = pneg %p166
      $region46: #{fcwcrf_loss.1} parent=35 // pred_check_branch
        %4658 = sbr.rel (%p4656) target = $region48
      $region47: #{fcwcrf_loss.1} parent=35 // pred_region
        _
      $region48: #{fcwcrf_loss.1} parent=35 // pred_fallthru
        _
    $region36: #{fcwcrf_loss.1} parent=5 // pred_fallthru
      _
    %p4659 = scmp.le.s32.totalorder 2, %s10
    // Predicated region
    $region49: #{fcwcrf_loss.1} parent=5 // pred_check
      %p4660 = pneg %p4659
    $region50: #{fcwcrf_loss.1} parent=5 // pred_check_branch
      %4662 = sbr.rel (%p4660) target = $region52
    $region51: #{fcwcrf_loss.1} parent=5 // pred_region
      %s4663 = ssub.s32 %s10, 2
      // Predicated region
      $region53: #{fcwcrf_loss.1} parent=51 // pred_check
        %p4664 = pneg %p172
      $region54: #{fcwcrf_loss.1} parent=51 // pred_check_branch
        %4666 = sbr.rel (%p4664) target = $region56
      $region55: #{fcwcrf_loss.1} parent=51 // pred_region
        %p4667 = scmp.lt.s32.totalorder %s23, 1
        %s4668 = scalar_select %p4667, %s23, 1
        %p4669 = scmp.lt.s32.totalorder %s24, 0
        %s4670 = scalar_select %p4669, %s24, 0
        %s4671 = sadd.s32 %s4670, %s4668
        %s4672 = smul.addr %s4671, 8
        %s4673 = scalar_lea.vmem %s4, %s4672
      $region56: #{fcwcrf_loss.1} parent=51 // pred_fallthru
        _
    $region52: #{fcwcrf_loss.1} parent=5 // pred_fallthru
      _
  $region6: #{fcwcrf_loss.1} parent=0 // loop_footer
    %s14 = sadd.s32 1, %s10
  $region7: #{fcwcrf_loss.1} parent=0 // loop_footer_branch
    %9 = sbr.rel target = $region3
  $region8: #{fcwcrf_loss.1} parent=0 // loop_exit
    _

</llo_original>
